<compile_context>
chip_gen: v7x
topology: tpu7x:2x2x1
jax: 0.10.0
libtpu: 0.0.40
codegen_flags: <defaults>
</compile_context>

<pallas_src>
import functools

import jax
import jax.numpy as jnp
from jax.experimental import pallas as pl
from jax.experimental.pallas import tpu as pltpu

MXU_DTYPE = jnp.bfloat16   # MXU operand dtype (accumulation is always f32)
IN_EPS = 1e-5              # torch.nn.InstanceNorm2d default eps


# ----------------------------------------------------------------------------
# helpers
# ----------------------------------------------------------------------------
def _fold_conv3x3_weights(w9, mxu_dtype=MXU_DTYPE):
    """(9, Cin, Cout) indexed dy*3+dx -> (3, 3*Cin, Cout) indexed [dx, dy*Cin+ci, co]."""
    cin, cout = w9.shape[1], w9.shape[2]
    w = w9.reshape(3, 3, cin, cout)            # [dy, dx, ci, co]
    w = jnp.transpose(w, (1, 0, 2, 3))         # [dx, dy, ci, co]
    return w.reshape(3, 3 * cin, cout).astype(mxu_dtype)


def _fused_vmem_bytes(H, W, C):
    """Conservative estimate of the fused kernel's VMEM residents (bytes)."""
    el = H * W * C
    io_blocks = 2 * 2 * el * 4                       # x + out blocks, double-buffered, f32
    params = 2 * (2 * 9 * C * C * 2 + 8 * C * 4)     # 2x (bf16 weights + per-C f32 vectors), 2 bufs
    temps = 16 * el * 4                              # padded copies, wide/patch, acc, y1/a1/y2/out
    return io_blocks + params + temps


# ----------------------------------------------------------------------------
# fused kernel: conv1 -> IN1 -> ReLU -> conv2 -> IN2 -> +x   (one batch element)
# ----------------------------------------------------------------------------
def _residual_block_kernel(x_ref, w1_ref, b1_ref, g1_ref, bt1_ref,
                           w2_ref, b2_ref, g2_ref, bt2_ref,
                           o_ref, *, H, W, C, eps, mxu_dtype):
    """x_ref: (1,H,W,C) f32; w*_ref: (3,3C,C) bf16; b/g/bt refs: (1,C) f32;
    o_ref: (1,H*W,C) f32.  Everything for one image stays resident in VMEM."""
    x = x_ref[0]                                               # (H, W, C) f32

    def reflect_pad(t):
        # nn.ReflectionPad2d(1): padded row/col 0 mirrors row/col 1, etc.
        t = jnp.concatenate([t[:, 1:2, :], t, t[:, W - 2:W - 1, :]], axis=1)
        t = jnp.concatenate([t[1:2, :, :], t, t[H - 2:H - 1, :, :]], axis=0)
        return t                                               # (H+2, W+2, C)

    def conv3x3(a, w_ref, b_ref):
        # a: (H, W, C) f32 -> (H*W, Cout) f32 via 3 K-folded MXU matmuls (K=3C).
        ap = reflect_pad(a).astype(mxu_dtype)                  # (H+2, W+2, C) bf16
        # dy-folded band built ONCE, reused for all three dx shifts.
        wide = jnp.concatenate([ap[dy:dy + H] for dy in range(3)], axis=-1)
        cout = w_ref.shape[-1]
        acc = jnp.zeros((H * W, cout), jnp.float32)
        for dx in range(3):                                    # static, unrolled
            patch = wide[:, dx:dx + W, :].reshape(H * W, 3 * C)
            acc = acc + jnp.dot(patch, w_ref[dx],
                                preferred_element_type=jnp.float32)
        return acc + b_ref[...]                                # + (1, Cout) bias

    def instance_norm(y, g_ref, bt_ref):
        # Two-pass centered statistics (biased variance), all in f32.
        mean = jnp.mean(y, axis=0, keepdims=True)              # (1, C)
        d = y - mean
        var = jnp.mean(d * d, axis=0, keepdims=True)           # (1, C)
        return d * jax.lax.rsqrt(var + eps) * g_ref[...] + bt_ref[...]

    y1 = conv3x3(x, w1_ref, b1_ref)                            # conv1
    a1 = jnp.maximum(instance_norm(y1, g1_ref, bt1_ref), 0.0)  # in1 + relu
    y2 = conv3x3(a1.reshape(H, W, C), w2_ref, b2_ref)          # conv2
    out = instance_norm(y2, g2_ref, bt2_ref)                   # in2
    o_ref[0] = out + x.reshape(H * W, C)                       # + residual


def residual_block_forward(x, params, *, eps=IN_EPS):
    """x: (B, H, W, C) f32 NHWC. Returns (B, H, W, C) f32."""
    B, H, W, C = x.shape
    assert H >= 2 and W >= 2, "ReflectionPad2d(1) needs spatial dims >= 2"

    # Generation-aware VMEM feasibility / limit (v7x: 64 MiB, v5e/v6e: 128 MiB).
    try:
        vmem_cap = int(pltpu.get_tpu_info().vmem_capacity_bytes)
    except Exception:
        vmem_cap = 64 * 1024 * 1024            # conservative (v7x)
    budget = (vmem_cap * 3) // 4
    est = _fused_vmem_bytes(H, W, C)
    if est > budget:
        raise NotImplementedError(
            f"fused ResidualBlock needs ~{est} B of VMEM per image; budget {budget} B")
    vmem_limit = int(min(budget, max(32 * 1024 * 1024, 2 * est)))

    kern = functools.partial(_residual_block_kernel,
                             H=H, W=W, C=C, eps=eps, mxu_dtype=MXU_DTYPE)
    wspec = pl.BlockSpec((3, 3 * C, C), lambda b: (0, 0, 0))
    vspec = pl.BlockSpec((1, C), lambda b: (0, 0))

    out = pl.pallas_call(
        kern,
        out_shape=jax.ShapeDtypeStruct((B, H * W, C), jnp.float32),
        grid_spec=pltpu.PrefetchScalarGridSpec(
            num_scalar_prefetch=0,
            grid=(B,),
            in_specs=[
                pl.BlockSpec((1, H, W, C), lambda b: (b, 0, 0, 0)),
                wspec, vspec, vspec, vspec,
                wspec, vspec, vspec, vspec,
            ],
            out_specs=pl.BlockSpec((1, H * W, C), lambda b: (b, 0, 0)),
        ),
        compiler_params=pltpu.CompilerParams(
            dimension_semantics=("parallel",),   # batch axis -> v7x megacore
            vmem_limit_bytes=vmem_limit,
        ),
    )(x,
      params["w1"], params["b1"], params["g1"], params["bt1"],
      params["w2"], params["b2"], params["g2"], params["bt2"])
    return out.reshape(B, H, W, C)


# ----------------------------------------------------------------------------
# deterministic synthetic parameters + pure-JAX f32 reference
# ----------------------------------------------------------------------------
def init_raw_params(key, channels):
    """f32 parameters in PyTorch-equivalent layout (conv w: (9, Cin, Cout), dy*3+dx)."""
    ks = jax.random.split(key, 8)

    def conv_w(k):
        return jax.random.normal(k, (9, channels, channels), jnp.float32) * 0.05

    return {
        "w1_9": conv_w(ks[0]),
        "b1": jax.random.normal(ks[1], (channels,), jnp.float32) * 0.05,
        "g1": 1.0 + 0.1 * jax.random.normal(ks[2], (channels,), jnp.float32),
        "bt1": 0.1 * jax.random.normal(ks[3], (channels,), jnp.float32),
        "w2_9": conv_w(ks[4]),
        "b2": jax.random.normal(ks[5], (channels,), jnp.float32) * 0.05,
        "g2": 1.0 + 0.1 * jax.random.normal(ks[6], (channels,), jnp.float32),
        "bt2": 0.1 * jax.random.normal(ks[7], (channels,), jnp.float32),
    }


def pack_params(raw):
    """Kernel-format params: K-folded bf16 conv weights, (1, C) f32 vectors."""
    def vec(v):
        return v.reshape(1, -1).astype(jnp.float32)
    return {
        "w1": _fold_conv3x3_weights(raw["w1_9"]), "b1": vec(raw["b1"]),
        "g1": vec(raw["g1"]), "bt1": vec(raw["bt1"]),
        "w2": _fold_conv3x3_weights(raw["w2_9"]), "b2": vec(raw["b2"]),
        "g2": vec(raw["g2"]), "bt2": vec(raw["bt2"]),
    }


def residual_block_reference(x, raw, *, eps=IN_EPS):
    """Pure-JAX f32 reference matching the PyTorch module (NHWC layout)."""
    def conv3x3_reflect(a, w9, b):
        H, W = a.shape[1], a.shape[2]
        ap = jnp.pad(a, ((0, 0), (1, 1), (1, 1), (0, 0)), mode="reflect")
        y = jnp.zeros(a.shape[:3] + (w9.shape[-1],), jnp.float32)
        for dy in range(3):
            for dx in range(3):
                y = y + jnp.einsum("bhwc,cd->bhwd",
                                   ap[:, dy:dy + H, dx:dx + W, :], w9[dy * 3 + dx])
        return y + b

    def inorm(y, g, bt):
        mean = jnp.mean(y, axis=(1, 2), keepdims=True)
        var = jnp.mean((y - mean) ** 2, axis=(1, 2), keepdims=True)
        return (y - mean) * jax.lax.rsqrt(var + eps) * g + bt

    y1 = conv3x3_reflect(x, raw["w1_9"], raw["b1"])
    a1 = jnp.maximum(inorm(y1, raw["g1"], raw["bt1"]), 0.0)
    y2 = conv3x3_reflect(a1, raw["w2_9"], raw["b2"])
    return inorm(y2, raw["g2"], raw["bt2"]) + x


if __name__ == "__main__":
    # NHWC; equivalent of the PyTorch module's NCHW input (2, 32, 16, 16).
    B, H, W, C = 2, 16, 16, 32
    key = jax.random.PRNGKey(0)
    kx, kp = jax.random.split(key)
    x = jax.random.normal(kx, (B, H, W, C), jnp.float32)

    raw = init_raw_params(kp, C)
    params = pack_params(raw)

    out = residual_block_forward(x, params)
    jax.block_until_ready(out)
    assert out.shape == (B, H, W, C)

    # Validate against the pure-f32 reference (bf16 MXU operands -> loose tol).
    ref = residual_block_reference(x, raw)
    max_err = float(jnp.max(jnp.abs(out - ref)))
    assert max_err < 0.15, f"max abs error vs f32 reference too large: {max_err}"
    print("KERNEL_OK")
</pallas_src>

<mosaic_0001>
module attributes {stable_mosaic.version = 11 : i64} {
  func.func @_residual_block_kernel(%arg0: i32, %arg1: memref<1x16x16x32xf32, #tpu.memory_space<vmem>>, %arg2: memref<3x96x32xbf16, #tpu.memory_space<vmem>>, %arg3: memref<1x32xf32, #tpu.memory_space<vmem>>, %arg4: memref<1x32xf32, #tpu.memory_space<vmem>>, %arg5: memref<1x32xf32, #tpu.memory_space<vmem>>, %arg6: memref<3x96x32xbf16, #tpu.memory_space<vmem>>, %arg7: memref<1x32xf32, #tpu.memory_space<vmem>>, %arg8: memref<1x32xf32, #tpu.memory_space<vmem>>, %arg9: memref<1x32xf32, #tpu.memory_space<vmem>>, %arg10: memref<1x256x32xf32, #tpu.memory_space<vmem>>) attributes {dimension_semantics = [#tpu.dimension_semantics<parallel>], iteration_bounds = array<i64: 2>, scalar_prefetch = 0 : i64, scratch_operands = 0 : i64, tpu.core_type = #tpu.core_type<tc>, window_params = [{transform_indices = @transform_0, window_bounds = array<i64: 1, 16, 16, 32>}, {pipeline_mode = #tpu.pipeline_mode<synchronous>, transform_indices = @transform_1, window_bounds = array<i64: 3, 96, 32>}, {pipeline_mode = #tpu.pipeline_mode<synchronous>, transform_indices = @transform_2, window_bounds = array<i64: 1, 32>}, {pipeline_mode = #tpu.pipeline_mode<synchronous>, transform_indices = @transform_3, window_bounds = array<i64: 1, 32>}, {pipeline_mode = #tpu.pipeline_mode<synchronous>, transform_indices = @transform_4, window_bounds = array<i64: 1, 32>}, {pipeline_mode = #tpu.pipeline_mode<synchronous>, transform_indices = @transform_5, window_bounds = array<i64: 3, 96, 32>}, {pipeline_mode = #tpu.pipeline_mode<synchronous>, transform_indices = @transform_6, window_bounds = array<i64: 1, 32>}, {pipeline_mode = #tpu.pipeline_mode<synchronous>, transform_indices = @transform_7, window_bounds = array<i64: 1, 32>}, {pipeline_mode = #tpu.pipeline_mode<synchronous>, transform_indices = @transform_8, window_bounds = array<i64: 1, 32>}, {transform_indices = @transform_9, window_bounds = array<i64: 1, 256, 32>}]} {
    %c0 = arith.constant 0 : index
    %c0_0 = arith.constant 0 : index
    %c0_1 = arith.constant 0 : index
    %c0_2 = arith.constant 0 : index
    %0 = vector.load %arg1[%c0, %c0_0, %c0_1, %c0_2] : memref<1x16x16x32xf32, #tpu.memory_space<vmem>>, vector<1x16x16x32xf32>
    %1 = vector.shape_cast %0 : vector<1x16x16x32xf32> to vector<16x16x32xf32>
    %2 = vector.extract_strided_slice %1 {offsets = [0, 1, 0], sizes = [16, 1, 32], strides = [1, 1, 1]} : vector<16x16x32xf32> to vector<16x1x32xf32>
    %3 = vector.extract_strided_slice %1 {offsets = [0, 14, 0], sizes = [16, 1, 32], strides = [1, 1, 1]} : vector<16x16x32xf32> to vector<16x1x32xf32>
    %4 = tpu.concatenate %2, %1, %3 in 1 : vector<16x1x32xf32>, vector<16x16x32xf32>, vector<16x1x32xf32> -> vector<16x18x32xf32>
    %5 = vector.extract_strided_slice %4 {offsets = [1, 0, 0], sizes = [1, 18, 32], strides = [1, 1, 1]} : vector<16x18x32xf32> to vector<1x18x32xf32>
    %6 = vector.extract_strided_slice %4 {offsets = [14, 0, 0], sizes = [1, 18, 32], strides = [1, 1, 1]} : vector<16x18x32xf32> to vector<1x18x32xf32>
    %7 = tpu.concatenate %5, %4, %6 in 0 : vector<1x18x32xf32>, vector<16x18x32xf32>, vector<1x18x32xf32> -> vector<18x18x32xf32>
    %8 = arith.truncf %7 : vector<18x18x32xf32> to vector<18x18x32xbf16>
    %9 = vector.extract_strided_slice %8 {offsets = [0, 0, 0], sizes = [16, 18, 32], strides = [1, 1, 1]} : vector<18x18x32xbf16> to vector<16x18x32xbf16>
    %10 = vector.extract_strided_slice %8 {offsets = [1, 0, 0], sizes = [16, 18, 32], strides = [1, 1, 1]} : vector<18x18x32xbf16> to vector<16x18x32xbf16>
    %11 = vector.extract_strided_slice %8 {offsets = [2, 0, 0], sizes = [16, 18, 32], strides = [1, 1, 1]} : vector<18x18x32xbf16> to vector<16x18x32xbf16>
    %12 = tpu.concatenate %9, %10, %11 in 2 : vector<16x18x32xbf16>, vector<16x18x32xbf16>, vector<16x18x32xbf16> -> vector<16x18x96xbf16>
    %cst = arith.constant 0.000000e+00 : f32
    %13 = vector.broadcast %cst : f32 to vector<256x32xf32>
    %14 = vector.extract_strided_slice %12 {offsets = [0, 0, 0], sizes = [16, 16, 96], strides = [1, 1, 1]} : vector<16x18x96xbf16> to vector<16x16x96xbf16>
    %15 = vector.shape_cast %14 : vector<16x16x96xbf16> to vector<256x96xbf16>
    %c0_3 = arith.constant 0 : index
    %c0_4 = arith.constant 0 : index
    %c0_5 = arith.constant 0 : index
    %16 = vector.load %arg2[%c0_3, %c0_4, %c0_5] : memref<3x96x32xbf16, #tpu.memory_space<vmem>>, vector<1x96x32xbf16>
    %17 = vector.shape_cast %16 : vector<1x96x32xbf16> to vector<96x32xbf16>
    %cst_6 = arith.constant dense<0.000000e+00> : vector<256x32xf32>
    %18 = tpu.matmul %15, %17, %cst_6 {dimension_numbers = #tpu.dot_dimension_numbers<[1], [0], [0], [1], [0, 0, 1, 1], [], []>} : vector<256x96xbf16>, vector<96x32xbf16>, vector<256x32xf32> -> vector<256x32xf32>
    %19 = arith.addf %13, %18 : vector<256x32xf32>
    %20 = vector.extract_strided_slice %12 {offsets = [0, 1, 0], sizes = [16, 16, 96], strides = [1, 1, 1]} : vector<16x18x96xbf16> to vector<16x16x96xbf16>
    %21 = vector.shape_cast %20 : vector<16x16x96xbf16> to vector<256x96xbf16>
    %c1 = arith.constant 1 : index
    %c0_7 = arith.constant 0 : index
    %c0_8 = arith.constant 0 : index
    %22 = vector.load %arg2[%c1, %c0_7, %c0_8] : memref<3x96x32xbf16, #tpu.memory_space<vmem>>, vector<1x96x32xbf16>
    %23 = vector.shape_cast %22 : vector<1x96x32xbf16> to vector<96x32xbf16>
    %cst_9 = arith.constant dense<0.000000e+00> : vector<256x32xf32>
    %24 = tpu.matmul %21, %23, %cst_9 {dimension_numbers = #tpu.dot_dimension_numbers<[1], [0], [0], [1], [0, 0, 1, 1], [], []>} : vector<256x96xbf16>, vector<96x32xbf16>, vector<256x32xf32> -> vector<256x32xf32>
    %25 = arith.addf %19, %24 : vector<256x32xf32>
    %26 = vector.extract_strided_slice %12 {offsets = [0, 2, 0], sizes = [16, 16, 96], strides = [1, 1, 1]} : vector<16x18x96xbf16> to vector<16x16x96xbf16>
    %27 = vector.shape_cast %26 : vector<16x16x96xbf16> to vector<256x96xbf16>
    %c2 = arith.constant 2 : index
    %c0_10 = arith.constant 0 : index
    %c0_11 = arith.constant 0 : index
    %28 = vector.load %arg2[%c2, %c0_10, %c0_11] : memref<3x96x32xbf16, #tpu.memory_space<vmem>>, vector<1x96x32xbf16>
    %29 = vector.shape_cast %28 : vector<1x96x32xbf16> to vector<96x32xbf16>
    %cst_12 = arith.constant dense<0.000000e+00> : vector<256x32xf32>
    %30 = tpu.matmul %27, %29, %cst_12 {dimension_numbers = #tpu.dot_dimension_numbers<[1], [0], [0], [1], [0, 0, 1, 1], [], []>} : vector<256x96xbf16>, vector<96x32xbf16>, vector<256x32xf32> -> vector<256x32xf32>
    %31 = arith.addf %25, %30 : vector<256x32xf32>
    %c0_13 = arith.constant 0 : index
    %c0_14 = arith.constant 0 : index
    %32 = vector.load %arg3[%c0_13, %c0_14] : memref<1x32xf32, #tpu.memory_space<vmem>>, vector<1x32xf32>
    %33 = vector.broadcast %32 : vector<1x32xf32> to vector<256x32xf32>
    %34 = arith.addf %31, %33 : vector<256x32xf32>
    %cst_15 = arith.constant dense<0.000000e+00> : vector<32xf32>
    %35 = vector.multi_reduction <add>, %34, %cst_15 [0] : vector<256x32xf32> to vector<32xf32>
    %36 = vector.shape_cast %35 : vector<32xf32> to vector<1x32xf32>
    %cst_16 = arith.constant 2.560000e+02 : f32
    %37 = vector.broadcast %cst_16 : f32 to vector<1x32xf32>
    %38 = arith.divf %36, %37 : vector<1x32xf32>
    %39 = vector.broadcast %38 : vector<1x32xf32> to vector<256x32xf32>
    %40 = arith.subf %34, %39 : vector<256x32xf32>
    %41 = arith.mulf %40, %40 : vector<256x32xf32>
    %cst_17 = arith.constant dense<0.000000e+00> : vector<32xf32>
    %42 = vector.multi_reduction <add>, %41, %cst_17 [0] : vector<256x32xf32> to vector<32xf32>
    %43 = vector.shape_cast %42 : vector<32xf32> to vector<1x32xf32>
    %cst_18 = arith.constant 2.560000e+02 : f32
    %44 = vector.broadcast %cst_18 : f32 to vector<1x32xf32>
    %45 = arith.divf %43, %44 : vector<1x32xf32>
    %cst_19 = arith.constant 9.99999974E-6 : f32
    %46 = vector.broadcast %cst_19 : f32 to vector<1x32xf32>
    %47 = arith.addf %45, %46 : vector<1x32xf32>
    %48 = math.rsqrt %47 : vector<1x32xf32>
    %49 = vector.broadcast %48 : vector<1x32xf32> to vector<256x32xf32>
    %50 = arith.mulf %40, %49 : vector<256x32xf32>
    %c0_20 = arith.constant 0 : index
    %c0_21 = arith.constant 0 : index
    %51 = vector.load %arg4[%c0_20, %c0_21] : memref<1x32xf32, #tpu.memory_space<vmem>>, vector<1x32xf32>
    %52 = vector.broadcast %51 : vector<1x32xf32> to vector<256x32xf32>
    %53 = arith.mulf %50, %52 : vector<256x32xf32>
    %c0_22 = arith.constant 0 : index
    %c0_23 = arith.constant 0 : index
    %54 = vector.load %arg5[%c0_22, %c0_23] : memref<1x32xf32, #tpu.memory_space<vmem>>, vector<1x32xf32>
    %55 = vector.broadcast %54 : vector<1x32xf32> to vector<256x32xf32>
    %56 = arith.addf %53, %55 : vector<256x32xf32>
    %cst_24 = arith.constant 0.000000e+00 : f32
    %57 = vector.broadcast %cst_24 : f32 to vector<256x32xf32>
    %58 = arith.maximumf %56, %57 : vector<256x32xf32>
    %59 = vector.shape_cast %58 : vector<256x32xf32> to vector<16x16x32xf32>
    %60 = vector.extract_strided_slice %59 {offsets = [0, 1, 0], sizes = [16, 1, 32], strides = [1, 1, 1]} : vector<16x16x32xf32> to vector<16x1x32xf32>
    %61 = vector.extract_strided_slice %59 {offsets = [0, 14, 0], sizes = [16, 1, 32], strides = [1, 1, 1]} : vector<16x16x32xf32> to vector<16x1x32xf32>
    %62 = tpu.concatenate %60, %59, %61 in 1 : vector<16x1x32xf32>, vector<16x16x32xf32>, vector<16x1x32xf32> -> vector<16x18x32xf32>
    %63 = vector.extract_strided_slice %62 {offsets = [1, 0, 0], sizes = [1, 18, 32], strides = [1, 1, 1]} : vector<16x18x32xf32> to vector<1x18x32xf32>
    %64 = vector.extract_strided_slice %62 {offsets = [14, 0, 0], sizes = [1, 18, 32], strides = [1, 1, 1]} : vector<16x18x32xf32> to vector<1x18x32xf32>
    %65 = tpu.concatenate %63, %62, %64 in 0 : vector<1x18x32xf32>, vector<16x18x32xf32>, vector<1x18x32xf32> -> vector<18x18x32xf32>
    %66 = arith.truncf %65 : vector<18x18x32xf32> to vector<18x18x32xbf16>
    %67 = vector.extract_strided_slice %66 {offsets = [0, 0, 0], sizes = [16, 18, 32], strides = [1, 1, 1]} : vector<18x18x32xbf16> to vector<16x18x32xbf16>
    %68 = vector.extract_strided_slice %66 {offsets = [1, 0, 0], sizes = [16, 18, 32], strides = [1, 1, 1]} : vector<18x18x32xbf16> to vector<16x18x32xbf16>
    %69 = vector.extract_strided_slice %66 {offsets = [2, 0, 0], sizes = [16, 18, 32], strides = [1, 1, 1]} : vector<18x18x32xbf16> to vector<16x18x32xbf16>
    %70 = tpu.concatenate %67, %68, %69 in 2 : vector<16x18x32xbf16>, vector<16x18x32xbf16>, vector<16x18x32xbf16> -> vector<16x18x96xbf16>
    %cst_25 = arith.constant 0.000000e+00 : f32
    %71 = vector.broadcast %cst_25 : f32 to vector<256x32xf32>
    %72 = vector.extract_strided_slice %70 {offsets = [0, 0, 0], sizes = [16, 16, 96], strides = [1, 1, 1]} : vector<16x18x96xbf16> to vector<16x16x96xbf16>
    %73 = vector.shape_cast %72 : vector<16x16x96xbf16> to vector<256x96xbf16>
    %c0_26 = arith.constant 0 : index
    %c0_27 = arith.constant 0 : index
    %c0_28 = arith.constant 0 : index
    %74 = vector.load %arg6[%c0_26, %c0_27, %c0_28] : memref<3x96x32xbf16, #tpu.memory_space<vmem>>, vector<1x96x32xbf16>
    %75 = vector.shape_cast %74 : vector<1x96x32xbf16> to vector<96x32xbf16>
    %cst_29 = arith.constant dense<0.000000e+00> : vector<256x32xf32>
    %76 = tpu.matmul %73, %75, %cst_29 {dimension_numbers = #tpu.dot_dimension_numbers<[1], [0], [0], [1], [0, 0, 1, 1], [], []>} : vector<256x96xbf16>, vector<96x32xbf16>, vector<256x32xf32> -> vector<256x32xf32>
    %77 = arith.addf %71, %76 : vector<256x32xf32>
    %78 = vector.extract_strided_slice %70 {offsets = [0, 1, 0], sizes = [16, 16, 96], strides = [1, 1, 1]} : vector<16x18x96xbf16> to vector<16x16x96xbf16>
    %79 = vector.shape_cast %78 : vector<16x16x96xbf16> to vector<256x96xbf16>
    %c1_30 = arith.constant 1 : index
    %c0_31 = arith.constant 0 : index
    %c0_32 = arith.constant 0 : index
    %80 = vector.load %arg6[%c1_30, %c0_31, %c0_32] : memref<3x96x32xbf16, #tpu.memory_space<vmem>>, vector<1x96x32xbf16>
    %81 = vector.shape_cast %80 : vector<1x96x32xbf16> to vector<96x32xbf16>
    %cst_33 = arith.constant dense<0.000000e+00> : vector<256x32xf32>
    %82 = tpu.matmul %79, %81, %cst_33 {dimension_numbers = #tpu.dot_dimension_numbers<[1], [0], [0], [1], [0, 0, 1, 1], [], []>} : vector<256x96xbf16>, vector<96x32xbf16>, vector<256x32xf32> -> vector<256x32xf32>
    %83 = arith.addf %77, %82 : vector<256x32xf32>
    %84 = vector.extract_strided_slice %70 {offsets = [0, 2, 0], sizes = [16, 16, 96], strides = [1, 1, 1]} : vector<16x18x96xbf16> to vector<16x16x96xbf16>
    %85 = vector.shape_cast %84 : vector<16x16x96xbf16> to vector<256x96xbf16>
    %c2_34 = arith.constant 2 : index
    %c0_35 = arith.constant 0 : index
    %c0_36 = arith.constant 0 : index
    %86 = vector.load %arg6[%c2_34, %c0_35, %c0_36] : memref<3x96x32xbf16, #tpu.memory_space<vmem>>, vector<1x96x32xbf16>
    %87 = vector.shape_cast %86 : vector<1x96x32xbf16> to vector<96x32xbf16>
    %cst_37 = arith.constant dense<0.000000e+00> : vector<256x32xf32>
    %88 = tpu.matmul %85, %87, %cst_37 {dimension_numbers = #tpu.dot_dimension_numbers<[1], [0], [0], [1], [0, 0, 1, 1], [], []>} : vector<256x96xbf16>, vector<96x32xbf16>, vector<256x32xf32> -> vector<256x32xf32>
    %89 = arith.addf %83, %88 : vector<256x32xf32>
    %c0_38 = arith.constant 0 : index
    %c0_39 = arith.constant 0 : index
    %90 = vector.load %arg7[%c0_38, %c0_39] : memref<1x32xf32, #tpu.memory_space<vmem>>, vector<1x32xf32>
    %91 = vector.broadcast %90 : vector<1x32xf32> to vector<256x32xf32>
    %92 = arith.addf %89, %91 : vector<256x32xf32>
    %cst_40 = arith.constant dense<0.000000e+00> : vector<32xf32>
    %93 = vector.multi_reduction <add>, %92, %cst_40 [0] : vector<256x32xf32> to vector<32xf32>
    %94 = vector.shape_cast %93 : vector<32xf32> to vector<1x32xf32>
    %cst_41 = arith.constant 2.560000e+02 : f32
    %95 = vector.broadcast %cst_41 : f32 to vector<1x32xf32>
    %96 = arith.divf %94, %95 : vector<1x32xf32>
    %97 = vector.broadcast %96 : vector<1x32xf32> to vector<256x32xf32>
    %98 = arith.subf %92, %97 : vector<256x32xf32>
    %99 = arith.mulf %98, %98 : vector<256x32xf32>
    %cst_42 = arith.constant dense<0.000000e+00> : vector<32xf32>
    %100 = vector.multi_reduction <add>, %99, %cst_42 [0] : vector<256x32xf32> to vector<32xf32>
    %101 = vector.shape_cast %100 : vector<32xf32> to vector<1x32xf32>
    %cst_43 = arith.constant 2.560000e+02 : f32
    %102 = vector.broadcast %cst_43 : f32 to vector<1x32xf32>
    %103 = arith.divf %101, %102 : vector<1x32xf32>
    %cst_44 = arith.constant 9.99999974E-6 : f32
    %104 = vector.broadcast %cst_44 : f32 to vector<1x32xf32>
    %105 = arith.addf %103, %104 : vector<1x32xf32>
    %106 = math.rsqrt %105 : vector<1x32xf32>
    %107 = vector.broadcast %106 : vector<1x32xf32> to vector<256x32xf32>
    %108 = arith.mulf %98, %107 : vector<256x32xf32>
    %c0_45 = arith.constant 0 : index
    %c0_46 = arith.constant 0 : index
    %109 = vector.load %arg8[%c0_45, %c0_46] : memref<1x32xf32, #tpu.memory_space<vmem>>, vector<1x32xf32>
    %110 = vector.broadcast %109 : vector<1x32xf32> to vector<256x32xf32>
    %111 = arith.mulf %108, %110 : vector<256x32xf32>
    %c0_47 = arith.constant 0 : index
    %c0_48 = arith.constant 0 : index
    %112 = vector.load %arg9[%c0_47, %c0_48] : memref<1x32xf32, #tpu.memory_space<vmem>>, vector<1x32xf32>
    %113 = vector.broadcast %112 : vector<1x32xf32> to vector<256x32xf32>
    %114 = arith.addf %111, %113 : vector<256x32xf32>
    %115 = vector.shape_cast %1 : vector<16x16x32xf32> to vector<256x32xf32>
    %116 = arith.addf %114, %115 : vector<256x32xf32>
    %c0_49 = arith.constant 0 : index
    %c0_50 = arith.constant 0 : index
    %c0_51 = arith.constant 0 : index
    %117 = vector.load %arg10[%c0_49, %c0_50, %c0_51] : memref<1x256x32xf32, #tpu.memory_space<vmem>>, vector<1x256x32xf32>
    %118 = vector.shape_cast %117 : vector<1x256x32xf32> to vector<256x32xf32>
    %119 = vector.shape_cast %116 : vector<256x32xf32> to vector<1x256x32xf32>
    tpu.vector_store %arg10[%c0_49, %c0_50, %c0_51], %119 {strides = array<i32>} : memref<1x256x32xf32, #tpu.memory_space<vmem>>, vector<1x256x32xf32>,
    return
  }
  func.func @transform_0(%arg0: i32) -> (i32, i32, i32, i32) {
    %c0_i32 = arith.constant 0 : i32
    %c0_i32_0 = arith.constant 0 : i32
    %c0_i32_1 = arith.constant 0 : i32
    %c0_i32_2 = arith.constant 0 : i32
    return %arg0, %c0_i32, %c0_i32_0, %c0_i32_1 : i32, i32, i32, i32
  }
  func.func @transform_1(%arg0: i32) -> (i32, i32, i32) {
    %c0_i32 = arith.constant 0 : i32
    %c0_i32_0 = arith.constant 0 : i32
    %c0_i32_1 = arith.constant 0 : i32
    %c0_i32_2 = arith.constant 0 : i32
    return %c0_i32, %c0_i32_0, %c0_i32_1 : i32, i32, i32
  }
  func.func @transform_2(%arg0: i32) -> (i32, i32) {
    %c0_i32 = arith.constant 0 : i32
    %c0_i32_0 = arith.constant 0 : i32
    %c0_i32_1 = arith.constant 0 : i32
    return %c0_i32, %c0_i32_0 : i32, i32
  }
  func.func @transform_3(%arg0: i32) -> (i32, i32) {
    %c0_i32 = arith.constant 0 : i32
    %c0_i32_0 = arith.constant 0 : i32
    %c0_i32_1 = arith.constant 0 : i32
    return %c0_i32, %c0_i32_0 : i32, i32
  }
  func.func @transform_4(%arg0: i32) -> (i32, i32) {
    %c0_i32 = arith.constant 0 : i32
    %c0_i32_0 = arith.constant 0 : i32
    %c0_i32_1 = arith.constant 0 : i32
    return %c0_i32, %c0_i32_0 : i32, i32
  }
  func.func @transform_5(%arg0: i32) -> (i32, i32, i32) {
    %c0_i32 = arith.constant 0 : i32
    %c0_i32_0 = arith.constant 0 : i32
    %c0_i32_1 = arith.constant 0 : i32
    %c0_i32_2 = arith.constant 0 : i32
    return %c0_i32, %c0_i32_0, %c0_i32_1 : i32, i32, i32
  }
  func.func @transform_6(%arg0: i32) -> (i32, i32) {
    %c0_i32 = arith.constant 0 : i32
    %c0_i32_0 = arith.constant 0 : i32
    %c0_i32_1 = arith.constant 0 : i32
    return %c0_i32, %c0_i32_0 : i32, i32
  }
  func.func @transform_7(%arg0: i32) -> (i32, i32) {
    %c0_i32 = arith.constant 0 : i32
    %c0_i32_0 = arith.constant 0 : i32
    %c0_i32_1 = arith.constant 0 : i32
    return %c0_i32, %c0_i32_0 : i32, i32
  }
  func.func @transform_8(%arg0: i32) -> (i32, i32) {
    %c0_i32 = arith.constant 0 : i32
    %c0_i32_0 = arith.constant 0 : i32
    %c0_i32_1 = arith.constant 0 : i32
    return %c0_i32, %c0_i32_0 : i32, i32
  }
  func.func @transform_9(%arg0: i32) -> (i32, i32, i32) {
    %c0_i32 = arith.constant 0 : i32
    %c0_i32_0 = arith.constant 0 : i32
    %c0_i32_1 = arith.constant 0 : i32
    return %arg0, %c0_i32, %c0_i32_0 : i32, i32, i32
  }
}

</mosaic_0001>

<llo_original>
// kernel: tpu_custom_call.1
$region0: #{tpu_custom_call.1}
  #allocation0 [shape = 'u32[]', space=smem, size = 0x4, offset = 0x4, fixed_abs, tag = 'smem constant byte address 0x4 - core index']
  #allocation1 [shape = 'u32[144,128]{1,0:T(1,128)}', space=vmem, size = 0x12000, scoped, tag = 'internal scratch']
  %s0 = inlined_call_operand.hbm [shape: f32[2,16,16,32], index: 0, kind: input, shape index: {}]
  %s1 = inlined_call_operand.vmem [shape: bf16[3,96,32], index: 1, kind: input, shape index: {}]
  %s2 = inlined_call_operand.vmem [shape: f32[1,32], index: 2, kind: input, shape index: {}]
  %s3 = inlined_call_operand.vmem [shape: f32[1,32], index: 3, kind: input, shape index: {}]
  %s4 = inlined_call_operand.vmem [shape: f32[1,32], index: 4, kind: input, shape index: {}]
  %s5 = inlined_call_operand.vmem [shape: bf16[3,96,32], index: 5, kind: input, shape index: {}]
  %s6 = inlined_call_operand.vmem [shape: f32[1,32], index: 6, kind: input, shape index: {}]
  %s7 = inlined_call_operand.vmem [shape: f32[1,32], index: 7, kind: input, shape index: {}]
  %s8 = inlined_call_operand.vmem [shape: f32[1,32], index: 8, kind: input, shape index: {}]
  %s9 = inlined_call_operand.vmem [shape: f32[2,256,32], index: 9, kind: output, shape index: {}]
  %s10 = sld [smem:[#allocation0]]
  $region73: #{tpu_custom_call.1} parent=0
    _
  %s12 = ssub.s32 1, %s10
  %s13 = scalar_select 0, %s12, %s10
  $region1: #{tpu_custom_call.1} parent=0
    #allocation2 [shape = 'u8[262144]{0}', space=vmem, size = 0x40000, scoped, tag = 'input window, operand 0']
    #allocation3 [shape = 's32[2]{0}', space=sflag, size = 0x8, scoped, tag = 'scoped memory for tpu_custom_call.1']
    %14 = vsyncpa [#allocation3], 0
    %s15 = scalar_lea.sflag [#allocation3], 1
    %16 = vsyncpa %s15, 0
    loop: start=0, step=1, limit=4
    $region2: #{tpu_custom_call.1} parent=1 // loop_pre_header
      _
    $region3: #{tpu_custom_call.1} parent=1 // loop_header
      %s18 = sphi 0, %s22
      %p19 = scmp.ge.s32.totalorder %s18, 4
      %s28 = sphi 0, %s30
      %s31 = sphi 0, %s28
      %s32 = sphi 0, %s31
      %s48 = sphi 0, %s32
      %s52 = sphi 0, %s52
      %s54 = sphi 0, %s52
      %s55 = sphi 0, %s54
      %s69 = sphi 0, %s55
      %s73 = sphi 0, %s73
      %s75 = sphi 0, %s73
      %s76 = sphi 0, %s75
      %s90 = sphi 0, %s76
      %s94 = sphi 0, %s94
      %s96 = sphi 0, %s94
      %s97 = sphi 0, %s96
      %s111 = sphi 0, %s97
      %s115 = sphi 0, %s115
      %s117 = sphi 0, %s115
      %s118 = sphi 0, %s117
      %s132 = sphi 0, %s118
      %s136 = sphi 0, %s136
      %s138 = sphi 0, %s136
      %s139 = sphi 0, %s138
      %s153 = sphi 0, %s139
      %s157 = sphi 0, %s157
      %s159 = sphi 0, %s157
      %s160 = sphi 0, %s159
      %s174 = sphi 0, %s160
      %s178 = sphi 0, %s178
      %s180 = sphi 0, %s178
      %s181 = sphi 0, %s180
      %s195 = sphi 0, %s181
      %s199 = sphi 0, %s199
      %s201 = sphi 0, %s199
      %s202 = sphi 0, %s201
      %s216 = sphi 0, %s202
      %s222 = sphi 0, %s224
      %s225 = sphi 0, %s222
      %s226 = sphi 0, %s225
      %s242 = sphi 0, %s226
    $region4: #{tpu_custom_call.1} parent=1 // loop_header_branch
      %21 = sbr.rel (%p19) target = $region8
    $region5: #{tpu_custom_call.1} parent=1 // loop_body
      %s23 = ssub.s32 %s18, 1
      %s24 = ssub.s32 %s18, 2
      %s25 = sadd.s32 %s18, 1
      %s26 = ssub.s32 %s18, %s25
      %p27 = scmp.eq.s32.totalorder %s26, 0
      %s29 = sadd.s32 %s28, 1
      %s30 = scalar_select %p27, %s28, %s29
      %p33 = pneg %p27
      %p34 = scmp.eq.s32.totalorder %s18, 1
      %p35 = por %p33, %p34
      %p36 = scmp.ne.s32.totalorder %s28, %s31
      %p37 = scmp.eq.s32.totalorder %s18, 0
      %p38 = por %p36, %p37
      %p39 = scmp.ne.s32.totalorder %s28, %s31
      %p40 = scmp.eq.s32.totalorder %s23, 1
      %p41 = por %p39, %p40
      %p42 = scmp.ne.s32.totalorder %s31, %s32
      %p43 = scmp.eq.s32.totalorder %s23, 0
      %p44 = por %p42, %p43
      %p45 = scmp.ne.s32.totalorder %s31, %s32
      %p46 = scmp.eq.s32.totalorder %s24, 1
      %p47 = por %p45, %p46
      %p49 = scmp.ne.s32.totalorder %s32, %s48
      %p50 = scmp.eq.s32.totalorder %s24, 0
      %p51 = por %p49, %p50
      %s53 = sadd.s32 %s52, 1
      %p56 = scmp.eq.s32.totalorder %s18, 1
      %p57 = scmp.ne.s32.totalorder %s52, %s54
      %p58 = scmp.eq.s32.totalorder %s18, 0
      %p59 = por %p57, %p58
      %p60 = scmp.ne.s32.totalorder %s52, %s54
      %p61 = scmp.eq.s32.totalorder %s23, 1
      %p62 = por %p60, %p61
      %p63 = scmp.ne.s32.totalorder %s54, %s55
      %p64 = scmp.eq.s32.totalorder %s23, 0
      %p65 = por %p63, %p64
      %p66 = scmp.ne.s32.totalorder %s54, %s55
      %p67 = scmp.eq.s32.totalorder %s24, 1
      %p68 = por %p66, %p67
      %p70 = scmp.ne.s32.totalorder %s55, %s69
      %p71 = scmp.eq.s32.totalorder %s24, 0
      %p72 = por %p70, %p71
      %s74 = sadd.s32 %s73, 1
      %p77 = scmp.eq.s32.totalorder %s18, 1
      %p78 = scmp.ne.s32.totalorder %s73, %s75
      %p79 = scmp.eq.s32.totalorder %s18, 0
      %p80 = por %p78, %p79
      %p81 = scmp.ne.s32.totalorder %s73, %s75
      %p82 = scmp.eq.s32.totalorder %s23, 1
      %p83 = por %p81, %p82
      %p84 = scmp.ne.s32.totalorder %s75, %s76
      %p85 = scmp.eq.s32.totalorder %s23, 0
      %p86 = por %p84, %p85
      %p87 = scmp.ne.s32.totalorder %s75, %s76
      %p88 = scmp.eq.s32.totalorder %s24, 1
      %p89 = por %p87, %p88
      %p91 = scmp.ne.s32.totalorder %s76, %s90
      %p92 = scmp.eq.s32.totalorder %s24, 0
      %p93 = por %p91, %p92
      %s95 = sadd.s32 %s94, 1
      %p98 = scmp.eq.s32.totalorder %s18, 1
      %p99 = scmp.ne.s32.totalorder %s94, %s96
      %p100 = scmp.eq.s32.totalorder %s18, 0
      %p101 = por %p99, %p100
      %p102 = scmp.ne.s32.totalorder %s94, %s96
      %p103 = scmp.eq.s32.totalorder %s23, 1
      %p104 = por %p102, %p103
      %p105 = scmp.ne.s32.totalorder %s96, %s97
      %p106 = scmp.eq.s32.totalorder %s23, 0
      %p107 = por %p105, %p106
      %p108 = scmp.ne.s32.totalorder %s96, %s97
      %p109 = scmp.eq.s32.totalorder %s24, 1
      %p110 = por %p108, %p109
      %p112 = scmp.ne.s32.totalorder %s97, %s111
      %p113 = scmp.eq.s32.totalorder %s24, 0
      %p114 = por %p112, %p113
      %s116 = sadd.s32 %s115, 1
      %p119 = scmp.eq.s32.totalorder %s18, 1
      %p120 = scmp.ne.s32.totalorder %s115, %s117
      %p121 = scmp.eq.s32.totalorder %s18, 0
      %p122 = por %p120, %p121
      %p123 = scmp.ne.s32.totalorder %s115, %s117
      %p124 = scmp.eq.s32.totalorder %s23, 1
      %p125 = por %p123, %p124
      %p126 = scmp.ne.s32.totalorder %s117, %s118
      %p127 = scmp.eq.s32.totalorder %s23, 0
      %p128 = por %p126, %p127
      %p129 = scmp.ne.s32.totalorder %s117, %s118
      %p130 = scmp.eq.s32.totalorder %s24, 1
      %p131 = por %p129, %p130
      %p133 = scmp.ne.s32.totalorder %s118, %s132
      %p134 = scmp.eq.s32.totalorder %s24, 0
      %p135 = por %p133, %p134
      %s137 = sadd.s32 %s136, 1
      %p140 = scmp.eq.s32.totalorder %s18, 1
      %p141 = scmp.ne.s32.totalorder %s136, %s138
      %p142 = scmp.eq.s32.totalorder %s18, 0
      %p143 = por %p141, %p142
      %p144 = scmp.ne.s32.totalorder %s136, %s138
      %p145 = scmp.eq.s32.totalorder %s23, 1
      %p146 = por %p144, %p145
      %p147 = scmp.ne.s32.totalorder %s138, %s139
      %p148 = scmp.eq.s32.totalorder %s23, 0
      %p149 = por %p147, %p148
      %p150 = scmp.ne.s32.totalorder %s138, %s139
      %p151 = scmp.eq.s32.totalorder %s24, 1
      %p152 = por %p150, %p151
      %p154 = scmp.ne.s32.totalorder %s139, %s153
      %p155 = scmp.eq.s32.totalorder %s24, 0
      %p156 = por %p154, %p155
      %s158 = sadd.s32 %s157, 1
      %p161 = scmp.eq.s32.totalorder %s18, 1
      %p162 = scmp.ne.s32.totalorder %s157, %s159
      %p163 = scmp.eq.s32.totalorder %s18, 0
      %p164 = por %p162, %p163
      %p165 = scmp.ne.s32.totalorder %s157, %s159
      %p166 = scmp.eq.s32.totalorder %s23, 1
      %p167 = por %p165, %p166
      %p168 = scmp.ne.s32.totalorder %s159, %s160
      %p169 = scmp.eq.s32.totalorder %s23, 0
      %p170 = por %p168, %p169
      %p171 = scmp.ne.s32.totalorder %s159, %s160
      %p172 = scmp.eq.s32.totalorder %s24, 1
      %p173 = por %p171, %p172
      %p175 = scmp.ne.s32.totalorder %s160, %s174
      %p176 = scmp.eq.s32.totalorder %s24, 0
      %p177 = por %p175, %p176
      %s179 = sadd.s32 %s178, 1
      %p182 = scmp.eq.s32.totalorder %s18, 1
      %p183 = scmp.ne.s32.totalorder %s178, %s180
      %p184 = scmp.eq.s32.totalorder %s18, 0
      %p185 = por %p183, %p184
      %p186 = scmp.ne.s32.totalorder %s178, %s180
      %p187 = scmp.eq.s32.totalorder %s23, 1
      %p188 = por %p186, %p187
      %p189 = scmp.ne.s32.totalorder %s180, %s181
      %p190 = scmp.eq.s32.totalorder %s23, 0
      %p191 = por %p189, %p190
      %p192 = scmp.ne.s32.totalorder %s180, %s181
      %p193 = scmp.eq.s32.totalorder %s24, 1
      %p194 = por %p192, %p193
      %p196 = scmp.ne.s32.totalorder %s181, %s195
      %p197 = scmp.eq.s32.totalorder %s24, 0
      %p198 = por %p196, %p197
      %s200 = sadd.s32 %s199, 1
      %p203 = scmp.eq.s32.totalorder %s18, 1
      %p204 = scmp.ne.s32.totalorder %s199, %s201
      %p205 = scmp.eq.s32.totalorder %s18, 0
      %p206 = por %p204, %p205
      %p207 = scmp.ne.s32.totalorder %s199, %s201
      %p208 = scmp.eq.s32.totalorder %s23, 1
      %p209 = por %p207, %p208
      %p210 = scmp.ne.s32.totalorder %s201, %s202
      %p211 = scmp.eq.s32.totalorder %s23, 0
      %p212 = por %p210, %p211
      %p213 = scmp.ne.s32.totalorder %s201, %s202
      %p214 = scmp.eq.s32.totalorder %s24, 1
      %p215 = por %p213, %p214
      %p217 = scmp.ne.s32.totalorder %s202, %s216
      %p218 = scmp.eq.s32.totalorder %s24, 0
      %p219 = por %p217, %p218
      %s220 = ssub.s32 %s18, %s25
      %p221 = scmp.eq.s32.totalorder %s220, 0
      %s223 = sadd.s32 %s222, 1
      %s224 = scalar_select %p221, %s222, %s223
      %p227 = pneg %p221
      %p228 = scmp.eq.s32.totalorder %s18, 1
      %p229 = por %p227, %p228
      %p230 = scmp.ne.s32.totalorder %s222, %s225
      %p231 = scmp.eq.s32.totalorder %s18, 0
      %p232 = por %p230, %p231
      %p233 = scmp.ne.s32.totalorder %s222, %s225
      %p234 = scmp.eq.s32.totalorder %s23, 1
      %p235 = por %p233, %p234
      %p236 = scmp.ne.s32.totalorder %s225, %s226
      %p237 = scmp.eq.s32.totalorder %s23, 0
      %p238 = por %p236, %p237
      %p239 = scmp.ne.s32.totalorder %s225, %s226
      %p240 = scmp.eq.s32.totalorder %s24, 1
      %p241 = por %p239, %p240
      %p243 = scmp.ne.s32.totalorder %s226, %s242
      %p244 = scmp.eq.s32.totalorder %s24, 0
      %p245 = por %p243, %p244
      %p246 = scmp.le.s32.totalorder 1, %s18
      %p247 = scmp.lt.s32.totalorder %s18, 3
      %p248 = pnand %p246, %p247
      %p249 = pneg %p248
      // Predicated region
      $region9: #{tpu_custom_call.1} parent=5 // pred_check
        _
      $region10: #{tpu_custom_call.1} parent=5 // pred_check_branch
        %251 = sbr.rel (%p248) target = $region12
      $region11: #{tpu_custom_call.1} parent=5 // pred_region
        %s252 = ssub.s32 %s18, 1
        // Predicated region
        $region13: #{tpu_custom_call.1} parent=11 // pred_check
          %p253 = pneg %p65
        $region14: #{tpu_custom_call.1} parent=11 // pred_check_branch
          %255 = sbr.rel (%p253) target = $region16
        $region15: #{tpu_custom_call.1} parent=11 // pred_region
          _
        $region16: #{tpu_custom_call.1} parent=11 // pred_fallthru
          _
        // Predicated region
        $region17: #{tpu_custom_call.1} parent=11 // pred_check
          %p256 = pneg %p86
        $region18: #{tpu_custom_call.1} parent=11 // pred_check_branch
          %258 = sbr.rel (%p256) target = $region20
        $region19: #{tpu_custom_call.1} parent=11 // pred_region
          _
        $region20: #{tpu_custom_call.1} parent=11 // pred_fallthru
          _
        // Predicated region
        $region21: #{tpu_custom_call.1} parent=11 // pred_check
          %p259 = pneg %p107
        $region22: #{tpu_custom_call.1} parent=11 // pred_check_branch
          %261 = sbr.rel (%p259) target = $region24
        $region23: #{tpu_custom_call.1} parent=11 // pred_region
          _
        $region24: #{tpu_custom_call.1} parent=11 // pred_fallthru
          _
        // Predicated region
        $region25: #{tpu_custom_call.1} parent=11 // pred_check
          %p262 = pneg %p128
        $region26: #{tpu_custom_call.1} parent=11 // pred_check_branch
          %264 = sbr.rel (%p262) target = $region28
        $region27: #{tpu_custom_call.1} parent=11 // pred_region
          _
        $region28: #{tpu_custom_call.1} parent=11 // pred_fallthru
          _
        // Predicated region
        $region29: #{tpu_custom_call.1} parent=11 // pred_check
          %p265 = pneg %p149
        $region30: #{tpu_custom_call.1} parent=11 // pred_check_branch
          %267 = sbr.rel (%p265) target = $region32
        $region31: #{tpu_custom_call.1} parent=11 // pred_region
          _
        $region32: #{tpu_custom_call.1} parent=11 // pred_fallthru
          _
        // Predicated region
        $region33: #{tpu_custom_call.1} parent=11 // pred_check
          %p268 = pneg %p170
        $region34: #{tpu_custom_call.1} parent=11 // pred_check_branch
          %270 = sbr.rel (%p268) target = $region36
        $region35: #{tpu_custom_call.1} parent=11 // pred_region
          _
        $region36: #{tpu_custom_call.1} parent=11 // pred_fallthru
          _
        // Predicated region
        $region37: #{tpu_custom_call.1} parent=11 // pred_check
          %p271 = pneg %p191
        $region38: #{tpu_custom_call.1} parent=11 // pred_check_branch
          %273 = sbr.rel (%p271) target = $region40
        $region39: #{tpu_custom_call.1} parent=11 // pred_region
          _
        $region40: #{tpu_custom_call.1} parent=11 // pred_fallthru
          _
        // Predicated region
        $region41: #{tpu_custom_call.1} parent=11 // pred_check
          %p274 = pneg %p212
        $region42: #{tpu_custom_call.1} parent=11 // pred_check_branch
          %276 = sbr.rel (%p274) target = $region44
        $region43: #{tpu_custom_call.1} parent=11 // pred_region
          _
        $region44: #{tpu_custom_call.1} parent=11 // pred_fallthru
          _
      $region12: #{tpu_custom_call.1} parent=5 // pred_fallthru
        _
      %p277 = scmp.lt.s32.totalorder %s18, 2
      // Predicated region
      $region45: #{tpu_custom_call.1} parent=5 // pred_check
        %p278 = pneg %p277
      $region46: #{tpu_custom_call.1} parent=5 // pred_check_branch
        %280 = sbr.rel (%p278) target = $region48
      $region47: #{tpu_custom_call.1} parent=5 // pred_region
        // Predicated region
        $region49: #{tpu_custom_call.1} parent=47 // pred_check
          %p281 = pneg %p38
        $region50: #{tpu_custom_call.1} parent=47 // pred_check_branch
          %283 = sbr.rel (%p281) target = $region52
        $region51: #{tpu_custom_call.1} parent=47 // pred_region
          %s284 = sand.u32 %s28, 1
          %s285 = scalar_lea.sflag [#allocation3], %s284
          %s286 = sand.u32 %s28, 1
          %s287 = smul.addr %s286, 256
          %s288 = scalar_lea.vmem [#allocation2], %s287
          %s290 = ssub.s32 4096, 4096
          %291 = vsyncadd %s285, %s290
          %s292 = smul.addr %s18, 32
          %s293 = smul.addr %s292, 128
          %s294 = scalar_lea.hbm %s0, %s293
          %s295 = sshll.u32 %s288, 4
          %s296 = int_to_ptr.vmem [resolvable:$true] %s295
          %301 = dma.hbm_to_vmem [thread:$0]  %s294, 4096, %s296, %s285, 128, 128, 8
        $region52: #{tpu_custom_call.1} parent=47 // pred_fallthru
          _
      $region48: #{tpu_custom_call.1} parent=5 // pred_fallthru
        _
      %p302 = scmp.le.s32.totalorder 1, %s18
      %p303 = scmp.lt.s32.totalorder %s18, 3
      %p304 = pnand %p302, %p303
      %p305 = pneg %p304
      // Predicated region
      $region53: #{tpu_custom_call.1} parent=5 // pred_check
        _
      $region54: #{tpu_custom_call.1} parent=5 // pred_check_branch
        %307 = sbr.rel (%p304) target = $region56
      $region55: #{tpu_custom_call.1} parent=5 // pred_region
        %s308 = ssub.s32 %s18, 1
        %s309 = sand.u32 %s31, 1
        %s310 = scalar_lea.sflag [#allocation3], %s309
        %s311 = sand.u32 %s31, 1
        %s312 = smul.addr %s311, 256
        %s313 = scalar_lea.vmem [#allocation2], %s312
        // Predicated region
        $region57: #{tpu_custom_call.1} parent=55 // pred_check
          %p314 = pneg %p44
        $region58: #{tpu_custom_call.1} parent=55 // pred_check_branch
          %316 = sbr.rel (%p314) target = $region60
        $region59: #{tpu_custom_call.1} parent=55 // pred_region
          %317 = dma.done %s310, 4096
        $region60: #{tpu_custom_call.1} parent=55 // pred_fallthru
          _
        %s318 = sand.u32 %s31, 1
        %s319 = scalar_lea.sflag [#allocation3], %s318
        %s320 = sand.u32 %s31, 1
        %s321 = smul.addr %s320, 256
        %s322 = scalar_lea.vmem [#allocation2], %s321
        %p323 = pneg %p44
        %p324 = pneg %p41
        %p325 = pneg %p65
        %p326 = pneg %p62
        %p327 = pneg %p86
        %p328 = pneg %p83
        %p329 = pneg %p107
        %p330 = pneg %p104
        %p331 = pneg %p128
        %p332 = pneg %p125
        %p333 = pneg %p149
        %p334 = pneg %p146
        %p335 = pneg %p170
        %p336 = pneg %p167
        %p337 = pneg %p191
        %p338 = pneg %p188
        %p339 = pneg %p212
        %p340 = pneg %p209
        %p341 = pneg %p238
        %p342 = pneg %p235
        %p343 = scmp.lt.s32.totalorder %s23, 1
        %s344 = scalar_select %p343, %s23, 1
        %s345 = smul.addr %s344, 32
        %s346 = smul.addr %s345, 8
        %s347 = scalar_lea.vmem %s9, %s346
        %p348 = scmp.lt.s32.totalorder %s23, 1
        %s349 = scalar_select %p348, %s23, 1
        %s350 = smul.addr %s349, 32
        %s351 = smul.addr %s350, 8
        %s352 = scalar_lea.vmem %s9, %s351
        %v354 = vld [vmem:[%s313] sm:$0xff]
        %v355 = vld [vmem:[%s313 + $0x8] sm:$0xff]
        %v356 = vld [vmem:[%s313 + $0x10] sm:$0xff]
        %v357 = vld [vmem:[%s313 + $0x18] sm:$0xff]
        %v358 = vld [vmem:[%s313 + $0x20] sm:$0xff]
        %v359 = vld [vmem:[%s313 + $0x28] sm:$0xff]
        %v360 = vld [vmem:[%s313 + $0x30] sm:$0xff]
        %v361 = vld [vmem:[%s313 + $0x38] sm:$0xff]
        %v362 = vld [vmem:[%s313 + $0x40] sm:$0xff]
        %v363 = vld [vmem:[%s313 + $0x48] sm:$0xff]
        %v364 = vld [vmem:[%s313 + $0x50] sm:$0xff]
        %v365 = vld [vmem:[%s313 + $0x58] sm:$0xff]
        %v366 = vld [vmem:[%s313 + $0x60] sm:$0xff]
        %v367 = vld [vmem:[%s313 + $0x68] sm:$0xff]
        %v368 = vld [vmem:[%s313 + $0x70] sm:$0xff]
        %v369 = vld [vmem:[%s313 + $0x78] sm:$0xff]
        %v370 = vld [vmem:[%s313 + $0x80] sm:$0xff]
        %v371 = vld [vmem:[%s313 + $0x88] sm:$0xff]
        %v372 = vld [vmem:[%s313 + $0x90] sm:$0xff]
        %v373 = vld [vmem:[%s313 + $0x98] sm:$0xff]
        %v374 = vld [vmem:[%s313 + $0xa0] sm:$0xff]
        %v375 = vld [vmem:[%s313 + $0xa8] sm:$0xff]
        %v376 = vld [vmem:[%s313 + $0xb0] sm:$0xff]
        %v377 = vld [vmem:[%s313 + $0xb8] sm:$0xff]
        %v378 = vld [vmem:[%s313 + $0xc0] sm:$0xff]
        %v379 = vld [vmem:[%s313 + $0xc8] sm:$0xff]
        %v380 = vld [vmem:[%s313 + $0xd0] sm:$0xff]
        %v381 = vld [vmem:[%s313 + $0xd8] sm:$0xff]
        %v382 = vld [vmem:[%s313 + $0xe0] sm:$0xff]
        %v383 = vld [vmem:[%s313 + $0xe8] sm:$0xff]
        %v384 = vld [vmem:[%s313 + $0xf0] sm:$0xff]
        %v385 = vld [vmem:[%s313 + $0xf8] sm:$0xff]
        %v402 = vrot.slane %v354, 1
        %v403 = vrot.slane %v356, 1
        %v404 = vrot.slane %v358, 1
        %v405 = vrot.slane %v360, 1
        %v406 = vrot.slane %v362, 1
        %v407 = vrot.slane %v364, 1
        %v408 = vrot.slane %v366, 1
        %v409 = vrot.slane %v368, 1
        %v410 = vrot.slane %v370, 1
        %v411 = vrot.slane %v372, 1
        %v412 = vrot.slane %v374, 1
        %v413 = vrot.slane %v376, 1
        %v414 = vrot.slane %v378, 1
        %v415 = vrot.slane %v380, 1
        %v416 = vrot.slane %v382, 1
        %v417 = vrot.slane %v384, 1
        %vm450 = vcmask 1040384
        %v451 = vrot.slane %v354, 7
        %v452 = vrot.slane %v355, 7
        %v453 = vsel %vm450, %v451, %v452
        %v454 = vrot.slane %v356, 7
        %v455 = vrot.slane %v357, 7
        %v456 = vsel %vm450, %v454, %v455
        %v457 = vrot.slane %v358, 7
        %v458 = vrot.slane %v359, 7
        %v459 = vsel %vm450, %v457, %v458
        %v460 = vrot.slane %v360, 7
        %v461 = vrot.slane %v361, 7
        %v462 = vsel %vm450, %v460, %v461
        %v463 = vrot.slane %v362, 7
        %v464 = vrot.slane %v363, 7
        %v465 = vsel %vm450, %v463, %v464
        %v466 = vrot.slane %v364, 7
        %v467 = vrot.slane %v365, 7
        %v468 = vsel %vm450, %v466, %v467
        %v469 = vrot.slane %v366, 7
        %v470 = vrot.slane %v367, 7
        %v471 = vsel %vm450, %v469, %v470
        %v472 = vrot.slane %v368, 7
        %v473 = vrot.slane %v369, 7
        %v474 = vsel %vm450, %v472, %v473
        %v475 = vrot.slane %v370, 7
        %v476 = vrot.slane %v371, 7
        %v477 = vsel %vm450, %v475, %v476
        %v478 = vrot.slane %v372, 7
        %v479 = vrot.slane %v373, 7
        %v480 = vsel %vm450, %v478, %v479
        %v481 = vrot.slane %v374, 7
        %v482 = vrot.slane %v375, 7
        %v483 = vsel %vm450, %v481, %v482
        %v484 = vrot.slane %v376, 7
        %v485 = vrot.slane %v377, 7
        %v486 = vsel %vm450, %v484, %v485
        %v487 = vrot.slane %v378, 7
        %v488 = vrot.slane %v379, 7
        %v489 = vsel %vm450, %v487, %v488
        %v490 = vrot.slane %v380, 7
        %v491 = vrot.slane %v381, 7
        %v492 = vsel %vm450, %v490, %v491
        %v493 = vrot.slane %v382, 7
        %v494 = vrot.slane %v383, 7
        %v495 = vsel %vm450, %v493, %v494
        %v496 = vrot.slane %v384, 7
        %v497 = vrot.slane %v385, 7
        %v498 = vsel %vm450, %v496, %v497
        %v547 = vrot.slane %v355, 5
        %v548 = vrot.slane %v357, 5
        %v549 = vrot.slane %v359, 5
        %v550 = vrot.slane %v361, 5
        %v551 = vrot.slane %v363, 5
        %v552 = vrot.slane %v365, 5
        %v553 = vrot.slane %v367, 5
        %v554 = vrot.slane %v369, 5
        %v555 = vrot.slane %v371, 5
        %v556 = vrot.slane %v373, 5
        %v557 = vrot.slane %v375, 5
        %v558 = vrot.slane %v377, 5
        %v559 = vrot.slane %v379, 5
        %v560 = vrot.slane %v381, 5
        %v561 = vrot.slane %v383, 5
        %v562 = vrot.slane %v385, 5
        %v579 = vsel %vm450, %v402, %v451
        %v580 = vsel %vm450, %v403, %v454
        %v581 = vsel %vm450, %v404, %v457
        %v582 = vsel %vm450, %v405, %v460
        %v583 = vsel %vm450, %v406, %v463
        %v584 = vsel %vm450, %v407, %v466
        %v585 = vsel %vm450, %v408, %v469
        %v586 = vsel %vm450, %v409, %v472
        %v587 = vsel %vm450, %v410, %v475
        %v588 = vsel %vm450, %v411, %v478
        %v589 = vsel %vm450, %v412, %v481
        %v590 = vsel %vm450, %v413, %v484
        %v591 = vsel %vm450, %v414, %v487
        %v592 = vsel %vm450, %v415, %v490
        %v593 = vsel %vm450, %v416, %v493
        %v594 = vsel %vm450, %v417, %v496
        %v595 = vsel %vm450, %v452, %v547
        %v596 = vsel %vm450, %v455, %v548
        %v597 = vsel %vm450, %v458, %v549
        %v598 = vsel %vm450, %v461, %v550
        %v599 = vsel %vm450, %v464, %v551
        %v600 = vsel %vm450, %v467, %v552
        %v601 = vsel %vm450, %v470, %v553
        %v602 = vsel %vm450, %v473, %v554
        %v603 = vsel %vm450, %v476, %v555
        %v604 = vsel %vm450, %v479, %v556
        %v605 = vsel %vm450, %v482, %v557
        %v606 = vsel %vm450, %v485, %v558
        %v607 = vsel %vm450, %v488, %v559
        %v608 = vsel %vm450, %v491, %v560
        %v609 = vsel %vm450, %v494, %v561
        %v610 = vsel %vm450, %v497, %v562
        %v611 = vpack.c.bf16 %v456, %v580
        %v612 = vpack.c.bf16 %v596, %v596
        %v613 = vpack.c.bf16 %v453, %v579
        %v614 = vpack.c.bf16 %v595, %v595
        %v615 = vpack.c.bf16 %v459, %v581
        %v616 = vpack.c.bf16 %v597, %v597
        %v617 = vpack.c.bf16 %v462, %v582
        %v618 = vpack.c.bf16 %v598, %v598
        %v619 = vpack.c.bf16 %v465, %v583
        %v620 = vpack.c.bf16 %v599, %v599
        %v621 = vpack.c.bf16 %v468, %v584
        %v622 = vpack.c.bf16 %v600, %v600
        %v623 = vpack.c.bf16 %v471, %v585
        %v624 = vpack.c.bf16 %v601, %v601
        %v625 = vpack.c.bf16 %v474, %v586
        %v626 = vpack.c.bf16 %v602, %v602
        %v627 = vpack.c.bf16 %v477, %v587
        %v628 = vpack.c.bf16 %v603, %v603
        %v629 = vpack.c.bf16 %v480, %v588
        %v630 = vpack.c.bf16 %v604, %v604
        %v631 = vpack.c.bf16 %v483, %v589
        %v632 = vpack.c.bf16 %v605, %v605
        %v633 = vpack.c.bf16 %v486, %v590
        %v634 = vpack.c.bf16 %v606, %v606
        %v635 = vpack.c.bf16 %v489, %v591
        %v636 = vpack.c.bf16 %v607, %v607
        %v637 = vpack.c.bf16 %v492, %v592
        %v638 = vpack.c.bf16 %v608, %v608
        %v639 = vpack.c.bf16 %v495, %v593
        %v640 = vpack.c.bf16 %v609, %v609
        %v641 = vpack.c.bf16 %v498, %v594
        %v642 = vpack.c.bf16 %v610, %v610
        %675 = vrot.lane.b32.xlu0 %v613, 32
        %v676 = vpop.permute.xlu0 %675
        %677 = vrot.lane.b32.xlu0 %v614, 32
        %v678 = vpop.permute.xlu0 %677
        %679 = vrot.lane.b32.xlu0 %v611, 32
        %v680 = vpop.permute.xlu0 %679
        %681 = vrot.lane.b32.xlu0 %v612, 32
        %v682 = vpop.permute.xlu0 %681
        %683 = vrot.lane.b32.xlu0 %v615, 32
        %v684 = vpop.permute.xlu0 %683
        %685 = vrot.lane.b32.xlu0 %v616, 32
        %v686 = vpop.permute.xlu0 %685
        %687 = vrot.lane.b32.xlu0 %v617, 32
        %v688 = vpop.permute.xlu0 %687
        %689 = vrot.lane.b32.xlu0 %v618, 32
        %v690 = vpop.permute.xlu0 %689
        %691 = vrot.lane.b32.xlu0 %v619, 32
        %v692 = vpop.permute.xlu0 %691
        %693 = vrot.lane.b32.xlu0 %v620, 32
        %v694 = vpop.permute.xlu0 %693
        %695 = vrot.lane.b32.xlu0 %v621, 32
        %v696 = vpop.permute.xlu0 %695
        %697 = vrot.lane.b32.xlu0 %v622, 32
        %v698 = vpop.permute.xlu0 %697
        %699 = vrot.lane.b32.xlu0 %v623, 32
        %v700 = vpop.permute.xlu0 %699
        %701 = vrot.lane.b32.xlu0 %v624, 32
        %v702 = vpop.permute.xlu0 %701
        %703 = vrot.lane.b32.xlu0 %v625, 32
        %v704 = vpop.permute.xlu0 %703
        %705 = vrot.lane.b32.xlu0 %v626, 32
        %v706 = vpop.permute.xlu0 %705
        %707 = vrot.lane.b32.xlu0 %v627, 32
        %v708 = vpop.permute.xlu0 %707
        %709 = vrot.lane.b32.xlu0 %v628, 32
        %v710 = vpop.permute.xlu0 %709
        %711 = vrot.lane.b32.xlu0 %v629, 32
        %v712 = vpop.permute.xlu0 %711
        %713 = vrot.lane.b32.xlu0 %v630, 32
        %v714 = vpop.permute.xlu0 %713
        %715 = vrot.lane.b32.xlu0 %v631, 32
        %v716 = vpop.permute.xlu0 %715
        %717 = vrot.lane.b32.xlu0 %v632, 32
        %v718 = vpop.permute.xlu0 %717
        %719 = vrot.lane.b32.xlu0 %v633, 32
        %v720 = vpop.permute.xlu0 %719
        %721 = vrot.lane.b32.xlu0 %v634, 32
        %v722 = vpop.permute.xlu0 %721
        %723 = vrot.lane.b32.xlu0 %v635, 32
        %v724 = vpop.permute.xlu0 %723
        %725 = vrot.lane.b32.xlu0 %v636, 32
        %v726 = vpop.permute.xlu0 %725
        %727 = vrot.lane.b32.xlu0 %v637, 32
        %v728 = vpop.permute.xlu0 %727
        %729 = vrot.lane.b32.xlu0 %v638, 32
        %v730 = vpop.permute.xlu0 %729
        %731 = vrot.lane.b32.xlu0 %v639, 32
        %v732 = vpop.permute.xlu0 %731
        %733 = vrot.lane.b32.xlu0 %v640, 32
        %v734 = vpop.permute.xlu0 %733
        %735 = vrot.lane.b32.xlu0 %v641, 32
        %v736 = vpop.permute.xlu0 %735
        %737 = vrot.lane.b32.xlu0 %v642, 32
        %v738 = vpop.permute.xlu0 %737
        %739 = vrot.lane.b32.xlu0 %v611, 64
        %v740 = vpop.permute.xlu0 %739
        %741 = vrot.lane.b32.xlu0 %v612, 64
        %v742 = vpop.permute.xlu0 %741
        %743 = vrot.lane.b32.xlu0 %v615, 64
        %v744 = vpop.permute.xlu0 %743
        %745 = vrot.lane.b32.xlu0 %v616, 64
        %v746 = vpop.permute.xlu0 %745
        %747 = vrot.lane.b32.xlu0 %v617, 64
        %v748 = vpop.permute.xlu0 %747
        %749 = vrot.lane.b32.xlu0 %v618, 64
        %v750 = vpop.permute.xlu0 %749
        %751 = vrot.lane.b32.xlu0 %v619, 64
        %v752 = vpop.permute.xlu0 %751
        %753 = vrot.lane.b32.xlu0 %v620, 64
        %v754 = vpop.permute.xlu0 %753
        %755 = vrot.lane.b32.xlu0 %v621, 64
        %v756 = vpop.permute.xlu0 %755
        %757 = vrot.lane.b32.xlu0 %v622, 64
        %v758 = vpop.permute.xlu0 %757
        %759 = vrot.lane.b32.xlu0 %v623, 64
        %v760 = vpop.permute.xlu0 %759
        %761 = vrot.lane.b32.xlu0 %v624, 64
        %v762 = vpop.permute.xlu0 %761
        %763 = vrot.lane.b32.xlu0 %v625, 64
        %v764 = vpop.permute.xlu0 %763
        %765 = vrot.lane.b32.xlu0 %v626, 64
        %v766 = vpop.permute.xlu0 %765
        %767 = vrot.lane.b32.xlu0 %v627, 64
        %v768 = vpop.permute.xlu0 %767
        %769 = vrot.lane.b32.xlu0 %v628, 64
        %v770 = vpop.permute.xlu0 %769
        %771 = vrot.lane.b32.xlu0 %v629, 64
        %v772 = vpop.permute.xlu0 %771
        %773 = vrot.lane.b32.xlu0 %v630, 64
        %v774 = vpop.permute.xlu0 %773
        %775 = vrot.lane.b32.xlu0 %v631, 64
        %v776 = vpop.permute.xlu0 %775
        %777 = vrot.lane.b32.xlu0 %v632, 64
        %v778 = vpop.permute.xlu0 %777
        %779 = vrot.lane.b32.xlu0 %v633, 64
        %v780 = vpop.permute.xlu0 %779
        %781 = vrot.lane.b32.xlu0 %v634, 64
        %v782 = vpop.permute.xlu0 %781
        %783 = vrot.lane.b32.xlu0 %v635, 64
        %v784 = vpop.permute.xlu0 %783
        %785 = vrot.lane.b32.xlu0 %v636, 64
        %v786 = vpop.permute.xlu0 %785
        %787 = vrot.lane.b32.xlu0 %v637, 64
        %v788 = vpop.permute.xlu0 %787
        %789 = vrot.lane.b32.xlu0 %v638, 64
        %v790 = vpop.permute.xlu0 %789
        %791 = vrot.lane.b32.xlu0 %v639, 64
        %v792 = vpop.permute.xlu0 %791
        %793 = vrot.lane.b32.xlu0 %v640, 64
        %v794 = vpop.permute.xlu0 %793
        %795 = vrot.lane.b32.xlu0 %v641, 64
        %v796 = vpop.permute.xlu0 %795
        %797 = vrot.lane.b32.xlu0 %v642, 64
        %v798 = vpop.permute.xlu0 %797
        %vm799 = vcmask 261120
        %v802 = vsel %vm799, %v611, %v676
        %v805 = vsel %vm799, %v612, %v678
        %v808 = vsel %vm799, %v613, %v680
        %v811 = vsel %vm799, %v614, %v682
        %v813 = vsel %vm799, %v611, %v684
        %v815 = vsel %vm799, %v612, %v686
        %v818 = vsel %vm799, %v615, %v688
        %v821 = vsel %vm799, %v616, %v690
        %v824 = vsel %vm799, %v617, %v692
        %v827 = vsel %vm799, %v618, %v694
        %v830 = vsel %vm799, %v619, %v696
        %v833 = vsel %vm799, %v620, %v698
        %v836 = vsel %vm799, %v621, %v700
        %v839 = vsel %vm799, %v622, %v702
        %v842 = vsel %vm799, %v623, %v704
        %v845 = vsel %vm799, %v624, %v706
        %v848 = vsel %vm799, %v625, %v708
        %v851 = vsel %vm799, %v626, %v710
        %v854 = vsel %vm799, %v627, %v712
        %v857 = vsel %vm799, %v628, %v714
        %v860 = vsel %vm799, %v629, %v716
        %v863 = vsel %vm799, %v630, %v718
        %v866 = vsel %vm799, %v631, %v720
        %v869 = vsel %vm799, %v632, %v722
        %v872 = vsel %vm799, %v633, %v724
        %v875 = vsel %vm799, %v634, %v726
        %v878 = vsel %vm799, %v635, %v728
        %v881 = vsel %vm799, %v636, %v730
        %v884 = vsel %vm799, %v637, %v732
        %v887 = vsel %vm799, %v638, %v734
        %v890 = vsel %vm799, %v639, %v736
        %v893 = vsel %vm799, %v640, %v738
        %vm894 = vcmask 523264
        %v896 = vsel %vm894, %v802, %v740
        %v898 = vsel %vm894, %v805, %v742
        %v900 = vsel %vm894, %v808, %v744
        %v902 = vsel %vm894, %v811, %v746
        %v904 = vsel %vm894, %v813, %v748
        %v906 = vsel %vm894, %v815, %v750
        %v908 = vsel %vm894, %v818, %v752
        %v910 = vsel %vm894, %v821, %v754
        %v912 = vsel %vm894, %v824, %v756
        %v914 = vsel %vm894, %v827, %v758
        %v916 = vsel %vm894, %v830, %v760
        %v918 = vsel %vm894, %v833, %v762
        %v920 = vsel %vm894, %v836, %v764
        %v922 = vsel %vm894, %v839, %v766
        %v924 = vsel %vm894, %v842, %v768
        %v926 = vsel %vm894, %v845, %v770
        %v928 = vsel %vm894, %v848, %v772
        %v930 = vsel %vm894, %v851, %v774
        %v932 = vsel %vm894, %v854, %v776
        %v934 = vsel %vm894, %v857, %v778
        %v936 = vsel %vm894, %v860, %v780
        %v938 = vsel %vm894, %v863, %v782
        %v940 = vsel %vm894, %v866, %v784
        %v942 = vsel %vm894, %v869, %v786
        %v944 = vsel %vm894, %v872, %v788
        %v946 = vsel %vm894, %v875, %v790
        %v948 = vsel %vm894, %v878, %v792
        %v950 = vsel %vm894, %v881, %v794
        %v952 = vsel %vm894, %v884, %v796
        %v954 = vsel %vm894, %v887, %v798
        %v955 = vsel %vm894, %v890, %v792
        %v956 = vsel %vm894, %v893, %v794
        %v957 = vld [vmem:[%s1] sm:$0xf]
        %v958 = vld [vmem:[%s1 + $0x4] sm:$0xf]
        %v959 = vld [vmem:[%s1 + $0x8] sm:$0xf]
        %v960 = vld [vmem:[%s1 + $0xc] sm:$0xf]
        %v961 = vld [vmem:[%s1 + $0x10] sm:$0xf]
        %v962 = vld [vmem:[%s1 + $0x14] sm:$0xf]
        %v963 = vld [vmem:[%s1 + $0x18] sm:$0xf]
        %v964 = vld [vmem:[%s1 + $0x1c] sm:$0xf]
        %v965 = vld [vmem:[%s1 + $0x20] sm:$0xf]
        %v966 = vld [vmem:[%s1 + $0x24] sm:$0xf]
        %v967 = vld [vmem:[%s1 + $0x28] sm:$0xf]
        %v968 = vld [vmem:[%s1 + $0x2c] sm:$0xf]
        %vm969 = vsmask.f32 7424
        %v970 = vshrl.u32 %v896, 16
        %v972 = vshll.u32 %v896, 16
        %v974 = vrot.slane %v972, 1
        %v975 = vor.u32 %v970, %v974
        %v976 = vshll.u32 %v898, 16
        %v978 = vrot.slane %v976, 1
        %v979 = vsel %vm969, %v975, %v978
        %v980 = vshrl.u32 %v900, 16
        %v982 = vshll.u32 %v900, 16
        %v984 = vrot.slane %v982, 1
        %v985 = vor.u32 %v980, %v984
        %v986 = vshll.u32 %v902, 16
        %v988 = vrot.slane %v986, 1
        %v989 = vsel %vm969, %v985, %v988
        %v990 = vshrl.u32 %v904, 16
        %v992 = vshll.u32 %v904, 16
        %v994 = vrot.slane %v992, 1
        %v995 = vor.u32 %v990, %v994
        %v996 = vshll.u32 %v906, 16
        %v998 = vrot.slane %v996, 1
        %v999 = vsel %vm969, %v995, %v998
        %v1000 = vshrl.u32 %v908, 16
        %v1002 = vshll.u32 %v908, 16
        %v1004 = vrot.slane %v1002, 1
        %v1005 = vor.u32 %v1000, %v1004
        %v1006 = vshll.u32 %v910, 16
        %v1008 = vrot.slane %v1006, 1
        %v1009 = vsel %vm969, %v1005, %v1008
        %v1010 = vshrl.u32 %v912, 16
        %v1012 = vshll.u32 %v912, 16
        %v1014 = vrot.slane %v1012, 1
        %v1015 = vor.u32 %v1010, %v1014
        %v1016 = vshll.u32 %v914, 16
        %v1018 = vrot.slane %v1016, 1
        %v1019 = vsel %vm969, %v1015, %v1018
        %v1020 = vshrl.u32 %v916, 16
        %v1022 = vshll.u32 %v916, 16
        %v1024 = vrot.slane %v1022, 1
        %v1025 = vor.u32 %v1020, %v1024
        %v1026 = vshll.u32 %v918, 16
        %v1028 = vrot.slane %v1026, 1
        %v1029 = vsel %vm969, %v1025, %v1028
        %v1030 = vshrl.u32 %v920, 16
        %v1032 = vshll.u32 %v920, 16
        %v1034 = vrot.slane %v1032, 1
        %v1035 = vor.u32 %v1030, %v1034
        %v1036 = vshll.u32 %v922, 16
        %v1038 = vrot.slane %v1036, 1
        %v1039 = vsel %vm969, %v1035, %v1038
        %v1040 = vshrl.u32 %v924, 16
        %v1042 = vshll.u32 %v924, 16
        %v1044 = vrot.slane %v1042, 1
        %v1045 = vor.u32 %v1040, %v1044
        %v1046 = vshll.u32 %v926, 16
        %v1048 = vrot.slane %v1046, 1
        %v1049 = vsel %vm969, %v1045, %v1048
        %v1050 = vshrl.u32 %v928, 16
        %v1052 = vshll.u32 %v928, 16
        %v1054 = vrot.slane %v1052, 1
        %v1055 = vor.u32 %v1050, %v1054
        %v1056 = vshll.u32 %v930, 16
        %v1058 = vrot.slane %v1056, 1
        %v1059 = vsel %vm969, %v1055, %v1058
        %v1060 = vshrl.u32 %v932, 16
        %v1062 = vshll.u32 %v932, 16
        %v1064 = vrot.slane %v1062, 1
        %v1065 = vor.u32 %v1060, %v1064
        %v1066 = vshll.u32 %v934, 16
        %v1068 = vrot.slane %v1066, 1
        %v1069 = vsel %vm969, %v1065, %v1068
        %v1070 = vshrl.u32 %v936, 16
        %v1072 = vshll.u32 %v936, 16
        %v1074 = vrot.slane %v1072, 1
        %v1075 = vor.u32 %v1070, %v1074
        %v1076 = vshll.u32 %v938, 16
        %v1078 = vrot.slane %v1076, 1
        %v1079 = vsel %vm969, %v1075, %v1078
        %v1080 = vshrl.u32 %v940, 16
        %v1082 = vshll.u32 %v940, 16
        %v1084 = vrot.slane %v1082, 1
        %v1085 = vor.u32 %v1080, %v1084
        %v1086 = vshll.u32 %v942, 16
        %v1088 = vrot.slane %v1086, 1
        %v1089 = vsel %vm969, %v1085, %v1088
        %v1090 = vshrl.u32 %v944, 16
        %v1092 = vshll.u32 %v944, 16
        %v1094 = vrot.slane %v1092, 1
        %v1095 = vor.u32 %v1090, %v1094
        %v1096 = vshll.u32 %v946, 16
        %v1098 = vrot.slane %v1096, 1
        %v1099 = vsel %vm969, %v1095, %v1098
        %v1100 = vshrl.u32 %v948, 16
        %v1102 = vshll.u32 %v948, 16
        %v1104 = vrot.slane %v1102, 1
        %v1105 = vor.u32 %v1100, %v1104
        %v1106 = vshll.u32 %v950, 16
        %v1108 = vrot.slane %v1106, 1
        %v1109 = vsel %vm969, %v1105, %v1108
        %v1110 = vshrl.u32 %v952, 16
        %v1112 = vshll.u32 %v952, 16
        %v1114 = vrot.slane %v1112, 1
        %v1115 = vor.u32 %v1110, %v1114
        %v1116 = vshll.u32 %v954, 16
        %v1118 = vrot.slane %v1116, 1
        %v1119 = vsel %vm969, %v1115, %v1118
        %v1120 = vshrl.u32 %v955, 16
        %v1122 = vshll.u32 %v955, 16
        %v1124 = vrot.slane %v1122, 1
        %v1125 = vor.u32 %v1120, %v1124
        %v1126 = vshll.u32 %v956, 16
        %v1128 = vrot.slane %v1126, 1
        %v1129 = vsel %vm969, %v1125, %v1128
        %s1130 = scalar_lea.vmem %s1, 48
        %v1131 = vld [vmem:[%s1130] sm:$0xf]
        %v1132 = vld [vmem:[%s1130 + $0x4] sm:$0xf]
        %v1133 = vld [vmem:[%s1130 + $0x8] sm:$0xf]
        %v1134 = vld [vmem:[%s1130 + $0xc] sm:$0xf]
        %v1135 = vld [vmem:[%s1130 + $0x10] sm:$0xf]
        %v1136 = vld [vmem:[%s1130 + $0x14] sm:$0xf]
        %v1137 = vld [vmem:[%s1130 + $0x18] sm:$0xf]
        %v1138 = vld [vmem:[%s1130 + $0x1c] sm:$0xf]
        %v1139 = vld [vmem:[%s1130 + $0x20] sm:$0xf]
        %v1140 = vld [vmem:[%s1130 + $0x24] sm:$0xf]
        %v1141 = vld [vmem:[%s1130 + $0x28] sm:$0xf]
        %v1142 = vld [vmem:[%s1130 + $0x2c] sm:$0xf]
        %v1155 = vunpack.c.l.b16 %v1131
        %v1156 = vunpack.c.l.b16 %v1132
        %v1157 = vunpack.c.l.b16 %v1133
        %v1158 = vunpack.c.l.b16 %v1134
        %v1159 = vunpack.c.l.b16 %v1135
        %v1160 = vunpack.c.l.b16 %v1136
        %v1161 = vunpack.c.l.b16 %v1137
        %v1162 = vunpack.c.l.b16 %v1138
        %v1163 = vunpack.c.l.b16 %v1139
        %v1164 = vunpack.c.l.b16 %v1140
        %v1165 = vunpack.c.l.b16 %v1141
        %v1166 = vunpack.c.l.b16 %v1142
        %v1167 = vpack.c.b16 %v1156, %v1155
        %v1168 = vpack.c.b16 %v1158, %v1157
        %v1169 = vpack.c.b16 %v1160, %v1159
        %v1170 = vpack.c.b16 %v1162, %v1161
        %v1171 = vpack.c.b16 %v1164, %v1163
        %v1172 = vpack.c.b16 %v1166, %v1165
        %vm1179 = vcmask 785408
        %v1181 = vsel %vm1179, %v979, 0
        %v1184 = vsel %vm1179, %v989, 0
        %v1187 = vsel %vm1179, %v999, 0
        %v1190 = vsel %vm1179, %v1009, 0
        %v1193 = vsel %vm1179, %v1019, 0
        %v1196 = vsel %vm1179, %v1029, 0
        %v1199 = vsel %vm1179, %v1039, 0
        %v1202 = vsel %vm1179, %v1049, 0
        %v1205 = vsel %vm1179, %v1059, 0
        %v1208 = vsel %vm1179, %v1069, 0
        %v1211 = vsel %vm1179, %v1079, 0
        %v1214 = vsel %vm1179, %v1089, 0
        %v1217 = vsel %vm1179, %v1099, 0
        %v1220 = vsel %vm1179, %v1109, 0
        %v1223 = vsel %vm1179, %v1119, 0
        %v1226 = vsel %vm1179, %v1129, 0
        %1228 = vmatprep.subr.bf16.mxu0 0
        %1229 = vmatpush1.bf16.msra.mxu0 %v1167
        %1230 = vmatprep.subr.bf16.mxu0 0
        %1231 = vmatpush1.bf16.msra.mxu0 %v1168
        %1232 = vmatprep.subr.bf16.mxu0 0
        %1233 = vmatpush1.bf16.msra.mxu0 %v1169
        %1234 = vmatprep.subr.bf16.mxu0 0
        %1235 = vmatpush1.bf16.msra.mxu0 %v1170
        %1236 = vmatprep.subr.bf16.mxu0 0
        %1237 = vmatpush1.bf16.msra.mxu0 %v1171
        %1238 = vmatprep.subr.bf16.mxu0 0
        %1239 = vmatpush1.bf16.msra.mxu0 %v1172
        %1240 = vmatprep.subr.bf16.mxu0 0
        %1241 = vmatpush1.bf16.msra.mxu0 0
        %1242 = vmatprep.subr.bf16.mxu0 0
        %1243 = vmatpush1.bf16.msra.mxu0 0
        %1244 = vmatprep.subr.bf16.mxu0 0
        %1245 = vmatpush1.bf16.msra.mxu0 0
        %1246 = vmatprep.subr.bf16.mxu0 0
        %1247 = vmatpush1.bf16.msra.mxu0 0
        %1248 = vmatprep.subr.bf16.mxu0 0
        %1249 = vmatpush1.bf16.msra.mxu0 0
        %1250 = vmatprep.subr.bf16.mxu0 0
        %1251 = vmatpush1.bf16.msra.mxu0 0
        %1252 = vmatprep.subr.bf16.mxu0 0
        %1253 = vmatpush1.bf16.msra.mxu0 0
        %1254 = vmatprep.subr.bf16.mxu0 0
        %1255 = vmatpush1.bf16.msra.mxu0 0
        %1256 = vmatprep.subr.bf16.mxu0 0
        %1257 = vmatpush1.bf16.msra.mxu0 0
        %1258 = vmatprep.subr.bf16.mxu0 0
        %1259 = vmatpush1.bf16.msra.mxu0 0
        %1260 = vmatprep.mubr.bf16.mxu0 0
        %1261 = vmatmul.mubr.bf16.gmra.mrb[0].mxu0 %v1181
        %v1262 = vpop.f32.mrb[0].mxu0
        %v1263 = vadd.f32 0.0, %v1262
        %v1264 = vpop.f32.mrb[0].mxu0
        %v1265 = vpop.f32.mrb[0].mxu0
        %v1266 = vadd.f32 0.0, %v1265
        %v1267 = vpop.f32.mrb[0].mxu0
        %1268 = vmatprep.mubr.bf16.mxu0 0
        %1269 = vmatmul.mubr.bf16.gmra.mrb[0].mxu0 %v1184
        %v1270 = vpop.f32.mrb[0].mxu0
        %v1271 = vadd.f32 0.0, %v1270
        %v1272 = vpop.f32.mrb[0].mxu0
        %v1273 = vpop.f32.mrb[0].mxu0
        %v1274 = vadd.f32 0.0, %v1273
        %v1275 = vpop.f32.mrb[0].mxu0
        %1276 = vmatprep.mubr.bf16.mxu0 0
        %1277 = vmatmul.mubr.bf16.gmra.mrb[0].mxu0 %v1187
        %v1278 = vpop.f32.mrb[0].mxu0
        %v1279 = vadd.f32 0.0, %v1278
        %v1280 = vpop.f32.mrb[0].mxu0
        %v1281 = vpop.f32.mrb[0].mxu0
        %v1282 = vadd.f32 0.0, %v1281
        %v1283 = vpop.f32.mrb[0].mxu0
        %1284 = vmatprep.mubr.bf16.mxu0 0
        %1285 = vmatmul.mubr.bf16.gmra.mrb[0].mxu0 %v1190
        %v1286 = vpop.f32.mrb[0].mxu0
        %v1287 = vadd.f32 0.0, %v1286
        %v1288 = vpop.f32.mrb[0].mxu0
        %v1289 = vpop.f32.mrb[0].mxu0
        %v1290 = vadd.f32 0.0, %v1289
        %v1291 = vpop.f32.mrb[0].mxu0
        %1292 = vmatprep.mubr.bf16.mxu0 0
        %1293 = vmatmul.mubr.bf16.gmra.mrb[0].mxu0 %v1193
        %v1294 = vpop.f32.mrb[0].mxu0
        %v1295 = vadd.f32 0.0, %v1294
        %v1296 = vpop.f32.mrb[0].mxu0
        %v1297 = vpop.f32.mrb[0].mxu0
        %v1298 = vadd.f32 0.0, %v1297
        %v1299 = vpop.f32.mrb[0].mxu0
        %1300 = vmatprep.mubr.bf16.mxu0 0
        %1301 = vmatmul.mubr.bf16.gmra.mrb[0].mxu0 %v1196
        %v1302 = vpop.f32.mrb[0].mxu0
        %v1303 = vadd.f32 0.0, %v1302
        %v1304 = vpop.f32.mrb[0].mxu0
        %v1305 = vpop.f32.mrb[0].mxu0
        %v1306 = vadd.f32 0.0, %v1305
        %v1307 = vpop.f32.mrb[0].mxu0
        %1308 = vmatprep.mubr.bf16.mxu0 0
        %1309 = vmatmul.mubr.bf16.gmra.mrb[0].mxu0 %v1199
        %v1310 = vpop.f32.mrb[0].mxu0
        %v1311 = vadd.f32 0.0, %v1310
        %v1312 = vpop.f32.mrb[0].mxu0
        %v1313 = vpop.f32.mrb[0].mxu0
        %v1314 = vadd.f32 0.0, %v1313
        %v1315 = vpop.f32.mrb[0].mxu0
        %1316 = vmatprep.mubr.bf16.mxu0 0
        %1317 = vmatmul.mubr.bf16.gmra.mrb[0].mxu0 %v1202
        %v1318 = vpop.f32.mrb[0].mxu0
        %v1319 = vadd.f32 0.0, %v1318
        %v1320 = vpop.f32.mrb[0].mxu0
        %v1321 = vpop.f32.mrb[0].mxu0
        %v1322 = vadd.f32 0.0, %v1321
        %v1323 = vpop.f32.mrb[0].mxu0
        %1324 = vmatprep.mubr.bf16.mxu0 0
        %1325 = vmatmul.mubr.bf16.gmra.mrb[0].mxu0 %v1205
        %v1326 = vpop.f32.mrb[0].mxu0
        %v1327 = vadd.f32 0.0, %v1326
        %v1328 = vpop.f32.mrb[0].mxu0
        %v1329 = vpop.f32.mrb[0].mxu0
        %v1330 = vadd.f32 0.0, %v1329
        %v1331 = vpop.f32.mrb[0].mxu0
        %1332 = vmatprep.mubr.bf16.mxu0 0
        %1333 = vmatmul.mubr.bf16.gmra.mrb[0].mxu0 %v1208
        %v1334 = vpop.f32.mrb[0].mxu0
        %v1335 = vadd.f32 0.0, %v1334
        %v1336 = vpop.f32.mrb[0].mxu0
        %v1337 = vpop.f32.mrb[0].mxu0
        %v1338 = vadd.f32 0.0, %v1337
        %v1339 = vpop.f32.mrb[0].mxu0
        %1340 = vmatprep.mubr.bf16.mxu0 0
        %1341 = vmatmul.mubr.bf16.gmra.mrb[0].mxu0 %v1211
        %v1342 = vpop.f32.mrb[0].mxu0
        %v1343 = vadd.f32 0.0, %v1342
        %v1344 = vpop.f32.mrb[0].mxu0
        %v1345 = vpop.f32.mrb[0].mxu0
        %v1346 = vadd.f32 0.0, %v1345
        %v1347 = vpop.f32.mrb[0].mxu0
        %1348 = vmatprep.mubr.bf16.mxu0 0
        %1349 = vmatmul.mubr.bf16.gmra.mrb[0].mxu0 %v1214
        %v1350 = vpop.f32.mrb[0].mxu0
        %v1351 = vadd.f32 0.0, %v1350
        %v1352 = vpop.f32.mrb[0].mxu0
        %v1353 = vpop.f32.mrb[0].mxu0
        %v1354 = vadd.f32 0.0, %v1353
        %v1355 = vpop.f32.mrb[0].mxu0
        %1356 = vmatprep.mubr.bf16.mxu0 0
        %1357 = vmatmul.mubr.bf16.gmra.mrb[0].mxu0 %v1217
        %v1358 = vpop.f32.mrb[0].mxu0
        %v1359 = vadd.f32 0.0, %v1358
        %v1360 = vpop.f32.mrb[0].mxu0
        %v1361 = vpop.f32.mrb[0].mxu0
        %v1362 = vadd.f32 0.0, %v1361
        %v1363 = vpop.f32.mrb[0].mxu0
        %1364 = vmatprep.mubr.bf16.mxu0 0
        %1365 = vmatmul.mubr.bf16.gmra.mrb[0].mxu0 %v1220
        %v1366 = vpop.f32.mrb[0].mxu0
        %v1367 = vadd.f32 0.0, %v1366
        %v1368 = vpop.f32.mrb[0].mxu0
        %v1369 = vpop.f32.mrb[0].mxu0
        %v1370 = vadd.f32 0.0, %v1369
        %v1371 = vpop.f32.mrb[0].mxu0
        %1372 = vmatprep.mubr.bf16.mxu0 0
        %1373 = vmatmul.mubr.bf16.gmra.mrb[0].mxu0 %v1223
        %v1374 = vpop.f32.mrb[0].mxu0
        %v1375 = vadd.f32 0.0, %v1374
        %v1376 = vpop.f32.mrb[0].mxu0
        %v1377 = vpop.f32.mrb[0].mxu0
        %v1378 = vadd.f32 0.0, %v1377
        %v1379 = vpop.f32.mrb[0].mxu0
        %1380 = vmatprep.mubr.bf16.mxu0 0
        %1381 = vmatmul.mubr.bf16.gmra.mrb[0].mxu0 %v1226
        %v1382 = vpop.f32.mrb[0].mxu0
        %v1383 = vadd.f32 0.0, %v1382
        %v1384 = vpop.f32.mrb[0].mxu0
        %v1385 = vpop.f32.mrb[0].mxu0
        %v1386 = vadd.f32 0.0, %v1385
        %v1387 = vpop.f32.mrb[0].mxu0
        %1388 = vdwg.mxu0
        %v1401 = vunpack.c.l.b16 %v957
        %v1402 = vunpack.c.l.b16 %v958
        %v1403 = vunpack.c.l.b16 %v959
        %v1404 = vunpack.c.l.b16 %v960
        %v1405 = vunpack.c.l.b16 %v961
        %v1406 = vunpack.c.l.b16 %v962
        %v1407 = vunpack.c.l.b16 %v963
        %v1408 = vunpack.c.l.b16 %v964
        %v1409 = vunpack.c.l.b16 %v965
        %v1410 = vunpack.c.l.b16 %v966
        %v1411 = vunpack.c.l.b16 %v967
        %v1412 = vunpack.c.l.b16 %v968
        %v1413 = vpack.c.b16 %v1402, %v1401
        %v1414 = vpack.c.b16 %v1404, %v1403
        %v1415 = vpack.c.b16 %v1406, %v1405
        %v1416 = vpack.c.b16 %v1408, %v1407
        %v1417 = vpack.c.b16 %v1410, %v1409
        %v1418 = vpack.c.b16 %v1412, %v1411
        %v1425 = vsel %vm1179, %v896, 0
        %v1427 = vsel %vm1179, %v900, 0
        %v1429 = vsel %vm1179, %v904, 0
        %v1431 = vsel %vm1179, %v908, 0
        %v1433 = vsel %vm1179, %v912, 0
        %v1435 = vsel %vm1179, %v916, 0
        %v1437 = vsel %vm1179, %v920, 0
        %v1439 = vsel %vm1179, %v924, 0
        %v1441 = vsel %vm1179, %v928, 0
        %v1443 = vsel %vm1179, %v932, 0
        %v1445 = vsel %vm1179, %v936, 0
        %v1447 = vsel %vm1179, %v940, 0
        %v1449 = vsel %vm1179, %v944, 0
        %v1451 = vsel %vm1179, %v948, 0
        %v1453 = vsel %vm1179, %v952, 0
        %v1455 = vsel %vm1179, %v955, 0
        %1457 = vmatprep.subr.bf16.mxu0 0
        %1458 = vmatpush1.bf16.msra.mxu0 %v1413
        %1459 = vmatprep.subr.bf16.mxu0 0
        %1460 = vmatpush1.bf16.msra.mxu0 %v1414
        %1461 = vmatprep.subr.bf16.mxu0 0
        %1462 = vmatpush1.bf16.msra.mxu0 %v1415
        %1463 = vmatprep.subr.bf16.mxu0 0
        %1464 = vmatpush1.bf16.msra.mxu0 %v1416
        %1465 = vmatprep.subr.bf16.mxu0 0
        %1466 = vmatpush1.bf16.msra.mxu0 %v1417
        %1467 = vmatprep.subr.bf16.mxu0 0
        %1468 = vmatpush1.bf16.msra.mxu0 %v1418
        %1469 = vmatprep.subr.bf16.mxu0 0
        %1470 = vmatpush1.bf16.msra.mxu0 0
        %1471 = vmatprep.subr.bf16.mxu0 0
        %1472 = vmatpush1.bf16.msra.mxu0 0
        %1473 = vmatprep.subr.bf16.mxu0 0
        %1474 = vmatpush1.bf16.msra.mxu0 0
        %1475 = vmatprep.subr.bf16.mxu0 0
        %1476 = vmatpush1.bf16.msra.mxu0 0
        %1477 = vmatprep.subr.bf16.mxu0 0
        %1478 = vmatpush1.bf16.msra.mxu0 0
        %1479 = vmatprep.subr.bf16.mxu0 0
        %1480 = vmatpush1.bf16.msra.mxu0 0
        %1481 = vmatprep.subr.bf16.mxu0 0
        %1482 = vmatpush1.bf16.msra.mxu0 0
        %1483 = vmatprep.subr.bf16.mxu0 0
        %1484 = vmatpush1.bf16.msra.mxu0 0
        %1485 = vmatprep.subr.bf16.mxu0 0
        %1486 = vmatpush1.bf16.msra.mxu0 0
        %1487 = vmatprep.subr.bf16.mxu0 0
        %1488 = vmatpush1.bf16.msra.mxu0 0
        %1489 = vmatprep.mubr.bf16.mxu0 0
        %1490 = vmatmul.mubr.bf16.gmra.mrb[0].mxu0 %v1425
        %v1491 = vpop.f32.mrb[0].mxu0
        %v1492 = vadd.f32 %v1263, %v1491
        %v1493 = vpop.f32.mrb[0].mxu0
        %v1494 = vpop.f32.mrb[0].mxu0
        %v1495 = vadd.f32 %v1266, %v1494
        %v1496 = vpop.f32.mrb[0].mxu0
        %1497 = vmatprep.mubr.bf16.mxu0 0
        %1498 = vmatmul.mubr.bf16.gmra.mrb[0].mxu0 %v1427
        %v1499 = vpop.f32.mrb[0].mxu0
        %v1500 = vadd.f32 %v1271, %v1499
        %v1501 = vpop.f32.mrb[0].mxu0
        %v1502 = vpop.f32.mrb[0].mxu0
        %v1503 = vadd.f32 %v1274, %v1502
        %v1504 = vpop.f32.mrb[0].mxu0
        %1505 = vmatprep.mubr.bf16.mxu0 0
        %1506 = vmatmul.mubr.bf16.gmra.mrb[0].mxu0 %v1429
        %v1507 = vpop.f32.mrb[0].mxu0
        %v1508 = vadd.f32 %v1279, %v1507
        %v1509 = vpop.f32.mrb[0].mxu0
        %v1510 = vpop.f32.mrb[0].mxu0
        %v1511 = vadd.f32 %v1282, %v1510
        %v1512 = vpop.f32.mrb[0].mxu0
        %1513 = vmatprep.mubr.bf16.mxu0 0
        %1514 = vmatmul.mubr.bf16.gmra.mrb[0].mxu0 %v1431
        %v1515 = vpop.f32.mrb[0].mxu0
        %v1516 = vadd.f32 %v1287, %v1515
        %v1517 = vpop.f32.mrb[0].mxu0
        %v1518 = vpop.f32.mrb[0].mxu0
        %v1519 = vadd.f32 %v1290, %v1518
        %v1520 = vpop.f32.mrb[0].mxu0
        %1521 = vmatprep.mubr.bf16.mxu0 0
        %1522 = vmatmul.mubr.bf16.gmra.mrb[0].mxu0 %v1433
        %v1523 = vpop.f32.mrb[0].mxu0
        %v1524 = vadd.f32 %v1295, %v1523
        %v1525 = vpop.f32.mrb[0].mxu0
        %v1526 = vpop.f32.mrb[0].mxu0
        %v1527 = vadd.f32 %v1298, %v1526
        %v1528 = vpop.f32.mrb[0].mxu0
        %1529 = vmatprep.mubr.bf16.mxu0 0
        %1530 = vmatmul.mubr.bf16.gmra.mrb[0].mxu0 %v1435
        %v1531 = vpop.f32.mrb[0].mxu0
        %v1532 = vadd.f32 %v1303, %v1531
        %v1533 = vpop.f32.mrb[0].mxu0
        %v1534 = vpop.f32.mrb[0].mxu0
        %v1535 = vadd.f32 %v1306, %v1534
        %v1536 = vpop.f32.mrb[0].mxu0
        %1537 = vmatprep.mubr.bf16.mxu0 0
        %1538 = vmatmul.mubr.bf16.gmra.mrb[0].mxu0 %v1437
        %v1539 = vpop.f32.mrb[0].mxu0
        %v1540 = vadd.f32 %v1311, %v1539
        %v1541 = vpop.f32.mrb[0].mxu0
        %v1542 = vpop.f32.mrb[0].mxu0
        %v1543 = vadd.f32 %v1314, %v1542
        %v1544 = vpop.f32.mrb[0].mxu0
        %1545 = vmatprep.mubr.bf16.mxu0 0
        %1546 = vmatmul.mubr.bf16.gmra.mrb[0].mxu0 %v1439
        %v1547 = vpop.f32.mrb[0].mxu0
        %v1548 = vadd.f32 %v1319, %v1547
        %v1549 = vpop.f32.mrb[0].mxu0
        %v1550 = vpop.f32.mrb[0].mxu0
        %v1551 = vadd.f32 %v1322, %v1550
        %v1552 = vpop.f32.mrb[0].mxu0
        %1553 = vmatprep.mubr.bf16.mxu0 0
        %1554 = vmatmul.mubr.bf16.gmra.mrb[0].mxu0 %v1441
        %v1555 = vpop.f32.mrb[0].mxu0
        %v1556 = vadd.f32 %v1327, %v1555
        %v1557 = vpop.f32.mrb[0].mxu0
        %v1558 = vpop.f32.mrb[0].mxu0
        %v1559 = vadd.f32 %v1330, %v1558
        %v1560 = vpop.f32.mrb[0].mxu0
        %1561 = vmatprep.mubr.bf16.mxu0 0
        %1562 = vmatmul.mubr.bf16.gmra.mrb[0].mxu0 %v1443
        %v1563 = vpop.f32.mrb[0].mxu0
        %v1564 = vadd.f32 %v1335, %v1563
        %v1565 = vpop.f32.mrb[0].mxu0
        %v1566 = vpop.f32.mrb[0].mxu0
        %v1567 = vadd.f32 %v1338, %v1566
        %v1568 = vpop.f32.mrb[0].mxu0
        %1569 = vmatprep.mubr.bf16.mxu0 0
        %1570 = vmatmul.mubr.bf16.gmra.mrb[0].mxu0 %v1445
        %v1571 = vpop.f32.mrb[0].mxu0
        %v1572 = vadd.f32 %v1343, %v1571
        %v1573 = vpop.f32.mrb[0].mxu0
        %v1574 = vpop.f32.mrb[0].mxu0
        %v1575 = vadd.f32 %v1346, %v1574
        %v1576 = vpop.f32.mrb[0].mxu0
        %1577 = vmatprep.mubr.bf16.mxu0 0
        %1578 = vmatmul.mubr.bf16.gmra.mrb[0].mxu0 %v1447
        %v1579 = vpop.f32.mrb[0].mxu0
        %v1580 = vadd.f32 %v1351, %v1579
        %v1581 = vpop.f32.mrb[0].mxu0
        %v1582 = vpop.f32.mrb[0].mxu0
        %v1583 = vadd.f32 %v1354, %v1582
        %v1584 = vpop.f32.mrb[0].mxu0
        %1585 = vmatprep.mubr.bf16.mxu0 0
        %1586 = vmatmul.mubr.bf16.gmra.mrb[0].mxu0 %v1449
        %v1587 = vpop.f32.mrb[0].mxu0
        %v1588 = vadd.f32 %v1359, %v1587
        %v1589 = vpop.f32.mrb[0].mxu0
        %v1590 = vpop.f32.mrb[0].mxu0
        %v1591 = vadd.f32 %v1362, %v1590
        %v1592 = vpop.f32.mrb[0].mxu0
        %1593 = vmatprep.mubr.bf16.mxu0 0
        %1594 = vmatmul.mubr.bf16.gmra.mrb[0].mxu0 %v1451
        %v1595 = vpop.f32.mrb[0].mxu0
        %v1596 = vadd.f32 %v1367, %v1595
        %v1597 = vpop.f32.mrb[0].mxu0
        %v1598 = vpop.f32.mrb[0].mxu0
        %v1599 = vadd.f32 %v1370, %v1598
        %v1600 = vpop.f32.mrb[0].mxu0
        %1601 = vmatprep.mubr.bf16.mxu0 0
        %1602 = vmatmul.mubr.bf16.gmra.mrb[0].mxu0 %v1453
        %v1603 = vpop.f32.mrb[0].mxu0
        %v1604 = vadd.f32 %v1375, %v1603
        %v1605 = vpop.f32.mrb[0].mxu0
        %v1606 = vpop.f32.mrb[0].mxu0
        %v1607 = vadd.f32 %v1378, %v1606
        %v1608 = vpop.f32.mrb[0].mxu0
        %1609 = vmatprep.mubr.bf16.mxu0 0
        %1610 = vmatmul.mubr.bf16.gmra.mrb[0].mxu0 %v1455
        %v1611 = vpop.f32.mrb[0].mxu0
        %v1612 = vadd.f32 %v1383, %v1611
        %v1613 = vpop.f32.mrb[0].mxu0
        %v1614 = vpop.f32.mrb[0].mxu0
        %v1615 = vadd.f32 %v1386, %v1614
        %v1616 = vpop.f32.mrb[0].mxu0
        %1617 = vdwg.mxu0
        %vm1650 = vcmask 1046528
        %v1651 = vrot.slane %v896, 1
        %v1652 = vrot.slane %v898, 1
        %v1653 = vsel %vm1650, %v1651, %v1652
        %v1654 = vrot.slane %v900, 1
        %v1655 = vrot.slane %v902, 1
        %v1656 = vsel %vm1650, %v1654, %v1655
        %v1657 = vrot.slane %v904, 1
        %v1658 = vrot.slane %v906, 1
        %v1659 = vsel %vm1650, %v1657, %v1658
        %v1660 = vrot.slane %v908, 1
        %v1661 = vrot.slane %v910, 1
        %v1662 = vsel %vm1650, %v1660, %v1661
        %v1663 = vrot.slane %v912, 1
        %v1664 = vrot.slane %v914, 1
        %v1665 = vsel %vm1650, %v1663, %v1664
        %v1666 = vrot.slane %v916, 1
        %v1667 = vrot.slane %v918, 1
        %v1668 = vsel %vm1650, %v1666, %v1667
        %v1669 = vrot.slane %v920, 1
        %v1670 = vrot.slane %v922, 1
        %v1671 = vsel %vm1650, %v1669, %v1670
        %v1672 = vrot.slane %v924, 1
        %v1673 = vrot.slane %v926, 1
        %v1674 = vsel %vm1650, %v1672, %v1673
        %v1675 = vrot.slane %v928, 1
        %v1676 = vrot.slane %v930, 1
        %v1677 = vsel %vm1650, %v1675, %v1676
        %v1678 = vrot.slane %v932, 1
        %v1679 = vrot.slane %v934, 1
        %v1680 = vsel %vm1650, %v1678, %v1679
        %v1681 = vrot.slane %v936, 1
        %v1682 = vrot.slane %v938, 1
        %v1683 = vsel %vm1650, %v1681, %v1682
        %v1684 = vrot.slane %v940, 1
        %v1685 = vrot.slane %v942, 1
        %v1686 = vsel %vm1650, %v1684, %v1685
        %v1687 = vrot.slane %v944, 1
        %v1688 = vrot.slane %v946, 1
        %v1689 = vsel %vm1650, %v1687, %v1688
        %v1690 = vrot.slane %v948, 1
        %v1691 = vrot.slane %v950, 1
        %v1692 = vsel %vm1650, %v1690, %v1691
        %v1693 = vrot.slane %v952, 1
        %v1694 = vrot.slane %v954, 1
        %v1695 = vsel %vm1650, %v1693, %v1694
        %v1696 = vrot.slane %v955, 1
        %v1697 = vrot.slane %v956, 1
        %v1698 = vsel %vm1650, %v1696, %v1697
        %s1699 = scalar_lea.vmem %s1, 96
        %v1700 = vld [vmem:[%s1699] sm:$0xf]
        %v1701 = vld [vmem:[%s1699 + $0x4] sm:$0xf]
        %v1702 = vld [vmem:[%s1699 + $0x8] sm:$0xf]
        %v1703 = vld [vmem:[%s1699 + $0xc] sm:$0xf]
        %v1704 = vld [vmem:[%s1699 + $0x10] sm:$0xf]
        %v1705 = vld [vmem:[%s1699 + $0x14] sm:$0xf]
        %v1706 = vld [vmem:[%s1699 + $0x18] sm:$0xf]
        %v1707 = vld [vmem:[%s1699 + $0x1c] sm:$0xf]
        %v1708 = vld [vmem:[%s1699 + $0x20] sm:$0xf]
        %v1709 = vld [vmem:[%s1699 + $0x24] sm:$0xf]
        %v1710 = vld [vmem:[%s1699 + $0x28] sm:$0xf]
        %v1711 = vld [vmem:[%s1699 + $0x2c] sm:$0xf]
        %v1724 = vunpack.c.l.b16 %v1700
        %v1725 = vunpack.c.l.b16 %v1701
        %v1726 = vunpack.c.l.b16 %v1702
        %v1727 = vunpack.c.l.b16 %v1703
        %v1728 = vunpack.c.l.b16 %v1704
        %v1729 = vunpack.c.l.b16 %v1705
        %v1730 = vunpack.c.l.b16 %v1706
        %v1731 = vunpack.c.l.b16 %v1707
        %v1732 = vunpack.c.l.b16 %v1708
        %v1733 = vunpack.c.l.b16 %v1709
        %v1734 = vunpack.c.l.b16 %v1710
        %v1735 = vunpack.c.l.b16 %v1711
        %v1736 = vpack.c.b16 %v1725, %v1724
        %v1737 = vpack.c.b16 %v1727, %v1726
        %v1738 = vpack.c.b16 %v1729, %v1728
        %v1739 = vpack.c.b16 %v1731, %v1730
        %v1740 = vpack.c.b16 %v1733, %v1732
        %v1741 = vpack.c.b16 %v1735, %v1734
        %v1749 = vsel %vm1179, %v1653, 0
        %v1752 = vsel %vm1179, %v1656, 0
        %v1755 = vsel %vm1179, %v1659, 0
        %v1758 = vsel %vm1179, %v1662, 0
        %v1761 = vsel %vm1179, %v1665, 0
        %v1764 = vsel %vm1179, %v1668, 0
        %v1767 = vsel %vm1179, %v1671, 0
        %v1770 = vsel %vm1179, %v1674, 0
        %v1773 = vsel %vm1179, %v1677, 0
        %v1776 = vsel %vm1179, %v1680, 0
        %v1779 = vsel %vm1179, %v1683, 0
        %v1782 = vsel %vm1179, %v1686, 0
        %v1785 = vsel %vm1179, %v1689, 0
        %v1788 = vsel %vm1179, %v1692, 0
        %v1791 = vsel %vm1179, %v1695, 0
        %v1794 = vsel %vm1179, %v1698, 0
        %1796 = vmatprep.subr.bf16.mxu0 0
        %1797 = vmatpush1.bf16.msra.mxu0 %v1736
        %1798 = vmatprep.subr.bf16.mxu0 0
        %1799 = vmatpush1.bf16.msra.mxu0 %v1737
        %1800 = vmatprep.subr.bf16.mxu0 0
        %1801 = vmatpush1.bf16.msra.mxu0 %v1738
        %1802 = vmatprep.subr.bf16.mxu0 0
        %1803 = vmatpush1.bf16.msra.mxu0 %v1739
        %1804 = vmatprep.subr.bf16.mxu0 0
        %1805 = vmatpush1.bf16.msra.mxu0 %v1740
        %1806 = vmatprep.subr.bf16.mxu0 0
        %1807 = vmatpush1.bf16.msra.mxu0 %v1741
        %1808 = vmatprep.subr.bf16.mxu0 0
        %1809 = vmatpush1.bf16.msra.mxu0 0
        %1810 = vmatprep.subr.bf16.mxu0 0
        %1811 = vmatpush1.bf16.msra.mxu0 0
        %1812 = vmatprep.subr.bf16.mxu0 0
        %1813 = vmatpush1.bf16.msra.mxu0 0
        %1814 = vmatprep.subr.bf16.mxu0 0
        %1815 = vmatpush1.bf16.msra.mxu0 0
        %1816 = vmatprep.subr.bf16.mxu0 0
        %1817 = vmatpush1.bf16.msra.mxu0 0
        %1818 = vmatprep.subr.bf16.mxu0 0
        %1819 = vmatpush1.bf16.msra.mxu0 0
        %1820 = vmatprep.subr.bf16.mxu0 0
        %1821 = vmatpush1.bf16.msra.mxu0 0
        %1822 = vmatprep.subr.bf16.mxu0 0
        %1823 = vmatpush1.bf16.msra.mxu0 0
        %1824 = vmatprep.subr.bf16.mxu0 0
        %1825 = vmatpush1.bf16.msra.mxu0 0
        %1826 = vmatprep.subr.bf16.mxu0 0
        %1827 = vmatpush1.bf16.msra.mxu0 0
        %1828 = vmatprep.mubr.bf16.mxu0 0
        %1829 = vmatmul.mubr.bf16.gmra.mrb[0].mxu0 %v1749
        %v1830 = vpop.f32.mrb[0].mxu0
        %v1831 = vadd.f32 0.0, %v1830
        %v1832 = vpop.f32.mrb[0].mxu0
        %v1833 = vpop.f32.mrb[0].mxu0
        %v1834 = vadd.f32 0.0, %v1833
        %v1835 = vpop.f32.mrb[0].mxu0
        %1836 = vmatprep.mubr.bf16.mxu0 0
        %1837 = vmatmul.mubr.bf16.gmra.mrb[0].mxu0 %v1752
        %v1838 = vpop.f32.mrb[0].mxu0
        %v1839 = vadd.f32 0.0, %v1838
        %v1840 = vpop.f32.mrb[0].mxu0
        %v1841 = vpop.f32.mrb[0].mxu0
        %v1842 = vadd.f32 0.0, %v1841
        %v1843 = vpop.f32.mrb[0].mxu0
        %1844 = vmatprep.mubr.bf16.mxu0 0
        %1845 = vmatmul.mubr.bf16.gmra.mrb[0].mxu0 %v1755
        %v1846 = vpop.f32.mrb[0].mxu0
        %v1847 = vadd.f32 0.0, %v1846
        %v1848 = vpop.f32.mrb[0].mxu0
        %v1849 = vpop.f32.mrb[0].mxu0
        %v1850 = vadd.f32 0.0, %v1849
        %v1851 = vpop.f32.mrb[0].mxu0
        %1852 = vmatprep.mubr.bf16.mxu0 0
        %1853 = vmatmul.mubr.bf16.gmra.mrb[0].mxu0 %v1758
        %v1854 = vpop.f32.mrb[0].mxu0
        %v1855 = vadd.f32 0.0, %v1854
        %v1856 = vpop.f32.mrb[0].mxu0
        %v1857 = vpop.f32.mrb[0].mxu0
        %v1858 = vadd.f32 0.0, %v1857
        %v1859 = vpop.f32.mrb[0].mxu0
        %1860 = vmatprep.mubr.bf16.mxu0 0
        %1861 = vmatmul.mubr.bf16.gmra.mrb[0].mxu0 %v1761
        %v1862 = vpop.f32.mrb[0].mxu0
        %v1863 = vadd.f32 0.0, %v1862
        %v1864 = vpop.f32.mrb[0].mxu0
        %v1865 = vpop.f32.mrb[0].mxu0
        %v1866 = vadd.f32 0.0, %v1865
        %v1867 = vpop.f32.mrb[0].mxu0
        %1868 = vmatprep.mubr.bf16.mxu0 0
        %1869 = vmatmul.mubr.bf16.gmra.mrb[0].mxu0 %v1764
        %v1870 = vpop.f32.mrb[0].mxu0
        %v1871 = vadd.f32 0.0, %v1870
        %v1872 = vpop.f32.mrb[0].mxu0
        %v1873 = vpop.f32.mrb[0].mxu0
        %v1874 = vadd.f32 0.0, %v1873
        %v1875 = vpop.f32.mrb[0].mxu0
        %1876 = vmatprep.mubr.bf16.mxu0 0
        %1877 = vmatmul.mubr.bf16.gmra.mrb[0].mxu0 %v1767
        %v1878 = vpop.f32.mrb[0].mxu0
        %v1879 = vadd.f32 0.0, %v1878
        %v1880 = vpop.f32.mrb[0].mxu0
        %v1881 = vpop.f32.mrb[0].mxu0
        %v1882 = vadd.f32 0.0, %v1881
        %v1883 = vpop.f32.mrb[0].mxu0
        %1884 = vmatprep.mubr.bf16.mxu0 0
        %1885 = vmatmul.mubr.bf16.gmra.mrb[0].mxu0 %v1770
        %v1886 = vpop.f32.mrb[0].mxu0
        %v1887 = vadd.f32 0.0, %v1886
        %v1888 = vpop.f32.mrb[0].mxu0
        %v1889 = vpop.f32.mrb[0].mxu0
        %v1890 = vadd.f32 0.0, %v1889
        %v1891 = vpop.f32.mrb[0].mxu0
        %1892 = vmatprep.mubr.bf16.mxu0 0
        %1893 = vmatmul.mubr.bf16.gmra.mrb[0].mxu0 %v1773
        %v1894 = vpop.f32.mrb[0].mxu0
        %v1895 = vadd.f32 0.0, %v1894
        %v1896 = vpop.f32.mrb[0].mxu0
        %v1897 = vpop.f32.mrb[0].mxu0
        %v1898 = vadd.f32 0.0, %v1897
        %v1899 = vpop.f32.mrb[0].mxu0
        %1900 = vmatprep.mubr.bf16.mxu0 0
        %1901 = vmatmul.mubr.bf16.gmra.mrb[0].mxu0 %v1776
        %v1902 = vpop.f32.mrb[0].mxu0
        %v1903 = vadd.f32 0.0, %v1902
        %v1904 = vpop.f32.mrb[0].mxu0
        %v1905 = vpop.f32.mrb[0].mxu0
        %v1906 = vadd.f32 0.0, %v1905
        %v1907 = vpop.f32.mrb[0].mxu0
        %1908 = vmatprep.mubr.bf16.mxu0 0
        %1909 = vmatmul.mubr.bf16.gmra.mrb[0].mxu0 %v1779
        %v1910 = vpop.f32.mrb[0].mxu0
        %v1911 = vadd.f32 0.0, %v1910
        %v1912 = vpop.f32.mrb[0].mxu0
        %v1913 = vpop.f32.mrb[0].mxu0
        %v1914 = vadd.f32 0.0, %v1913
        %v1915 = vpop.f32.mrb[0].mxu0
        %1916 = vmatprep.mubr.bf16.mxu0 0
        %1917 = vmatmul.mubr.bf16.gmra.mrb[0].mxu0 %v1782
        %v1918 = vpop.f32.mrb[0].mxu0
        %v1919 = vadd.f32 0.0, %v1918
        %v1920 = vpop.f32.mrb[0].mxu0
        %v1921 = vpop.f32.mrb[0].mxu0
        %v1922 = vadd.f32 0.0, %v1921
        %v1923 = vpop.f32.mrb[0].mxu0
        %1924 = vmatprep.mubr.bf16.mxu0 0
        %1925 = vmatmul.mubr.bf16.gmra.mrb[0].mxu0 %v1785
        %v1926 = vpop.f32.mrb[0].mxu0
        %v1927 = vadd.f32 0.0, %v1926
        %v1928 = vpop.f32.mrb[0].mxu0
        %v1929 = vpop.f32.mrb[0].mxu0
        %v1930 = vadd.f32 0.0, %v1929
        %v1931 = vpop.f32.mrb[0].mxu0
        %1932 = vmatprep.mubr.bf16.mxu0 0
        %1933 = vmatmul.mubr.bf16.gmra.mrb[0].mxu0 %v1788
        %v1934 = vpop.f32.mrb[0].mxu0
        %v1935 = vadd.f32 0.0, %v1934
        %v1936 = vpop.f32.mrb[0].mxu0
        %v1937 = vpop.f32.mrb[0].mxu0
        %v1938 = vadd.f32 0.0, %v1937
        %v1939 = vpop.f32.mrb[0].mxu0
        %1940 = vmatprep.mubr.bf16.mxu0 0
        %1941 = vmatmul.mubr.bf16.gmra.mrb[0].mxu0 %v1791
        %v1942 = vpop.f32.mrb[0].mxu0
        %v1943 = vadd.f32 0.0, %v1942
        %v1944 = vpop.f32.mrb[0].mxu0
        %v1945 = vpop.f32.mrb[0].mxu0
        %v1946 = vadd.f32 0.0, %v1945
        %v1947 = vpop.f32.mrb[0].mxu0
        %1948 = vmatprep.mubr.bf16.mxu0 0
        %1949 = vmatmul.mubr.bf16.gmra.mrb[0].mxu0 %v1794
        %v1950 = vpop.f32.mrb[0].mxu0
        %v1951 = vadd.f32 0.0, %v1950
        %v1952 = vpop.f32.mrb[0].mxu0
        %v1953 = vpop.f32.mrb[0].mxu0
        %v1954 = vadd.f32 0.0, %v1953
        %v1955 = vpop.f32.mrb[0].mxu0
        %1956 = vdwg.mxu0
        %v1957 = vadd.f32 %v1492, %v1831
        %v1958 = vadd.f32 %v1495, %v1834
        %v1959 = vadd.f32 %v1500, %v1839
        %v1960 = vadd.f32 %v1503, %v1842
        %v1961 = vadd.f32 %v1508, %v1847
        %v1962 = vadd.f32 %v1511, %v1850
        %v1963 = vadd.f32 %v1516, %v1855
        %v1964 = vadd.f32 %v1519, %v1858
        %v1965 = vadd.f32 %v1524, %v1863
        %v1966 = vadd.f32 %v1527, %v1866
        %v1967 = vadd.f32 %v1532, %v1871
        %v1968 = vadd.f32 %v1535, %v1874
        %v1969 = vadd.f32 %v1540, %v1879
        %v1970 = vadd.f32 %v1543, %v1882
        %v1971 = vadd.f32 %v1548, %v1887
        %v1972 = vadd.f32 %v1551, %v1890
        %v1973 = vadd.f32 %v1556, %v1895
        %v1974 = vadd.f32 %v1559, %v1898
        %v1975 = vadd.f32 %v1564, %v1903
        %v1976 = vadd.f32 %v1567, %v1906
        %v1977 = vadd.f32 %v1572, %v1911
        %v1978 = vadd.f32 %v1575, %v1914
        %v1979 = vadd.f32 %v1580, %v1919
        %v1980 = vadd.f32 %v1583, %v1922
        %v1981 = vadd.f32 %v1588, %v1927
        %v1982 = vadd.f32 %v1591, %v1930
        %v1983 = vadd.f32 %v1596, %v1935
        %v1984 = vadd.f32 %v1599, %v1938
        %v1985 = vadd.f32 %v1604, %v1943
        %v1986 = vadd.f32 %v1607, %v1946
        %v1987 = vadd.f32 %v1612, %v1951
        %v1988 = vadd.f32 %v1615, %v1954
        %v1989 = vld [vmem:[%s2] sm:$0x1]
        %v1991 = vlaneseq
        %v1992 = vshrl.u32 %v1991, 7
        %v1993 = vsub.s32 0, %v1992
        %v1994 = vrot.slane %v1989, %v1993
        %v1996 = vadd.f32 %v1957, %v1994
        %v1997 = vadd.f32 %v1958, %v1994
        %v1998 = vadd.f32 %v1959, %v1994
        %v1999 = vadd.f32 %v1960, %v1994
        %v2000 = vadd.f32 %v1961, %v1994
        %v2001 = vadd.f32 %v1962, %v1994
        %v2002 = vadd.f32 %v1963, %v1994
        %v2003 = vadd.f32 %v1964, %v1994
        %v2004 = vadd.f32 %v1965, %v1994
        %v2005 = vadd.f32 %v1966, %v1994
        %v2006 = vadd.f32 %v1967, %v1994
        %v2007 = vadd.f32 %v1968, %v1994
        %v2008 = vadd.f32 %v1969, %v1994
        %v2009 = vadd.f32 %v1970, %v1994
        %v2010 = vadd.f32 %v1971, %v1994
        %v2011 = vadd.f32 %v1972, %v1994
        %v2012 = vadd.f32 %v1973, %v1994
        %v2013 = vadd.f32 %v1974, %v1994
        %v2014 = vadd.f32 %v1975, %v1994
        %v2015 = vadd.f32 %v1976, %v1994
        %v2016 = vadd.f32 %v1977, %v1994
        %v2017 = vadd.f32 %v1978, %v1994
        %v2018 = vadd.f32 %v1979, %v1994
        %v2019 = vadd.f32 %v1980, %v1994
        %v2020 = vadd.f32 %v1981, %v1994
        %v2021 = vadd.f32 %v1982, %v1994
        %v2022 = vadd.f32 %v1983, %v1994
        %v2023 = vadd.f32 %v1984, %v1994
        %v2024 = vadd.f32 %v1985, %v1994
        %v2025 = vadd.f32 %v1986, %v1994
        %v2026 = vadd.f32 %v1987, %v1994
        %v2027 = vadd.f32 %v1988, %v1994
        %v2028 = vsel %vm799, %v1996, 0.0
        %v2029 = vsel %vm799, %v1997, 0.0
        %v2030 = vadd.f32 %v2028, %v2029
        %v2031 = vsel %vm799, %v1998, 0.0
        %v2032 = vadd.f32 %v2030, %v2031
        %v2033 = vsel %vm799, %v1999, 0.0
        %v2034 = vadd.f32 %v2032, %v2033
        %v2035 = vsel %vm799, %v2000, 0.0
        %v2036 = vadd.f32 %v2034, %v2035
        %v2037 = vsel %vm799, %v2001, 0.0
        %v2038 = vadd.f32 %v2036, %v2037
        %v2039 = vsel %vm799, %v2002, 0.0
        %v2040 = vadd.f32 %v2038, %v2039
        %v2041 = vsel %vm799, %v2003, 0.0
        %v2042 = vadd.f32 %v2040, %v2041
        %v2043 = vsel %vm799, %v2004, 0.0
        %v2044 = vadd.f32 %v2042, %v2043
        %v2045 = vsel %vm799, %v2005, 0.0
        %v2046 = vadd.f32 %v2044, %v2045
        %v2047 = vsel %vm799, %v2006, 0.0
        %v2048 = vadd.f32 %v2046, %v2047
        %v2049 = vsel %vm799, %v2007, 0.0
        %v2050 = vadd.f32 %v2048, %v2049
        %v2051 = vsel %vm799, %v2008, 0.0
        %v2052 = vadd.f32 %v2050, %v2051
        %v2053 = vsel %vm799, %v2009, 0.0
        %v2054 = vadd.f32 %v2052, %v2053
        %v2055 = vsel %vm799, %v2010, 0.0
        %v2056 = vadd.f32 %v2054, %v2055
        %v2057 = vsel %vm799, %v2011, 0.0
        %v2058 = vadd.f32 %v2056, %v2057
        %v2059 = vsel %vm799, %v2012, 0.0
        %v2060 = vadd.f32 %v2058, %v2059
        %v2061 = vsel %vm799, %v2013, 0.0
        %v2062 = vadd.f32 %v2060, %v2061
        %v2063 = vsel %vm799, %v2014, 0.0
        %v2064 = vadd.f32 %v2062, %v2063
        %v2065 = vsel %vm799, %v2015, 0.0
        %v2066 = vadd.f32 %v2064, %v2065
        %v2067 = vsel %vm799, %v2016, 0.0
        %v2068 = vadd.f32 %v2066, %v2067
        %v2069 = vsel %vm799, %v2017, 0.0
        %v2070 = vadd.f32 %v2068, %v2069
        %v2071 = vsel %vm799, %v2018, 0.0
        %v2072 = vadd.f32 %v2070, %v2071
        %v2073 = vsel %vm799, %v2019, 0.0
        %v2074 = vadd.f32 %v2072, %v2073
        %v2075 = vsel %vm799, %v2020, 0.0
        %v2076 = vadd.f32 %v2074, %v2075
        %v2077 = vsel %vm799, %v2021, 0.0
        %v2078 = vadd.f32 %v2076, %v2077
        %v2079 = vsel %vm799, %v2022, 0.0
        %v2080 = vadd.f32 %v2078, %v2079
        %v2081 = vsel %vm799, %v2023, 0.0
        %v2082 = vadd.f32 %v2080, %v2081
        %v2083 = vsel %vm799, %v2024, 0.0
        %v2084 = vadd.f32 %v2082, %v2083
        %v2085 = vsel %vm799, %v2025, 0.0
        %v2086 = vadd.f32 %v2084, %v2085
        %v2087 = vsel %vm799, %v2026, 0.0
        %v2088 = vadd.f32 %v2086, %v2087
        %v2089 = vsel %vm799, %v2027, 0.0
        %v2090 = vadd.f32 %v2088, %v2089
        %v2091 = vrot.slane %v2090, 4
        %v2092 = vadd.f32 %v2090, %v2091
        %v2093 = vrot.slane %v2092, 2
        %v2094 = vadd.f32 %v2092, %v2093
        %v2095 = vrot.slane %v2094, 1
        %v2096 = vadd.f32 %v2094, %v2095
        %v2097 = vrcp.pop 256.0
        %v2098 = vmul.f32 %v2096, %v2097
        %v2099 = vsub.f32 %v1996, %v2098
        %v2100 = vsub.f32 %v1997, %v2098
        %v2101 = vsub.f32 %v1998, %v2098
        %v2102 = vsub.f32 %v1999, %v2098
        %v2103 = vsub.f32 %v2000, %v2098
        %v2104 = vsub.f32 %v2001, %v2098
        %v2105 = vsub.f32 %v2002, %v2098
        %v2106 = vsub.f32 %v2003, %v2098
        %v2107 = vsub.f32 %v2004, %v2098
        %v2108 = vsub.f32 %v2005, %v2098
        %v2109 = vsub.f32 %v2006, %v2098
        %v2110 = vsub.f32 %v2007, %v2098
        %v2111 = vsub.f32 %v2008, %v2098
        %v2112 = vsub.f32 %v2009, %v2098
        %v2113 = vsub.f32 %v2010, %v2098
        %v2114 = vsub.f32 %v2011, %v2098
        %v2115 = vsub.f32 %v2012, %v2098
        %v2116 = vsub.f32 %v2013, %v2098
        %v2117 = vsub.f32 %v2014, %v2098
        %v2118 = vsub.f32 %v2015, %v2098
        %v2119 = vsub.f32 %v2016, %v2098
        %v2120 = vsub.f32 %v2017, %v2098
        %v2121 = vsub.f32 %v2018, %v2098
        %v2122 = vsub.f32 %v2019, %v2098
        %v2123 = vsub.f32 %v2020, %v2098
        %v2124 = vsub.f32 %v2021, %v2098
        %v2125 = vsub.f32 %v2022, %v2098
        %v2126 = vsub.f32 %v2023, %v2098
        %v2127 = vsub.f32 %v2024, %v2098
        %v2128 = vsub.f32 %v2025, %v2098
        %v2129 = vsub.f32 %v2026, %v2098
        %v2130 = vsub.f32 %v2027, %v2098
        %v2131 = vmul.f32 %v2099, %v2099
        %v2132 = vmul.f32 %v2100, %v2100
        %v2133 = vmul.f32 %v2101, %v2101
        %v2134 = vmul.f32 %v2102, %v2102
        %v2135 = vmul.f32 %v2103, %v2103
        %v2136 = vmul.f32 %v2104, %v2104
        %v2137 = vmul.f32 %v2105, %v2105
        %v2138 = vmul.f32 %v2106, %v2106
        %v2139 = vmul.f32 %v2107, %v2107
        %v2140 = vmul.f32 %v2108, %v2108
        %v2141 = vmul.f32 %v2109, %v2109
        %v2142 = vmul.f32 %v2110, %v2110
        %v2143 = vmul.f32 %v2111, %v2111
        %v2144 = vmul.f32 %v2112, %v2112
        %v2145 = vmul.f32 %v2113, %v2113
        %v2146 = vmul.f32 %v2114, %v2114
        %v2147 = vmul.f32 %v2115, %v2115
        %v2148 = vmul.f32 %v2116, %v2116
        %v2149 = vmul.f32 %v2117, %v2117
        %v2150 = vmul.f32 %v2118, %v2118
        %v2151 = vmul.f32 %v2119, %v2119
        %v2152 = vmul.f32 %v2120, %v2120
        %v2153 = vmul.f32 %v2121, %v2121
        %v2154 = vmul.f32 %v2122, %v2122
        %v2155 = vmul.f32 %v2123, %v2123
        %v2156 = vmul.f32 %v2124, %v2124
        %v2157 = vmul.f32 %v2125, %v2125
        %v2158 = vmul.f32 %v2126, %v2126
        %v2159 = vmul.f32 %v2127, %v2127
        %v2160 = vmul.f32 %v2128, %v2128
        %v2161 = vmul.f32 %v2129, %v2129
        %v2162 = vmul.f32 %v2130, %v2130
        %v2163 = vsel %vm799, %v2131, 0.0
        %v2164 = vsel %vm799, %v2132, 0.0
        %v2165 = vadd.f32 %v2163, %v2164
        %v2166 = vsel %vm799, %v2133, 0.0
        %v2167 = vadd.f32 %v2165, %v2166
        %v2168 = vsel %vm799, %v2134, 0.0
        %v2169 = vadd.f32 %v2167, %v2168
        %v2170 = vsel %vm799, %v2135, 0.0
        %v2171 = vadd.f32 %v2169, %v2170
        %v2172 = vsel %vm799, %v2136, 0.0
        %v2173 = vadd.f32 %v2171, %v2172
        %v2174 = vsel %vm799, %v2137, 0.0
        %v2175 = vadd.f32 %v2173, %v2174
        %v2176 = vsel %vm799, %v2138, 0.0
        %v2177 = vadd.f32 %v2175, %v2176
        %v2178 = vsel %vm799, %v2139, 0.0
        %v2179 = vadd.f32 %v2177, %v2178
        %v2180 = vsel %vm799, %v2140, 0.0
        %v2181 = vadd.f32 %v2179, %v2180
        %v2182 = vsel %vm799, %v2141, 0.0
        %v2183 = vadd.f32 %v2181, %v2182
        %v2184 = vsel %vm799, %v2142, 0.0
        %v2185 = vadd.f32 %v2183, %v2184
        %v2186 = vsel %vm799, %v2143, 0.0
        %v2187 = vadd.f32 %v2185, %v2186
        %v2188 = vsel %vm799, %v2144, 0.0
        %v2189 = vadd.f32 %v2187, %v2188
        %v2190 = vsel %vm799, %v2145, 0.0
        %v2191 = vadd.f32 %v2189, %v2190
        %v2192 = vsel %vm799, %v2146, 0.0
        %v2193 = vadd.f32 %v2191, %v2192
        %v2194 = vsel %vm799, %v2147, 0.0
        %v2195 = vadd.f32 %v2193, %v2194
        %v2196 = vsel %vm799, %v2148, 0.0
        %v2197 = vadd.f32 %v2195, %v2196
        %v2198 = vsel %vm799, %v2149, 0.0
        %v2199 = vadd.f32 %v2197, %v2198
        %v2200 = vsel %vm799, %v2150, 0.0
        %v2201 = vadd.f32 %v2199, %v2200
        %v2202 = vsel %vm799, %v2151, 0.0
        %v2203 = vadd.f32 %v2201, %v2202
        %v2204 = vsel %vm799, %v2152, 0.0
        %v2205 = vadd.f32 %v2203, %v2204
        %v2206 = vsel %vm799, %v2153, 0.0
        %v2207 = vadd.f32 %v2205, %v2206
        %v2208 = vsel %vm799, %v2154, 0.0
        %v2209 = vadd.f32 %v2207, %v2208
        %v2210 = vsel %vm799, %v2155, 0.0
        %v2211 = vadd.f32 %v2209, %v2210
        %v2212 = vsel %vm799, %v2156, 0.0
        %v2213 = vadd.f32 %v2211, %v2212
        %v2214 = vsel %vm799, %v2157, 0.0
        %v2215 = vadd.f32 %v2213, %v2214
        %v2216 = vsel %vm799, %v2158, 0.0
        %v2217 = vadd.f32 %v2215, %v2216
        %v2218 = vsel %vm799, %v2159, 0.0
        %v2219 = vadd.f32 %v2217, %v2218
        %v2220 = vsel %vm799, %v2160, 0.0
        %v2221 = vadd.f32 %v2219, %v2220
        %v2222 = vsel %vm799, %v2161, 0.0
        %v2223 = vadd.f32 %v2221, %v2222
        %v2224 = vsel %vm799, %v2162, 0.0
        %v2225 = vadd.f32 %v2223, %v2224
        %v2226 = vrot.slane %v2225, 4
        %v2227 = vadd.f32 %v2225, %v2226
        %v2228 = vrot.slane %v2227, 2
        %v2229 = vadd.f32 %v2227, %v2228
        %v2230 = vrot.slane %v2229, 1
        %v2231 = vadd.f32 %v2229, %v2230
        %v2232 = vmul.f32 %v2231, %v2097
        %v2233 = vadd.f32 %v2232, 1e-05
        %v2234 = vrsqrt.pop %v2233
        %v2235 = vmul.f32 %v2099, %v2234
        %v2236 = vmul.f32 %v2100, %v2234
        %v2237 = vmul.f32 %v2101, %v2234
        %v2238 = vmul.f32 %v2102, %v2234
        %v2239 = vmul.f32 %v2103, %v2234
        %v2240 = vmul.f32 %v2104, %v2234
        %v2241 = vmul.f32 %v2105, %v2234
        %v2242 = vmul.f32 %v2106, %v2234
        %v2243 = vmul.f32 %v2107, %v2234
        %v2244 = vmul.f32 %v2108, %v2234
        %v2245 = vmul.f32 %v2109, %v2234
        %v2246 = vmul.f32 %v2110, %v2234
        %v2247 = vmul.f32 %v2111, %v2234
        %v2248 = vmul.f32 %v2112, %v2234
        %v2249 = vmul.f32 %v2113, %v2234
        %v2250 = vmul.f32 %v2114, %v2234
        %v2251 = vmul.f32 %v2115, %v2234
        %v2252 = vmul.f32 %v2116, %v2234
        %v2253 = vmul.f32 %v2117, %v2234
        %v2254 = vmul.f32 %v2118, %v2234
        %v2255 = vmul.f32 %v2119, %v2234
        %v2256 = vmul.f32 %v2120, %v2234
        %v2257 = vmul.f32 %v2121, %v2234
        %v2258 = vmul.f32 %v2122, %v2234
        %v2259 = vmul.f32 %v2123, %v2234
        %v2260 = vmul.f32 %v2124, %v2234
        %v2261 = vmul.f32 %v2125, %v2234
        %v2262 = vmul.f32 %v2126, %v2234
        %v2263 = vmul.f32 %v2127, %v2234
        %v2264 = vmul.f32 %v2128, %v2234
        %v2265 = vmul.f32 %v2129, %v2234
        %v2266 = vmul.f32 %v2130, %v2234
        %v2267 = vld [vmem:[%s3] sm:$0x1]
        %v2269 = vlaneseq
        %v2270 = vshrl.u32 %v2269, 7
        %v2271 = vsub.s32 0, %v2270
        %v2272 = vrot.slane %v2267, %v2271
        %v2274 = vmul.f32 %v2235, %v2272
        %v2275 = vmul.f32 %v2236, %v2272
        %v2276 = vmul.f32 %v2237, %v2272
        %v2277 = vmul.f32 %v2238, %v2272
        %v2278 = vmul.f32 %v2239, %v2272
        %v2279 = vmul.f32 %v2240, %v2272
        %v2280 = vmul.f32 %v2241, %v2272
        %v2281 = vmul.f32 %v2242, %v2272
        %v2282 = vmul.f32 %v2243, %v2272
        %v2283 = vmul.f32 %v2244, %v2272
        %v2284 = vmul.f32 %v2245, %v2272
        %v2285 = vmul.f32 %v2246, %v2272
        %v2286 = vmul.f32 %v2247, %v2272
        %v2287 = vmul.f32 %v2248, %v2272
        %v2288 = vmul.f32 %v2249, %v2272
        %v2289 = vmul.f32 %v2250, %v2272
        %v2290 = vmul.f32 %v2251, %v2272
        %v2291 = vmul.f32 %v2252, %v2272
        %v2292 = vmul.f32 %v2253, %v2272
        %v2293 = vmul.f32 %v2254, %v2272
        %v2294 = vmul.f32 %v2255, %v2272
        %v2295 = vmul.f32 %v2256, %v2272
        %v2296 = vmul.f32 %v2257, %v2272
        %v2297 = vmul.f32 %v2258, %v2272
        %v2298 = vmul.f32 %v2259, %v2272
        %v2299 = vmul.f32 %v2260, %v2272
        %v2300 = vmul.f32 %v2261, %v2272
        %v2301 = vmul.f32 %v2262, %v2272
        %v2302 = vmul.f32 %v2263, %v2272
        %v2303 = vmul.f32 %v2264, %v2272
        %v2304 = vmul.f32 %v2265, %v2272
        %v2305 = vmul.f32 %v2266, %v2272
        %v2306 = vld [vmem:[%s4] sm:$0x1]
        %v2308 = vlaneseq
        %v2309 = vshrl.u32 %v2308, 7
        %v2310 = vsub.s32 0, %v2309
        %v2311 = vrot.slane %v2306, %v2310
        %v2313 = vadd.f32 %v2274, %v2311
        %v2314 = vadd.f32 %v2275, %v2311
        %v2315 = vadd.f32 %v2276, %v2311
        %v2316 = vadd.f32 %v2277, %v2311
        %v2317 = vadd.f32 %v2278, %v2311
        %v2318 = vadd.f32 %v2279, %v2311
        %v2319 = vadd.f32 %v2280, %v2311
        %v2320 = vadd.f32 %v2281, %v2311
        %v2321 = vadd.f32 %v2282, %v2311
        %v2322 = vadd.f32 %v2283, %v2311
        %v2323 = vadd.f32 %v2284, %v2311
        %v2324 = vadd.f32 %v2285, %v2311
        %v2325 = vadd.f32 %v2286, %v2311
        %v2326 = vadd.f32 %v2287, %v2311
        %v2327 = vadd.f32 %v2288, %v2311
        %v2328 = vadd.f32 %v2289, %v2311
        %v2329 = vadd.f32 %v2290, %v2311
        %v2330 = vadd.f32 %v2291, %v2311
        %v2331 = vadd.f32 %v2292, %v2311
        %v2332 = vadd.f32 %v2293, %v2311
        %v2333 = vadd.f32 %v2294, %v2311
        %v2334 = vadd.f32 %v2295, %v2311
        %v2335 = vadd.f32 %v2296, %v2311
        %v2336 = vadd.f32 %v2297, %v2311
        %v2337 = vadd.f32 %v2298, %v2311
        %v2338 = vadd.f32 %v2299, %v2311
        %v2339 = vadd.f32 %v2300, %v2311
        %v2340 = vadd.f32 %v2301, %v2311
        %v2341 = vadd.f32 %v2302, %v2311
        %v2342 = vadd.f32 %v2303, %v2311
        %v2343 = vadd.f32 %v2304, %v2311
        %v2344 = vadd.f32 %v2305, %v2311
        %v2345 = vmax.f32 %v2313, 0.0
        %v2346 = vmax.f32 %v2314, 0.0
        %v2347 = vmax.f32 %v2315, 0.0
        %v2348 = vmax.f32 %v2316, 0.0
        %v2349 = vmax.f32 %v2317, 0.0
        %v2350 = vmax.f32 %v2318, 0.0
        %v2351 = vmax.f32 %v2319, 0.0
        %v2352 = vmax.f32 %v2320, 0.0
        %v2353 = vmax.f32 %v2321, 0.0
        %v2354 = vmax.f32 %v2322, 0.0
        %v2355 = vmax.f32 %v2323, 0.0
        %v2356 = vmax.f32 %v2324, 0.0
        %v2357 = vmax.f32 %v2325, 0.0
        %v2358 = vmax.f32 %v2326, 0.0
        %v2359 = vmax.f32 %v2327, 0.0
        %v2360 = vmax.f32 %v2328, 0.0
        %v2361 = vmax.f32 %v2329, 0.0
        %v2362 = vmax.f32 %v2330, 0.0
        %v2363 = vmax.f32 %v2331, 0.0
        %v2364 = vmax.f32 %v2332, 0.0
        %v2365 = vmax.f32 %v2333, 0.0
        %v2366 = vmax.f32 %v2334, 0.0
        %v2367 = vmax.f32 %v2335, 0.0
        %v2368 = vmax.f32 %v2336, 0.0
        %v2369 = vmax.f32 %v2337, 0.0
        %v2370 = vmax.f32 %v2338, 0.0
        %v2371 = vmax.f32 %v2339, 0.0
        %v2372 = vmax.f32 %v2340, 0.0
        %v2373 = vmax.f32 %v2341, 0.0
        %v2374 = vmax.f32 %v2342, 0.0
        %v2375 = vmax.f32 %v2343, 0.0
        %v2376 = vmax.f32 %v2344, 0.0
        %v2393 = vrot.slane %v2345, 1
        %v2394 = vrot.slane %v2347, 1
        %v2395 = vrot.slane %v2349, 1
        %v2396 = vrot.slane %v2351, 1
        %v2397 = vrot.slane %v2353, 1
        %v2398 = vrot.slane %v2355, 1
        %v2399 = vrot.slane %v2357, 1
        %v2400 = vrot.slane %v2359, 1
        %v2401 = vrot.slane %v2361, 1
        %v2402 = vrot.slane %v2363, 1
        %v2403 = vrot.slane %v2365, 1
        %v2404 = vrot.slane %v2367, 1
        %v2405 = vrot.slane %v2369, 1
        %v2406 = vrot.slane %v2371, 1
        %v2407 = vrot.slane %v2373, 1
        %v2408 = vrot.slane %v2375, 1
        %v2441 = vrot.slane %v2345, 7
        %v2442 = vrot.slane %v2346, 7
        %v2443 = vsel %vm450, %v2441, %v2442
        %v2444 = vrot.slane %v2347, 7
        %v2445 = vrot.slane %v2348, 7
        %v2446 = vsel %vm450, %v2444, %v2445
        %v2447 = vrot.slane %v2349, 7
        %v2448 = vrot.slane %v2350, 7
        %v2449 = vsel %vm450, %v2447, %v2448
        %v2450 = vrot.slane %v2351, 7
        %v2451 = vrot.slane %v2352, 7
        %v2452 = vsel %vm450, %v2450, %v2451
        %v2453 = vrot.slane %v2353, 7
        %v2454 = vrot.slane %v2354, 7
        %v2455 = vsel %vm450, %v2453, %v2454
        %v2456 = vrot.slane %v2355, 7
        %v2457 = vrot.slane %v2356, 7
        %v2458 = vsel %vm450, %v2456, %v2457
        %v2459 = vrot.slane %v2357, 7
        %v2460 = vrot.slane %v2358, 7
        %v2461 = vsel %vm450, %v2459, %v2460
        %v2462 = vrot.slane %v2359, 7
        %v2463 = vrot.slane %v2360, 7
        %v2464 = vsel %vm450, %v2462, %v2463
        %v2465 = vrot.slane %v2361, 7
        %v2466 = vrot.slane %v2362, 7
        %v2467 = vsel %vm450, %v2465, %v2466
        %v2468 = vrot.slane %v2363, 7
        %v2469 = vrot.slane %v2364, 7
        %v2470 = vsel %vm450, %v2468, %v2469
        %v2471 = vrot.slane %v2365, 7
        %v2472 = vrot.slane %v2366, 7
        %v2473 = vsel %vm450, %v2471, %v2472
        %v2474 = vrot.slane %v2367, 7
        %v2475 = vrot.slane %v2368, 7
        %v2476 = vsel %vm450, %v2474, %v2475
        %v2477 = vrot.slane %v2369, 7
        %v2478 = vrot.slane %v2370, 7
        %v2479 = vsel %vm450, %v2477, %v2478
        %v2480 = vrot.slane %v2371, 7
        %v2481 = vrot.slane %v2372, 7
        %v2482 = vsel %vm450, %v2480, %v2481
        %v2483 = vrot.slane %v2373, 7
        %v2484 = vrot.slane %v2374, 7
        %v2485 = vsel %vm450, %v2483, %v2484
        %v2486 = vrot.slane %v2375, 7
        %v2487 = vrot.slane %v2376, 7
        %v2488 = vsel %vm450, %v2486, %v2487
        %v2537 = vrot.slane %v2346, 5
        %v2538 = vrot.slane %v2348, 5
        %v2539 = vrot.slane %v2350, 5
        %v2540 = vrot.slane %v2352, 5
        %v2541 = vrot.slane %v2354, 5
        %v2542 = vrot.slane %v2356, 5
        %v2543 = vrot.slane %v2358, 5
        %v2544 = vrot.slane %v2360, 5
        %v2545 = vrot.slane %v2362, 5
        %v2546 = vrot.slane %v2364, 5
        %v2547 = vrot.slane %v2366, 5
        %v2548 = vrot.slane %v2368, 5
        %v2549 = vrot.slane %v2370, 5
        %v2550 = vrot.slane %v2372, 5
        %v2551 = vrot.slane %v2374, 5
        %v2552 = vrot.slane %v2376, 5
        %v2569 = vsel %vm450, %v2393, %v2441
        %v2570 = vsel %vm450, %v2394, %v2444
        %v2571 = vsel %vm450, %v2395, %v2447
        %v2572 = vsel %vm450, %v2396, %v2450
        %v2573 = vsel %vm450, %v2397, %v2453
        %v2574 = vsel %vm450, %v2398, %v2456
        %v2575 = vsel %vm450, %v2399, %v2459
        %v2576 = vsel %vm450, %v2400, %v2462
        %v2577 = vsel %vm450, %v2401, %v2465
        %v2578 = vsel %vm450, %v2402, %v2468
        %v2579 = vsel %vm450, %v2403, %v2471
        %v2580 = vsel %vm450, %v2404, %v2474
        %v2581 = vsel %vm450, %v2405, %v2477
        %v2582 = vsel %vm450, %v2406, %v2480
        %v2583 = vsel %vm450, %v2407, %v2483
        %v2584 = vsel %vm450, %v2408, %v2486
        %v2585 = vsel %vm450, %v2442, %v2537
        %v2586 = vsel %vm450, %v2445, %v2538
        %v2587 = vsel %vm450, %v2448, %v2539
        %v2588 = vsel %vm450, %v2451, %v2540
        %v2589 = vsel %vm450, %v2454, %v2541
        %v2590 = vsel %vm450, %v2457, %v2542
        %v2591 = vsel %vm450, %v2460, %v2543
        %v2592 = vsel %vm450, %v2463, %v2544
        %v2593 = vsel %vm450, %v2466, %v2545
        %v2594 = vsel %vm450, %v2469, %v2546
        %v2595 = vsel %vm450, %v2472, %v2547
        %v2596 = vsel %vm450, %v2475, %v2548
        %v2597 = vsel %vm450, %v2478, %v2549
        %v2598 = vsel %vm450, %v2481, %v2550
        %v2599 = vsel %vm450, %v2484, %v2551
        %v2600 = vsel %vm450, %v2487, %v2552
        %v2601 = vpack.c.bf16 %v2446, %v2570
        %v2602 = vpack.c.bf16 %v2586, %v2586
        %v2603 = vpack.c.bf16 %v2443, %v2569
        %v2604 = vpack.c.bf16 %v2585, %v2585
        %v2605 = vpack.c.bf16 %v2449, %v2571
        %v2606 = vpack.c.bf16 %v2587, %v2587
        %v2607 = vpack.c.bf16 %v2452, %v2572
        %v2608 = vpack.c.bf16 %v2588, %v2588
        %v2609 = vpack.c.bf16 %v2455, %v2573
        %v2610 = vpack.c.bf16 %v2589, %v2589
        %v2611 = vpack.c.bf16 %v2458, %v2574
        %v2612 = vpack.c.bf16 %v2590, %v2590
        %v2613 = vpack.c.bf16 %v2461, %v2575
        %v2614 = vpack.c.bf16 %v2591, %v2591
        %v2615 = vpack.c.bf16 %v2464, %v2576
        %v2616 = vpack.c.bf16 %v2592, %v2592
        %v2617 = vpack.c.bf16 %v2467, %v2577
        %v2618 = vpack.c.bf16 %v2593, %v2593
        %v2619 = vpack.c.bf16 %v2470, %v2578
        %v2620 = vpack.c.bf16 %v2594, %v2594
        %v2621 = vpack.c.bf16 %v2473, %v2579
        %v2622 = vpack.c.bf16 %v2595, %v2595
        %v2623 = vpack.c.bf16 %v2476, %v2580
        %v2624 = vpack.c.bf16 %v2596, %v2596
        %v2625 = vpack.c.bf16 %v2479, %v2581
        %v2626 = vpack.c.bf16 %v2597, %v2597
        %v2627 = vpack.c.bf16 %v2482, %v2582
        %v2628 = vpack.c.bf16 %v2598, %v2598
        %v2629 = vpack.c.bf16 %v2485, %v2583
        %v2630 = vpack.c.bf16 %v2599, %v2599
        %v2631 = vpack.c.bf16 %v2488, %v2584
        %v2632 = vpack.c.bf16 %v2600, %v2600
        %2665 = vrot.lane.b32.xlu0 %v2603, 32
        %v2666 = vpop.permute.xlu0 %2665
        %2667 = vrot.lane.b32.xlu0 %v2604, 32
        %v2668 = vpop.permute.xlu0 %2667
        %2669 = vrot.lane.b32.xlu0 %v2601, 32
        %v2670 = vpop.permute.xlu0 %2669
        %2671 = vrot.lane.b32.xlu0 %v2602, 32
        %v2672 = vpop.permute.xlu0 %2671
        %2673 = vrot.lane.b32.xlu0 %v2605, 32
        %v2674 = vpop.permute.xlu0 %2673
        %2675 = vrot.lane.b32.xlu0 %v2606, 32
        %v2676 = vpop.permute.xlu0 %2675
        %2677 = vrot.lane.b32.xlu0 %v2607, 32
        %v2678 = vpop.permute.xlu0 %2677
        %2679 = vrot.lane.b32.xlu0 %v2608, 32
        %v2680 = vpop.permute.xlu0 %2679
        %2681 = vrot.lane.b32.xlu0 %v2609, 32
        %v2682 = vpop.permute.xlu0 %2681
        %2683 = vrot.lane.b32.xlu0 %v2610, 32
        %v2684 = vpop.permute.xlu0 %2683
        %2685 = vrot.lane.b32.xlu0 %v2611, 32
        %v2686 = vpop.permute.xlu0 %2685
        %2687 = vrot.lane.b32.xlu0 %v2612, 32
        %v2688 = vpop.permute.xlu0 %2687
        %2689 = vrot.lane.b32.xlu0 %v2613, 32
        %v2690 = vpop.permute.xlu0 %2689
        %2691 = vrot.lane.b32.xlu0 %v2614, 32
        %v2692 = vpop.permute.xlu0 %2691
        %2693 = vrot.lane.b32.xlu0 %v2615, 32
        %v2694 = vpop.permute.xlu0 %2693
        %2695 = vrot.lane.b32.xlu0 %v2616, 32
        %v2696 = vpop.permute.xlu0 %2695
        %2697 = vrot.lane.b32.xlu0 %v2617, 32
        %v2698 = vpop.permute.xlu0 %2697
        %2699 = vrot.lane.b32.xlu0 %v2618, 32
        %v2700 = vpop.permute.xlu0 %2699
        %2701 = vrot.lane.b32.xlu0 %v2619, 32
        %v2702 = vpop.permute.xlu0 %2701
        %2703 = vrot.lane.b32.xlu0 %v2620, 32
        %v2704 = vpop.permute.xlu0 %2703
        %2705 = vrot.lane.b32.xlu0 %v2621, 32
        %v2706 = vpop.permute.xlu0 %2705
        %2707 = vrot.lane.b32.xlu0 %v2622, 32
        %v2708 = vpop.permute.xlu0 %2707
        %2709 = vrot.lane.b32.xlu0 %v2623, 32
        %v2710 = vpop.permute.xlu0 %2709
        %2711 = vrot.lane.b32.xlu0 %v2624, 32
        %v2712 = vpop.permute.xlu0 %2711
        %2713 = vrot.lane.b32.xlu0 %v2625, 32
        %v2714 = vpop.permute.xlu0 %2713
        %2715 = vrot.lane.b32.xlu0 %v2626, 32
        %v2716 = vpop.permute.xlu0 %2715
        %2717 = vrot.lane.b32.xlu0 %v2627, 32
        %v2718 = vpop.permute.xlu0 %2717
        %2719 = vrot.lane.b32.xlu0 %v2628, 32
        %v2720 = vpop.permute.xlu0 %2719
        %2721 = vrot.lane.b32.xlu0 %v2629, 32
        %v2722 = vpop.permute.xlu0 %2721
        %2723 = vrot.lane.b32.xlu0 %v2630, 32
        %v2724 = vpop.permute.xlu0 %2723
        %2725 = vrot.lane.b32.xlu0 %v2631, 32
        %v2726 = vpop.permute.xlu0 %2725
        %2727 = vrot.lane.b32.xlu0 %v2632, 32
        %v2728 = vpop.permute.xlu0 %2727
        %2729 = vrot.lane.b32.xlu0 %v2601, 64
        %v2730 = vpop.permute.xlu0 %2729
        %2731 = vrot.lane.b32.xlu0 %v2602, 64
        %v2732 = vpop.permute.xlu0 %2731
        %2733 = vrot.lane.b32.xlu0 %v2605, 64
        %v2734 = vpop.permute.xlu0 %2733
        %2735 = vrot.lane.b32.xlu0 %v2606, 64
        %v2736 = vpop.permute.xlu0 %2735
        %2737 = vrot.lane.b32.xlu0 %v2607, 64
        %v2738 = vpop.permute.xlu0 %2737
        %2739 = vrot.lane.b32.xlu0 %v2608, 64
        %v2740 = vpop.permute.xlu0 %2739
        %2741 = vrot.lane.b32.xlu0 %v2609, 64
        %v2742 = vpop.permute.xlu0 %2741
        %2743 = vrot.lane.b32.xlu0 %v2610, 64
        %v2744 = vpop.permute.xlu0 %2743
        %2745 = vrot.lane.b32.xlu0 %v2611, 64
        %v2746 = vpop.permute.xlu0 %2745
        %2747 = vrot.lane.b32.xlu0 %v2612, 64
        %v2748 = vpop.permute.xlu0 %2747
        %2749 = vrot.lane.b32.xlu0 %v2613, 64
        %v2750 = vpop.permute.xlu0 %2749
        %2751 = vrot.lane.b32.xlu0 %v2614, 64
        %v2752 = vpop.permute.xlu0 %2751
        %2753 = vrot.lane.b32.xlu0 %v2615, 64
        %v2754 = vpop.permute.xlu0 %2753
        %2755 = vrot.lane.b32.xlu0 %v2616, 64
        %v2756 = vpop.permute.xlu0 %2755
        %2757 = vrot.lane.b32.xlu0 %v2617, 64
        %v2758 = vpop.permute.xlu0 %2757
        %2759 = vrot.lane.b32.xlu0 %v2618, 64
        %v2760 = vpop.permute.xlu0 %2759
        %2761 = vrot.lane.b32.xlu0 %v2619, 64
        %v2762 = vpop.permute.xlu0 %2761
        %2763 = vrot.lane.b32.xlu0 %v2620, 64
        %v2764 = vpop.permute.xlu0 %2763
        %2765 = vrot.lane.b32.xlu0 %v2621, 64
        %v2766 = vpop.permute.xlu0 %2765
        %2767 = vrot.lane.b32.xlu0 %v2622, 64
        %v2768 = vpop.permute.xlu0 %2767
        %2769 = vrot.lane.b32.xlu0 %v2623, 64
        %v2770 = vpop.permute.xlu0 %2769
        %2771 = vrot.lane.b32.xlu0 %v2624, 64
        %v2772 = vpop.permute.xlu0 %2771
        %2773 = vrot.lane.b32.xlu0 %v2625, 64
        %v2774 = vpop.permute.xlu0 %2773
        %2775 = vrot.lane.b32.xlu0 %v2626, 64
        %v2776 = vpop.permute.xlu0 %2775
        %2777 = vrot.lane.b32.xlu0 %v2627, 64
        %v2778 = vpop.permute.xlu0 %2777
        %2779 = vrot.lane.b32.xlu0 %v2628, 64
        %v2780 = vpop.permute.xlu0 %2779
        %2781 = vrot.lane.b32.xlu0 %v2629, 64
        %v2782 = vpop.permute.xlu0 %2781
        %2783 = vrot.lane.b32.xlu0 %v2630, 64
        %v2784 = vpop.permute.xlu0 %2783
        %2785 = vrot.lane.b32.xlu0 %v2631, 64
        %v2786 = vpop.permute.xlu0 %2785
        %2787 = vrot.lane.b32.xlu0 %v2632, 64
        %v2788 = vpop.permute.xlu0 %2787
        %v2791 = vsel %vm799, %v2601, %v2666
        %v2794 = vsel %vm799, %v2602, %v2668
        %v2797 = vsel %vm799, %v2603, %v2670
        %v2800 = vsel %vm799, %v2604, %v2672
        %v2802 = vsel %vm799, %v2601, %v2674
        %v2804 = vsel %vm799, %v2602, %v2676
        %v2807 = vsel %vm799, %v2605, %v2678
        %v2810 = vsel %vm799, %v2606, %v2680
        %v2813 = vsel %vm799, %v2607, %v2682
        %v2816 = vsel %vm799, %v2608, %v2684
        %v2819 = vsel %vm799, %v2609, %v2686
        %v2822 = vsel %vm799, %v2610, %v2688
        %v2825 = vsel %vm799, %v2611, %v2690
        %v2828 = vsel %vm799, %v2612, %v2692
        %v2831 = vsel %vm799, %v2613, %v2694
        %v2834 = vsel %vm799, %v2614, %v2696
        %v2837 = vsel %vm799, %v2615, %v2698
        %v2840 = vsel %vm799, %v2616, %v2700
        %v2843 = vsel %vm799, %v2617, %v2702
        %v2846 = vsel %vm799, %v2618, %v2704
        %v2849 = vsel %vm799, %v2619, %v2706
        %v2852 = vsel %vm799, %v2620, %v2708
        %v2855 = vsel %vm799, %v2621, %v2710
        %v2858 = vsel %vm799, %v2622, %v2712
        %v2861 = vsel %vm799, %v2623, %v2714
        %v2864 = vsel %vm799, %v2624, %v2716
        %v2867 = vsel %vm799, %v2625, %v2718
        %v2870 = vsel %vm799, %v2626, %v2720
        %v2873 = vsel %vm799, %v2627, %v2722
        %v2876 = vsel %vm799, %v2628, %v2724
        %v2879 = vsel %vm799, %v2629, %v2726
        %v2882 = vsel %vm799, %v2630, %v2728
        %v2884 = vsel %vm894, %v2791, %v2730
        %v2886 = vsel %vm894, %v2794, %v2732
        %v2888 = vsel %vm894, %v2797, %v2734
        %v2890 = vsel %vm894, %v2800, %v2736
        %v2892 = vsel %vm894, %v2802, %v2738
        %v2894 = vsel %vm894, %v2804, %v2740
        %v2896 = vsel %vm894, %v2807, %v2742
        %v2898 = vsel %vm894, %v2810, %v2744
        %v2900 = vsel %vm894, %v2813, %v2746
        %v2902 = vsel %vm894, %v2816, %v2748
        %v2904 = vsel %vm894, %v2819, %v2750
        %v2906 = vsel %vm894, %v2822, %v2752
        %v2908 = vsel %vm894, %v2825, %v2754
        %v2910 = vsel %vm894, %v2828, %v2756
        %v2912 = vsel %vm894, %v2831, %v2758
        %v2914 = vsel %vm894, %v2834, %v2760
        %v2916 = vsel %vm894, %v2837, %v2762
        %v2918 = vsel %vm894, %v2840, %v2764
        %v2920 = vsel %vm894, %v2843, %v2766
        %v2922 = vsel %vm894, %v2846, %v2768
        %v2924 = vsel %vm894, %v2849, %v2770
        %v2926 = vsel %vm894, %v2852, %v2772
        %v2928 = vsel %vm894, %v2855, %v2774
        %v2930 = vsel %vm894, %v2858, %v2776
        %v2932 = vsel %vm894, %v2861, %v2778
        %v2934 = vsel %vm894, %v2864, %v2780
        %v2936 = vsel %vm894, %v2867, %v2782
        %v2938 = vsel %vm894, %v2870, %v2784
        %v2940 = vsel %vm894, %v2873, %v2786
        %v2942 = vsel %vm894, %v2876, %v2788
        %v2943 = vsel %vm894, %v2879, %v2782
        %v2944 = vsel %vm894, %v2882, %v2784
        %v2945 = vld [vmem:[%s5] sm:$0xf]
        %v2946 = vld [vmem:[%s5 + $0x4] sm:$0xf]
        %v2947 = vld [vmem:[%s5 + $0x8] sm:$0xf]
        %v2948 = vld [vmem:[%s5 + $0xc] sm:$0xf]
        %v2949 = vld [vmem:[%s5 + $0x10] sm:$0xf]
        %v2950 = vld [vmem:[%s5 + $0x14] sm:$0xf]
        %v2951 = vld [vmem:[%s5 + $0x18] sm:$0xf]
        %v2952 = vld [vmem:[%s5 + $0x1c] sm:$0xf]
        %v2953 = vld [vmem:[%s5 + $0x20] sm:$0xf]
        %v2954 = vld [vmem:[%s5 + $0x24] sm:$0xf]
        %v2955 = vld [vmem:[%s5 + $0x28] sm:$0xf]
        %v2956 = vld [vmem:[%s5 + $0x2c] sm:$0xf]
        %v2957 = vshrl.u32 %v2884, 16
        %v2959 = vshll.u32 %v2884, 16
        %v2961 = vrot.slane %v2959, 1
        %v2962 = vor.u32 %v2957, %v2961
        %v2963 = vshll.u32 %v2886, 16
        %v2965 = vrot.slane %v2963, 1
        %v2966 = vsel %vm969, %v2962, %v2965
        %v2967 = vshrl.u32 %v2888, 16
        %v2969 = vshll.u32 %v2888, 16
        %v2971 = vrot.slane %v2969, 1
        %v2972 = vor.u32 %v2967, %v2971
        %v2973 = vshll.u32 %v2890, 16
        %v2975 = vrot.slane %v2973, 1
        %v2976 = vsel %vm969, %v2972, %v2975
        %v2977 = vshrl.u32 %v2892, 16
        %v2979 = vshll.u32 %v2892, 16
        %v2981 = vrot.slane %v2979, 1
        %v2982 = vor.u32 %v2977, %v2981
        %v2983 = vshll.u32 %v2894, 16
        %v2985 = vrot.slane %v2983, 1
        %v2986 = vsel %vm969, %v2982, %v2985
        %v2987 = vshrl.u32 %v2896, 16
        %v2989 = vshll.u32 %v2896, 16
        %v2991 = vrot.slane %v2989, 1
        %v2992 = vor.u32 %v2987, %v2991
        %v2993 = vshll.u32 %v2898, 16
        %v2995 = vrot.slane %v2993, 1
        %v2996 = vsel %vm969, %v2992, %v2995
        %v2997 = vshrl.u32 %v2900, 16
        %v2999 = vshll.u32 %v2900, 16
        %v3001 = vrot.slane %v2999, 1
        %v3002 = vor.u32 %v2997, %v3001
        %v3003 = vshll.u32 %v2902, 16
        %v3005 = vrot.slane %v3003, 1
        %v3006 = vsel %vm969, %v3002, %v3005
        %v3007 = vshrl.u32 %v2904, 16
        %v3009 = vshll.u32 %v2904, 16
        %v3011 = vrot.slane %v3009, 1
        %v3012 = vor.u32 %v3007, %v3011
        %v3013 = vshll.u32 %v2906, 16
        %v3015 = vrot.slane %v3013, 1
        %v3016 = vsel %vm969, %v3012, %v3015
        %v3017 = vshrl.u32 %v2908, 16
        %v3019 = vshll.u32 %v2908, 16
        %v3021 = vrot.slane %v3019, 1
        %v3022 = vor.u32 %v3017, %v3021
        %v3023 = vshll.u32 %v2910, 16
        %v3025 = vrot.slane %v3023, 1
        %v3026 = vsel %vm969, %v3022, %v3025
        %v3027 = vshrl.u32 %v2912, 16
        %v3029 = vshll.u32 %v2912, 16
        %v3031 = vrot.slane %v3029, 1
        %v3032 = vor.u32 %v3027, %v3031
        %v3033 = vshll.u32 %v2914, 16
        %v3035 = vrot.slane %v3033, 1
        %v3036 = vsel %vm969, %v3032, %v3035
        %v3037 = vshrl.u32 %v2916, 16
        %v3039 = vshll.u32 %v2916, 16
        %v3041 = vrot.slane %v3039, 1
        %v3042 = vor.u32 %v3037, %v3041
        %v3043 = vshll.u32 %v2918, 16
        %v3045 = vrot.slane %v3043, 1
        %v3046 = vsel %vm969, %v3042, %v3045
        %v3047 = vshrl.u32 %v2920, 16
        %v3049 = vshll.u32 %v2920, 16
        %v3051 = vrot.slane %v3049, 1
        %v3052 = vor.u32 %v3047, %v3051
        %v3053 = vshll.u32 %v2922, 16
        %v3055 = vrot.slane %v3053, 1
        %v3056 = vsel %vm969, %v3052, %v3055
        %v3057 = vshrl.u32 %v2924, 16
        %v3059 = vshll.u32 %v2924, 16
        %v3061 = vrot.slane %v3059, 1
        %v3062 = vor.u32 %v3057, %v3061
        %v3063 = vshll.u32 %v2926, 16
        %v3065 = vrot.slane %v3063, 1
        %v3066 = vsel %vm969, %v3062, %v3065
        %v3067 = vshrl.u32 %v2928, 16
        %v3069 = vshll.u32 %v2928, 16
        %v3071 = vrot.slane %v3069, 1
        %v3072 = vor.u32 %v3067, %v3071
        %v3073 = vshll.u32 %v2930, 16
        %v3075 = vrot.slane %v3073, 1
        %v3076 = vsel %vm969, %v3072, %v3075
        %v3077 = vshrl.u32 %v2932, 16
        %v3079 = vshll.u32 %v2932, 16
        %v3081 = vrot.slane %v3079, 1
        %v3082 = vor.u32 %v3077, %v3081
        %v3083 = vshll.u32 %v2934, 16
        %v3085 = vrot.slane %v3083, 1
        %v3086 = vsel %vm969, %v3082, %v3085
        %v3087 = vshrl.u32 %v2936, 16
        %v3089 = vshll.u32 %v2936, 16
        %v3091 = vrot.slane %v3089, 1
        %v3092 = vor.u32 %v3087, %v3091
        %v3093 = vshll.u32 %v2938, 16
        %v3095 = vrot.slane %v3093, 1
        %v3096 = vsel %vm969, %v3092, %v3095
        %v3097 = vshrl.u32 %v2940, 16
        %v3099 = vshll.u32 %v2940, 16
        %v3101 = vrot.slane %v3099, 1
        %v3102 = vor.u32 %v3097, %v3101
        %v3103 = vshll.u32 %v2942, 16
        %v3105 = vrot.slane %v3103, 1
        %v3106 = vsel %vm969, %v3102, %v3105
        %v3107 = vshrl.u32 %v2943, 16
        %v3109 = vshll.u32 %v2943, 16
        %v3111 = vrot.slane %v3109, 1
        %v3112 = vor.u32 %v3107, %v3111
        %v3113 = vshll.u32 %v2944, 16
        %v3115 = vrot.slane %v3113, 1
        %v3116 = vsel %vm969, %v3112, %v3115
        %s3117 = scalar_lea.vmem %s5, 48
        %v3118 = vld [vmem:[%s3117] sm:$0xf]
        %v3119 = vld [vmem:[%s3117 + $0x4] sm:$0xf]
        %v3120 = vld [vmem:[%s3117 + $0x8] sm:$0xf]
        %v3121 = vld [vmem:[%s3117 + $0xc] sm:$0xf]
        %v3122 = vld [vmem:[%s3117 + $0x10] sm:$0xf]
        %v3123 = vld [vmem:[%s3117 + $0x14] sm:$0xf]
        %v3124 = vld [vmem:[%s3117 + $0x18] sm:$0xf]
        %v3125 = vld [vmem:[%s3117 + $0x1c] sm:$0xf]
        %v3126 = vld [vmem:[%s3117 + $0x20] sm:$0xf]
        %v3127 = vld [vmem:[%s3117 + $0x24] sm:$0xf]
        %v3128 = vld [vmem:[%s3117 + $0x28] sm:$0xf]
        %v3129 = vld [vmem:[%s3117 + $0x2c] sm:$0xf]
        %v3142 = vunpack.c.l.b16 %v3118
        %v3143 = vunpack.c.l.b16 %v3119
        %v3144 = vunpack.c.l.b16 %v3120
        %v3145 = vunpack.c.l.b16 %v3121
        %v3146 = vunpack.c.l.b16 %v3122
        %v3147 = vunpack.c.l.b16 %v3123
        %v3148 = vunpack.c.l.b16 %v3124
        %v3149 = vunpack.c.l.b16 %v3125
        %v3150 = vunpack.c.l.b16 %v3126
        %v3151 = vunpack.c.l.b16 %v3127
        %v3152 = vunpack.c.l.b16 %v3128
        %v3153 = vunpack.c.l.b16 %v3129
        %v3154 = vpack.c.b16 %v3143, %v3142
        %v3155 = vpack.c.b16 %v3145, %v3144
        %v3156 = vpack.c.b16 %v3147, %v3146
        %v3157 = vpack.c.b16 %v3149, %v3148
        %v3158 = vpack.c.b16 %v3151, %v3150
        %v3159 = vpack.c.b16 %v3153, %v3152
        %v3167 = vsel %vm1179, %v2966, 0
        %v3170 = vsel %vm1179, %v2976, 0
        %v3173 = vsel %vm1179, %v2986, 0
        %v3176 = vsel %vm1179, %v2996, 0
        %v3179 = vsel %vm1179, %v3006, 0
        %v3182 = vsel %vm1179, %v3016, 0
        %v3185 = vsel %vm1179, %v3026, 0
        %v3188 = vsel %vm1179, %v3036, 0
        %v3191 = vsel %vm1179, %v3046, 0
        %v3194 = vsel %vm1179, %v3056, 0
        %v3197 = vsel %vm1179, %v3066, 0
        %v3200 = vsel %vm1179, %v3076, 0
        %v3203 = vsel %vm1179, %v3086, 0
        %v3206 = vsel %vm1179, %v3096, 0
        %v3209 = vsel %vm1179, %v3106, 0
        %v3212 = vsel %vm1179, %v3116, 0
        %3214 = vmatprep.subr.bf16.mxu0 0
        %3215 = vmatpush1.bf16.msra.mxu0 %v3154
        %3216 = vmatprep.subr.bf16.mxu0 0
        %3217 = vmatpush1.bf16.msra.mxu0 %v3155
        %3218 = vmatprep.subr.bf16.mxu0 0
        %3219 = vmatpush1.bf16.msra.mxu0 %v3156
        %3220 = vmatprep.subr.bf16.mxu0 0
        %3221 = vmatpush1.bf16.msra.mxu0 %v3157
        %3222 = vmatprep.subr.bf16.mxu0 0
        %3223 = vmatpush1.bf16.msra.mxu0 %v3158
        %3224 = vmatprep.subr.bf16.mxu0 0
        %3225 = vmatpush1.bf16.msra.mxu0 %v3159
        %3226 = vmatprep.subr.bf16.mxu0 0
        %3227 = vmatpush1.bf16.msra.mxu0 0
        %3228 = vmatprep.subr.bf16.mxu0 0
        %3229 = vmatpush1.bf16.msra.mxu0 0
        %3230 = vmatprep.subr.bf16.mxu0 0
        %3231 = vmatpush1.bf16.msra.mxu0 0
        %3232 = vmatprep.subr.bf16.mxu0 0
        %3233 = vmatpush1.bf16.msra.mxu0 0
        %3234 = vmatprep.subr.bf16.mxu0 0
        %3235 = vmatpush1.bf16.msra.mxu0 0
        %3236 = vmatprep.subr.bf16.mxu0 0
        %3237 = vmatpush1.bf16.msra.mxu0 0
        %3238 = vmatprep.subr.bf16.mxu0 0
        %3239 = vmatpush1.bf16.msra.mxu0 0
        %3240 = vmatprep.subr.bf16.mxu0 0
        %3241 = vmatpush1.bf16.msra.mxu0 0
        %3242 = vmatprep.subr.bf16.mxu0 0
        %3243 = vmatpush1.bf16.msra.mxu0 0
        %3244 = vmatprep.subr.bf16.mxu0 0
        %3245 = vmatpush1.bf16.msra.mxu0 0
        %3246 = vmatprep.mubr.bf16.mxu0 0
        %3247 = vmatmul.mubr.bf16.gmra.mrb[0].mxu0 %v3167
        %v3248 = vpop.f32.mrb[0].mxu0
        %v3249 = vadd.f32 0.0, %v3248
        %v3250 = vpop.f32.mrb[0].mxu0
        %v3251 = vpop.f32.mrb[0].mxu0
        %v3252 = vadd.f32 0.0, %v3251
        %v3253 = vpop.f32.mrb[0].mxu0
        %3254 = vmatprep.mubr.bf16.mxu0 0
        %3255 = vmatmul.mubr.bf16.gmra.mrb[0].mxu0 %v3170
        %v3256 = vpop.f32.mrb[0].mxu0
        %v3257 = vadd.f32 0.0, %v3256
        %v3258 = vpop.f32.mrb[0].mxu0
        %v3259 = vpop.f32.mrb[0].mxu0
        %v3260 = vadd.f32 0.0, %v3259
        %v3261 = vpop.f32.mrb[0].mxu0
        %3262 = vmatprep.mubr.bf16.mxu0 0
        %3263 = vmatmul.mubr.bf16.gmra.mrb[0].mxu0 %v3173
        %v3264 = vpop.f32.mrb[0].mxu0
        %v3265 = vadd.f32 0.0, %v3264
        %v3266 = vpop.f32.mrb[0].mxu0
        %v3267 = vpop.f32.mrb[0].mxu0
        %v3268 = vadd.f32 0.0, %v3267
        %v3269 = vpop.f32.mrb[0].mxu0
        %3270 = vmatprep.mubr.bf16.mxu0 0
        %3271 = vmatmul.mubr.bf16.gmra.mrb[0].mxu0 %v3176
        %v3272 = vpop.f32.mrb[0].mxu0
        %v3273 = vadd.f32 0.0, %v3272
        %v3274 = vpop.f32.mrb[0].mxu0
        %v3275 = vpop.f32.mrb[0].mxu0
        %v3276 = vadd.f32 0.0, %v3275
        %v3277 = vpop.f32.mrb[0].mxu0
        %3278 = vmatprep.mubr.bf16.mxu0 0
        %3279 = vmatmul.mubr.bf16.gmra.mrb[0].mxu0 %v3179
        %v3280 = vpop.f32.mrb[0].mxu0
        %v3281 = vadd.f32 0.0, %v3280
        %v3282 = vpop.f32.mrb[0].mxu0
        %v3283 = vpop.f32.mrb[0].mxu0
        %v3284 = vadd.f32 0.0, %v3283
        %v3285 = vpop.f32.mrb[0].mxu0
        %3286 = vmatprep.mubr.bf16.mxu0 0
        %3287 = vmatmul.mubr.bf16.gmra.mrb[0].mxu0 %v3182
        %v3288 = vpop.f32.mrb[0].mxu0
        %v3289 = vadd.f32 0.0, %v3288
        %v3290 = vpop.f32.mrb[0].mxu0
        %v3291 = vpop.f32.mrb[0].mxu0
        %v3292 = vadd.f32 0.0, %v3291
        %v3293 = vpop.f32.mrb[0].mxu0
        %3294 = vmatprep.mubr.bf16.mxu0 0
        %3295 = vmatmul.mubr.bf16.gmra.mrb[0].mxu0 %v3185
        %v3296 = vpop.f32.mrb[0].mxu0
        %v3297 = vadd.f32 0.0, %v3296
        %v3298 = vpop.f32.mrb[0].mxu0
        %v3299 = vpop.f32.mrb[0].mxu0
        %v3300 = vadd.f32 0.0, %v3299
        %v3301 = vpop.f32.mrb[0].mxu0
        %3302 = vmatprep.mubr.bf16.mxu0 0
        %3303 = vmatmul.mubr.bf16.gmra.mrb[0].mxu0 %v3188
        %v3304 = vpop.f32.mrb[0].mxu0
        %v3305 = vadd.f32 0.0, %v3304
        %v3306 = vpop.f32.mrb[0].mxu0
        %v3307 = vpop.f32.mrb[0].mxu0
        %v3308 = vadd.f32 0.0, %v3307
        %v3309 = vpop.f32.mrb[0].mxu0
        %3310 = vmatprep.mubr.bf16.mxu0 0
        %3311 = vmatmul.mubr.bf16.gmra.mrb[0].mxu0 %v3191
        %v3312 = vpop.f32.mrb[0].mxu0
        %v3313 = vadd.f32 0.0, %v3312
        %v3314 = vpop.f32.mrb[0].mxu0
        %v3315 = vpop.f32.mrb[0].mxu0
        %v3316 = vadd.f32 0.0, %v3315
        %v3317 = vpop.f32.mrb[0].mxu0
        %3318 = vmatprep.mubr.bf16.mxu0 0
        %3319 = vmatmul.mubr.bf16.gmra.mrb[0].mxu0 %v3194
        %v3320 = vpop.f32.mrb[0].mxu0
        %v3321 = vadd.f32 0.0, %v3320
        %v3322 = vpop.f32.mrb[0].mxu0
        %v3323 = vpop.f32.mrb[0].mxu0
        %v3324 = vadd.f32 0.0, %v3323
        %v3325 = vpop.f32.mrb[0].mxu0
        %3326 = vmatprep.mubr.bf16.mxu0 0
        %3327 = vmatmul.mubr.bf16.gmra.mrb[0].mxu0 %v3197
        %v3328 = vpop.f32.mrb[0].mxu0
        %v3329 = vadd.f32 0.0, %v3328
        %v3330 = vpop.f32.mrb[0].mxu0
        %v3331 = vpop.f32.mrb[0].mxu0
        %v3332 = vadd.f32 0.0, %v3331
        %v3333 = vpop.f32.mrb[0].mxu0
        %3334 = vmatprep.mubr.bf16.mxu0 0
        %3335 = vmatmul.mubr.bf16.gmra.mrb[0].mxu0 %v3200
        %v3336 = vpop.f32.mrb[0].mxu0
        %v3337 = vadd.f32 0.0, %v3336
        %v3338 = vpop.f32.mrb[0].mxu0
        %v3339 = vpop.f32.mrb[0].mxu0
        %v3340 = vadd.f32 0.0, %v3339
        %v3341 = vpop.f32.mrb[0].mxu0
        %3342 = vmatprep.mubr.bf16.mxu0 0
        %3343 = vmatmul.mubr.bf16.gmra.mrb[0].mxu0 %v3203
        %v3344 = vpop.f32.mrb[0].mxu0
        %v3345 = vadd.f32 0.0, %v3344
        %v3346 = vpop.f32.mrb[0].mxu0
        %v3347 = vpop.f32.mrb[0].mxu0
        %v3348 = vadd.f32 0.0, %v3347
        %v3349 = vpop.f32.mrb[0].mxu0
        %3350 = vmatprep.mubr.bf16.mxu0 0
        %3351 = vmatmul.mubr.bf16.gmra.mrb[0].mxu0 %v3206
        %v3352 = vpop.f32.mrb[0].mxu0
        %v3353 = vadd.f32 0.0, %v3352
        %v3354 = vpop.f32.mrb[0].mxu0
        %v3355 = vpop.f32.mrb[0].mxu0
        %v3356 = vadd.f32 0.0, %v3355
        %v3357 = vpop.f32.mrb[0].mxu0
        %3358 = vmatprep.mubr.bf16.mxu0 0
        %3359 = vmatmul.mubr.bf16.gmra.mrb[0].mxu0 %v3209
        %v3360 = vpop.f32.mrb[0].mxu0
        %v3361 = vadd.f32 0.0, %v3360
        %v3362 = vpop.f32.mrb[0].mxu0
        %v3363 = vpop.f32.mrb[0].mxu0
        %v3364 = vadd.f32 0.0, %v3363
        %v3365 = vpop.f32.mrb[0].mxu0
        %3366 = vmatprep.mubr.bf16.mxu0 0
        %3367 = vmatmul.mubr.bf16.gmra.mrb[0].mxu0 %v3212
        %v3368 = vpop.f32.mrb[0].mxu0
        %v3369 = vadd.f32 0.0, %v3368
        %v3370 = vpop.f32.mrb[0].mxu0
        %v3371 = vpop.f32.mrb[0].mxu0
        %v3372 = vadd.f32 0.0, %v3371
        %v3373 = vpop.f32.mrb[0].mxu0
        %3374 = vdwg.mxu0
        %v3387 = vunpack.c.l.b16 %v2945
        %v3388 = vunpack.c.l.b16 %v2946
        %v3389 = vunpack.c.l.b16 %v2947
        %v3390 = vunpack.c.l.b16 %v2948
        %v3391 = vunpack.c.l.b16 %v2949
        %v3392 = vunpack.c.l.b16 %v2950
        %v3393 = vunpack.c.l.b16 %v2951
        %v3394 = vunpack.c.l.b16 %v2952
        %v3395 = vunpack.c.l.b16 %v2953
        %v3396 = vunpack.c.l.b16 %v2954
        %v3397 = vunpack.c.l.b16 %v2955
        %v3398 = vunpack.c.l.b16 %v2956
        %v3399 = vpack.c.b16 %v3388, %v3387
        %v3400 = vpack.c.b16 %v3390, %v3389
        %v3401 = vpack.c.b16 %v3392, %v3391
        %v3402 = vpack.c.b16 %v3394, %v3393
        %v3403 = vpack.c.b16 %v3396, %v3395
        %v3404 = vpack.c.b16 %v3398, %v3397
        %v3411 = vsel %vm1179, %v2884, 0
        %v3413 = vsel %vm1179, %v2888, 0
        %v3415 = vsel %vm1179, %v2892, 0
        %v3417 = vsel %vm1179, %v2896, 0
        %v3419 = vsel %vm1179, %v2900, 0
        %v3421 = vsel %vm1179, %v2904, 0
        %v3423 = vsel %vm1179, %v2908, 0
        %v3425 = vsel %vm1179, %v2912, 0
        %v3427 = vsel %vm1179, %v2916, 0
        %v3429 = vsel %vm1179, %v2920, 0
        %v3431 = vsel %vm1179, %v2924, 0
        %v3433 = vsel %vm1179, %v2928, 0
        %v3435 = vsel %vm1179, %v2932, 0
        %v3437 = vsel %vm1179, %v2936, 0
        %v3439 = vsel %vm1179, %v2940, 0
        %v3441 = vsel %vm1179, %v2943, 0
        %3443 = vmatprep.subr.bf16.mxu0 0
        %3444 = vmatpush1.bf16.msra.mxu0 %v3399
        %3445 = vmatprep.subr.bf16.mxu0 0
        %3446 = vmatpush1.bf16.msra.mxu0 %v3400
        %3447 = vmatprep.subr.bf16.mxu0 0
        %3448 = vmatpush1.bf16.msra.mxu0 %v3401
        %3449 = vmatprep.subr.bf16.mxu0 0
        %3450 = vmatpush1.bf16.msra.mxu0 %v3402
        %3451 = vmatprep.subr.bf16.mxu0 0
        %3452 = vmatpush1.bf16.msra.mxu0 %v3403
        %3453 = vmatprep.subr.bf16.mxu0 0
        %3454 = vmatpush1.bf16.msra.mxu0 %v3404
        %3455 = vmatprep.subr.bf16.mxu0 0
        %3456 = vmatpush1.bf16.msra.mxu0 0
        %3457 = vmatprep.subr.bf16.mxu0 0
        %3458 = vmatpush1.bf16.msra.mxu0 0
        %3459 = vmatprep.subr.bf16.mxu0 0
        %3460 = vmatpush1.bf16.msra.mxu0 0
        %3461 = vmatprep.subr.bf16.mxu0 0
        %3462 = vmatpush1.bf16.msra.mxu0 0
        %3463 = vmatprep.subr.bf16.mxu0 0
        %3464 = vmatpush1.bf16.msra.mxu0 0
        %3465 = vmatprep.subr.bf16.mxu0 0
        %3466 = vmatpush1.bf16.msra.mxu0 0
        %3467 = vmatprep.subr.bf16.mxu0 0
        %3468 = vmatpush1.bf16.msra.mxu0 0
        %3469 = vmatprep.subr.bf16.mxu0 0
        %3470 = vmatpush1.bf16.msra.mxu0 0
        %3471 = vmatprep.subr.bf16.mxu0 0
        %3472 = vmatpush1.bf16.msra.mxu0 0
        %3473 = vmatprep.subr.bf16.mxu0 0
        %3474 = vmatpush1.bf16.msra.mxu0 0
        %3475 = vmatprep.mubr.bf16.mxu0 0
        %3476 = vmatmul.mubr.bf16.gmra.mrb[0].mxu0 %v3411
        %v3477 = vpop.f32.mrb[0].mxu0
        %v3478 = vadd.f32 %v3249, %v3477
        %v3479 = vpop.f32.mrb[0].mxu0
        %v3480 = vpop.f32.mrb[0].mxu0
        %v3481 = vadd.f32 %v3252, %v3480
        %v3482 = vpop.f32.mrb[0].mxu0
        %3483 = vmatprep.mubr.bf16.mxu0 0
        %3484 = vmatmul.mubr.bf16.gmra.mrb[0].mxu0 %v3413
        %v3485 = vpop.f32.mrb[0].mxu0
        %v3486 = vadd.f32 %v3257, %v3485
        %v3487 = vpop.f32.mrb[0].mxu0
        %v3488 = vpop.f32.mrb[0].mxu0
        %v3489 = vadd.f32 %v3260, %v3488
        %v3490 = vpop.f32.mrb[0].mxu0
        %3491 = vmatprep.mubr.bf16.mxu0 0
        %3492 = vmatmul.mubr.bf16.gmra.mrb[0].mxu0 %v3415
        %v3493 = vpop.f32.mrb[0].mxu0
        %v3494 = vadd.f32 %v3265, %v3493
        %v3495 = vpop.f32.mrb[0].mxu0
        %v3496 = vpop.f32.mrb[0].mxu0
        %v3497 = vadd.f32 %v3268, %v3496
        %v3498 = vpop.f32.mrb[0].mxu0
        %3499 = vmatprep.mubr.bf16.mxu0 0
        %3500 = vmatmul.mubr.bf16.gmra.mrb[0].mxu0 %v3417
        %v3501 = vpop.f32.mrb[0].mxu0
        %v3502 = vadd.f32 %v3273, %v3501
        %v3503 = vpop.f32.mrb[0].mxu0
        %v3504 = vpop.f32.mrb[0].mxu0
        %v3505 = vadd.f32 %v3276, %v3504
        %v3506 = vpop.f32.mrb[0].mxu0
        %3507 = vmatprep.mubr.bf16.mxu0 0
        %3508 = vmatmul.mubr.bf16.gmra.mrb[0].mxu0 %v3419
        %v3509 = vpop.f32.mrb[0].mxu0
        %v3510 = vadd.f32 %v3281, %v3509
        %v3511 = vpop.f32.mrb[0].mxu0
        %v3512 = vpop.f32.mrb[0].mxu0
        %v3513 = vadd.f32 %v3284, %v3512
        %v3514 = vpop.f32.mrb[0].mxu0
        %3515 = vmatprep.mubr.bf16.mxu0 0
        %3516 = vmatmul.mubr.bf16.gmra.mrb[0].mxu0 %v3421
        %v3517 = vpop.f32.mrb[0].mxu0
        %v3518 = vadd.f32 %v3289, %v3517
        %v3519 = vpop.f32.mrb[0].mxu0
        %v3520 = vpop.f32.mrb[0].mxu0
        %v3521 = vadd.f32 %v3292, %v3520
        %v3522 = vpop.f32.mrb[0].mxu0
        %3523 = vmatprep.mubr.bf16.mxu0 0
        %3524 = vmatmul.mubr.bf16.gmra.mrb[0].mxu0 %v3423
        %v3525 = vpop.f32.mrb[0].mxu0
        %v3526 = vadd.f32 %v3297, %v3525
        %v3527 = vpop.f32.mrb[0].mxu0
        %v3528 = vpop.f32.mrb[0].mxu0
        %v3529 = vadd.f32 %v3300, %v3528
        %v3530 = vpop.f32.mrb[0].mxu0
        %3531 = vmatprep.mubr.bf16.mxu0 0
        %3532 = vmatmul.mubr.bf16.gmra.mrb[0].mxu0 %v3425
        %v3533 = vpop.f32.mrb[0].mxu0
        %v3534 = vadd.f32 %v3305, %v3533
        %v3535 = vpop.f32.mrb[0].mxu0
        %v3536 = vpop.f32.mrb[0].mxu0
        %v3537 = vadd.f32 %v3308, %v3536
        %v3538 = vpop.f32.mrb[0].mxu0
        %3539 = vmatprep.mubr.bf16.mxu0 0
        %3540 = vmatmul.mubr.bf16.gmra.mrb[0].mxu0 %v3427
        %v3541 = vpop.f32.mrb[0].mxu0
        %v3542 = vadd.f32 %v3313, %v3541
        %v3543 = vpop.f32.mrb[0].mxu0
        %v3544 = vpop.f32.mrb[0].mxu0
        %v3545 = vadd.f32 %v3316, %v3544
        %v3546 = vpop.f32.mrb[0].mxu0
        %3547 = vmatprep.mubr.bf16.mxu0 0
        %3548 = vmatmul.mubr.bf16.gmra.mrb[0].mxu0 %v3429
        %v3549 = vpop.f32.mrb[0].mxu0
        %v3550 = vadd.f32 %v3321, %v3549
        %v3551 = vpop.f32.mrb[0].mxu0
        %v3552 = vpop.f32.mrb[0].mxu0
        %v3553 = vadd.f32 %v3324, %v3552
        %v3554 = vpop.f32.mrb[0].mxu0
        %3555 = vmatprep.mubr.bf16.mxu0 0
        %3556 = vmatmul.mubr.bf16.gmra.mrb[0].mxu0 %v3431
        %v3557 = vpop.f32.mrb[0].mxu0
        %v3558 = vadd.f32 %v3329, %v3557
        %v3559 = vpop.f32.mrb[0].mxu0
        %v3560 = vpop.f32.mrb[0].mxu0
        %v3561 = vadd.f32 %v3332, %v3560
        %v3562 = vpop.f32.mrb[0].mxu0
        %3563 = vmatprep.mubr.bf16.mxu0 0
        %3564 = vmatmul.mubr.bf16.gmra.mrb[0].mxu0 %v3433
        %v3565 = vpop.f32.mrb[0].mxu0
        %v3566 = vadd.f32 %v3337, %v3565
        %v3567 = vpop.f32.mrb[0].mxu0
        %v3568 = vpop.f32.mrb[0].mxu0
        %v3569 = vadd.f32 %v3340, %v3568
        %v3570 = vpop.f32.mrb[0].mxu0
        %3571 = vmatprep.mubr.bf16.mxu0 0
        %3572 = vmatmul.mubr.bf16.gmra.mrb[0].mxu0 %v3435
        %v3573 = vpop.f32.mrb[0].mxu0
        %v3574 = vadd.f32 %v3345, %v3573
        %v3575 = vpop.f32.mrb[0].mxu0
        %v3576 = vpop.f32.mrb[0].mxu0
        %v3577 = vadd.f32 %v3348, %v3576
        %v3578 = vpop.f32.mrb[0].mxu0
        %3579 = vmatprep.mubr.bf16.mxu0 0
        %3580 = vmatmul.mubr.bf16.gmra.mrb[0].mxu0 %v3437
        %v3581 = vpop.f32.mrb[0].mxu0
        %v3582 = vadd.f32 %v3353, %v3581
        %v3583 = vpop.f32.mrb[0].mxu0
        %v3584 = vpop.f32.mrb[0].mxu0
        %v3585 = vadd.f32 %v3356, %v3584
        %v3586 = vpop.f32.mrb[0].mxu0
        %3587 = vmatprep.mubr.bf16.mxu0 0
        %3588 = vmatmul.mubr.bf16.gmra.mrb[0].mxu0 %v3439
        %v3589 = vpop.f32.mrb[0].mxu0
        %v3590 = vadd.f32 %v3361, %v3589
        %v3591 = vpop.f32.mrb[0].mxu0
        %v3592 = vpop.f32.mrb[0].mxu0
        %v3593 = vadd.f32 %v3364, %v3592
        %v3594 = vpop.f32.mrb[0].mxu0
        %3595 = vmatprep.mubr.bf16.mxu0 0
        %3596 = vmatmul.mubr.bf16.gmra.mrb[0].mxu0 %v3441
        %v3597 = vpop.f32.mrb[0].mxu0
        %v3598 = vadd.f32 %v3369, %v3597
        %v3599 = vpop.f32.mrb[0].mxu0
        %v3600 = vpop.f32.mrb[0].mxu0
        %v3601 = vadd.f32 %v3372, %v3600
        %v3602 = vpop.f32.mrb[0].mxu0
        %3603 = vdwg.mxu0
        %v3636 = vrot.slane %v2884, 1
        %v3637 = vrot.slane %v2886, 1
        %v3638 = vsel %vm1650, %v3636, %v3637
        %v3639 = vrot.slane %v2888, 1
        %v3640 = vrot.slane %v2890, 1
        %v3641 = vsel %vm1650, %v3639, %v3640
        %v3642 = vrot.slane %v2892, 1
        %v3643 = vrot.slane %v2894, 1
        %v3644 = vsel %vm1650, %v3642, %v3643
        %v3645 = vrot.slane %v2896, 1
        %v3646 = vrot.slane %v2898, 1
        %v3647 = vsel %vm1650, %v3645, %v3646
        %v3648 = vrot.slane %v2900, 1
        %v3649 = vrot.slane %v2902, 1
        %v3650 = vsel %vm1650, %v3648, %v3649
        %v3651 = vrot.slane %v2904, 1
        %v3652 = vrot.slane %v2906, 1
        %v3653 = vsel %vm1650, %v3651, %v3652
        %v3654 = vrot.slane %v2908, 1
        %v3655 = vrot.slane %v2910, 1
        %v3656 = vsel %vm1650, %v3654, %v3655
        %v3657 = vrot.slane %v2912, 1
        %v3658 = vrot.slane %v2914, 1
        %v3659 = vsel %vm1650, %v3657, %v3658
        %v3660 = vrot.slane %v2916, 1
        %v3661 = vrot.slane %v2918, 1
        %v3662 = vsel %vm1650, %v3660, %v3661
        %v3663 = vrot.slane %v2920, 1
        %v3664 = vrot.slane %v2922, 1
        %v3665 = vsel %vm1650, %v3663, %v3664
        %v3666 = vrot.slane %v2924, 1
        %v3667 = vrot.slane %v2926, 1
        %v3668 = vsel %vm1650, %v3666, %v3667
        %v3669 = vrot.slane %v2928, 1
        %v3670 = vrot.slane %v2930, 1
        %v3671 = vsel %vm1650, %v3669, %v3670
        %v3672 = vrot.slane %v2932, 1
        %v3673 = vrot.slane %v2934, 1
        %v3674 = vsel %vm1650, %v3672, %v3673
        %v3675 = vrot.slane %v2936, 1
        %v3676 = vrot.slane %v2938, 1
        %v3677 = vsel %vm1650, %v3675, %v3676
        %v3678 = vrot.slane %v2940, 1
        %v3679 = vrot.slane %v2942, 1
        %v3680 = vsel %vm1650, %v3678, %v3679
        %v3681 = vrot.slane %v2943, 1
        %v3682 = vrot.slane %v2944, 1
        %v3683 = vsel %vm1650, %v3681, %v3682
        %s3684 = scalar_lea.vmem %s5, 96
        %v3685 = vld [vmem:[%s3684] sm:$0xf]
        %v3686 = vld [vmem:[%s3684 + $0x4] sm:$0xf]
        %v3687 = vld [vmem:[%s3684 + $0x8] sm:$0xf]
        %v3688 = vld [vmem:[%s3684 + $0xc] sm:$0xf]
        %v3689 = vld [vmem:[%s3684 + $0x10] sm:$0xf]
        %v3690 = vld [vmem:[%s3684 + $0x14] sm:$0xf]
        %v3691 = vld [vmem:[%s3684 + $0x18] sm:$0xf]
        %v3692 = vld [vmem:[%s3684 + $0x1c] sm:$0xf]
        %v3693 = vld [vmem:[%s3684 + $0x20] sm:$0xf]
        %v3694 = vld [vmem:[%s3684 + $0x24] sm:$0xf]
        %v3695 = vld [vmem:[%s3684 + $0x28] sm:$0xf]
        %v3696 = vld [vmem:[%s3684 + $0x2c] sm:$0xf]
        %v3709 = vunpack.c.l.b16 %v3685
        %v3710 = vunpack.c.l.b16 %v3686
        %v3711 = vunpack.c.l.b16 %v3687
        %v3712 = vunpack.c.l.b16 %v3688
        %v3713 = vunpack.c.l.b16 %v3689
        %v3714 = vunpack.c.l.b16 %v3690
        %v3715 = vunpack.c.l.b16 %v3691
        %v3716 = vunpack.c.l.b16 %v3692
        %v3717 = vunpack.c.l.b16 %v3693
        %v3718 = vunpack.c.l.b16 %v3694
        %v3719 = vunpack.c.l.b16 %v3695
        %v3720 = vunpack.c.l.b16 %v3696
        %v3721 = vpack.c.b16 %v3710, %v3709
        %v3722 = vpack.c.b16 %v3712, %v3711
        %v3723 = vpack.c.b16 %v3714, %v3713
        %v3724 = vpack.c.b16 %v3716, %v3715
        %v3725 = vpack.c.b16 %v3718, %v3717
        %v3726 = vpack.c.b16 %v3720, %v3719
        %v3734 = vsel %vm1179, %v3638, 0
        %v3737 = vsel %vm1179, %v3641, 0
        %v3740 = vsel %vm1179, %v3644, 0
        %v3743 = vsel %vm1179, %v3647, 0
        %v3746 = vsel %vm1179, %v3650, 0
        %v3749 = vsel %vm1179, %v3653, 0
        %v3752 = vsel %vm1179, %v3656, 0
        %v3755 = vsel %vm1179, %v3659, 0
        %v3758 = vsel %vm1179, %v3662, 0
        %v3761 = vsel %vm1179, %v3665, 0
        %v3764 = vsel %vm1179, %v3668, 0
        %v3767 = vsel %vm1179, %v3671, 0
        %v3770 = vsel %vm1179, %v3674, 0
        %v3773 = vsel %vm1179, %v3677, 0
        %v3776 = vsel %vm1179, %v3680, 0
        %v3779 = vsel %vm1179, %v3683, 0
        %3781 = vmatprep.subr.bf16.mxu0 0
        %3782 = vmatpush1.bf16.msra.mxu0 %v3721
        %3783 = vmatprep.subr.bf16.mxu0 0
        %3784 = vmatpush1.bf16.msra.mxu0 %v3722
        %3785 = vmatprep.subr.bf16.mxu0 0
        %3786 = vmatpush1.bf16.msra.mxu0 %v3723
        %3787 = vmatprep.subr.bf16.mxu0 0
        %3788 = vmatpush1.bf16.msra.mxu0 %v3724
        %3789 = vmatprep.subr.bf16.mxu0 0
        %3790 = vmatpush1.bf16.msra.mxu0 %v3725
        %3791 = vmatprep.subr.bf16.mxu0 0
        %3792 = vmatpush1.bf16.msra.mxu0 %v3726
        %3793 = vmatprep.subr.bf16.mxu0 0
        %3794 = vmatpush1.bf16.msra.mxu0 0
        %3795 = vmatprep.subr.bf16.mxu0 0
        %3796 = vmatpush1.bf16.msra.mxu0 0
        %3797 = vmatprep.subr.bf16.mxu0 0
        %3798 = vmatpush1.bf16.msra.mxu0 0
        %3799 = vmatprep.subr.bf16.mxu0 0
        %3800 = vmatpush1.bf16.msra.mxu0 0
        %3801 = vmatprep.subr.bf16.mxu0 0
        %3802 = vmatpush1.bf16.msra.mxu0 0
        %3803 = vmatprep.subr.bf16.mxu0 0
        %3804 = vmatpush1.bf16.msra.mxu0 0
        %3805 = vmatprep.subr.bf16.mxu0 0
        %3806 = vmatpush1.bf16.msra.mxu0 0
        %3807 = vmatprep.subr.bf16.mxu0 0
        %3808 = vmatpush1.bf16.msra.mxu0 0
        %3809 = vmatprep.subr.bf16.mxu0 0
        %3810 = vmatpush1.bf16.msra.mxu0 0
        %3811 = vmatprep.subr.bf16.mxu0 0
        %3812 = vmatpush1.bf16.msra.mxu0 0
        %3813 = vmatprep.mubr.bf16.mxu0 0
        %3814 = vmatmul.mubr.bf16.gmra.mrb[0].mxu0 %v3734
        %v3815 = vpop.f32.mrb[0].mxu0
        %v3816 = vadd.f32 0.0, %v3815
        %v3817 = vpop.f32.mrb[0].mxu0
        %v3818 = vpop.f32.mrb[0].mxu0
        %v3819 = vadd.f32 0.0, %v3818
        %v3820 = vpop.f32.mrb[0].mxu0
        %3821 = vmatprep.mubr.bf16.mxu0 0
        %3822 = vmatmul.mubr.bf16.gmra.mrb[0].mxu0 %v3737
        %v3823 = vpop.f32.mrb[0].mxu0
        %v3824 = vadd.f32 0.0, %v3823
        %v3825 = vpop.f32.mrb[0].mxu0
        %v3826 = vpop.f32.mrb[0].mxu0
        %v3827 = vadd.f32 0.0, %v3826
        %v3828 = vpop.f32.mrb[0].mxu0
        %3829 = vmatprep.mubr.bf16.mxu0 0
        %3830 = vmatmul.mubr.bf16.gmra.mrb[0].mxu0 %v3740
        %v3831 = vpop.f32.mrb[0].mxu0
        %v3832 = vadd.f32 0.0, %v3831
        %v3833 = vpop.f32.mrb[0].mxu0
        %v3834 = vpop.f32.mrb[0].mxu0
        %v3835 = vadd.f32 0.0, %v3834
        %v3836 = vpop.f32.mrb[0].mxu0
        %3837 = vmatprep.mubr.bf16.mxu0 0
        %3838 = vmatmul.mubr.bf16.gmra.mrb[0].mxu0 %v3743
        %v3839 = vpop.f32.mrb[0].mxu0
        %v3840 = vadd.f32 0.0, %v3839
        %v3841 = vpop.f32.mrb[0].mxu0
        %v3842 = vpop.f32.mrb[0].mxu0
        %v3843 = vadd.f32 0.0, %v3842
        %v3844 = vpop.f32.mrb[0].mxu0
        %3845 = vmatprep.mubr.bf16.mxu0 0
        %3846 = vmatmul.mubr.bf16.gmra.mrb[0].mxu0 %v3746
        %v3847 = vpop.f32.mrb[0].mxu0
        %v3848 = vadd.f32 0.0, %v3847
        %v3849 = vpop.f32.mrb[0].mxu0
        %v3850 = vpop.f32.mrb[0].mxu0
        %v3851 = vadd.f32 0.0, %v3850
        %v3852 = vpop.f32.mrb[0].mxu0
        %3853 = vmatprep.mubr.bf16.mxu0 0
        %3854 = vmatmul.mubr.bf16.gmra.mrb[0].mxu0 %v3749
        %v3855 = vpop.f32.mrb[0].mxu0
        %v3856 = vadd.f32 0.0, %v3855
        %v3857 = vpop.f32.mrb[0].mxu0
        %v3858 = vpop.f32.mrb[0].mxu0
        %v3859 = vadd.f32 0.0, %v3858
        %v3860 = vpop.f32.mrb[0].mxu0
        %3861 = vmatprep.mubr.bf16.mxu0 0
        %3862 = vmatmul.mubr.bf16.gmra.mrb[0].mxu0 %v3752
        %v3863 = vpop.f32.mrb[0].mxu0
        %v3864 = vadd.f32 0.0, %v3863
        %v3865 = vpop.f32.mrb[0].mxu0
        %v3866 = vpop.f32.mrb[0].mxu0
        %v3867 = vadd.f32 0.0, %v3866
        %v3868 = vpop.f32.mrb[0].mxu0
        %3869 = vmatprep.mubr.bf16.mxu0 0
        %3870 = vmatmul.mubr.bf16.gmra.mrb[0].mxu0 %v3755
        %v3871 = vpop.f32.mrb[0].mxu0
        %v3872 = vadd.f32 0.0, %v3871
        %v3873 = vpop.f32.mrb[0].mxu0
        %v3874 = vpop.f32.mrb[0].mxu0
        %v3875 = vadd.f32 0.0, %v3874
        %v3876 = vpop.f32.mrb[0].mxu0
        %3877 = vmatprep.mubr.bf16.mxu0 0
        %3878 = vmatmul.mubr.bf16.gmra.mrb[0].mxu0 %v3758
        %v3879 = vpop.f32.mrb[0].mxu0
        %v3880 = vadd.f32 0.0, %v3879
        %v3881 = vpop.f32.mrb[0].mxu0
        %v3882 = vpop.f32.mrb[0].mxu0
        %v3883 = vadd.f32 0.0, %v3882
        %v3884 = vpop.f32.mrb[0].mxu0
        %3885 = vmatprep.mubr.bf16.mxu0 0
        %3886 = vmatmul.mubr.bf16.gmra.mrb[0].mxu0 %v3761
        %v3887 = vpop.f32.mrb[0].mxu0
        %v3888 = vadd.f32 0.0, %v3887
        %v3889 = vpop.f32.mrb[0].mxu0
        %v3890 = vpop.f32.mrb[0].mxu0
        %v3891 = vadd.f32 0.0, %v3890
        %v3892 = vpop.f32.mrb[0].mxu0
        %3893 = vmatprep.mubr.bf16.mxu0 0
        %3894 = vmatmul.mubr.bf16.gmra.mrb[0].mxu0 %v3764
        %v3895 = vpop.f32.mrb[0].mxu0
        %v3896 = vadd.f32 0.0, %v3895
        %v3897 = vpop.f32.mrb[0].mxu0
        %v3898 = vpop.f32.mrb[0].mxu0
        %v3899 = vadd.f32 0.0, %v3898
        %v3900 = vpop.f32.mrb[0].mxu0
        %3901 = vmatprep.mubr.bf16.mxu0 0
        %3902 = vmatmul.mubr.bf16.gmra.mrb[0].mxu0 %v3767
        %v3903 = vpop.f32.mrb[0].mxu0
        %v3904 = vadd.f32 0.0, %v3903
        %v3905 = vpop.f32.mrb[0].mxu0
        %v3906 = vpop.f32.mrb[0].mxu0
        %v3907 = vadd.f32 0.0, %v3906
        %v3908 = vpop.f32.mrb[0].mxu0
        %3909 = vmatprep.mubr.bf16.mxu0 0
        %3910 = vmatmul.mubr.bf16.gmra.mrb[0].mxu0 %v3770
        %v3911 = vpop.f32.mrb[0].mxu0
        %v3912 = vadd.f32 0.0, %v3911
        %v3913 = vpop.f32.mrb[0].mxu0
        %v3914 = vpop.f32.mrb[0].mxu0
        %v3915 = vadd.f32 0.0, %v3914
        %v3916 = vpop.f32.mrb[0].mxu0
        %3917 = vmatprep.mubr.bf16.mxu0 0
        %3918 = vmatmul.mubr.bf16.gmra.mrb[0].mxu0 %v3773
        %v3919 = vpop.f32.mrb[0].mxu0
        %v3920 = vadd.f32 0.0, %v3919
        %v3921 = vpop.f32.mrb[0].mxu0
        %v3922 = vpop.f32.mrb[0].mxu0
        %v3923 = vadd.f32 0.0, %v3922
        %v3924 = vpop.f32.mrb[0].mxu0
        %3925 = vmatprep.mubr.bf16.mxu0 0
        %3926 = vmatmul.mubr.bf16.gmra.mrb[0].mxu0 %v3776
        %v3927 = vpop.f32.mrb[0].mxu0
        %v3928 = vadd.f32 0.0, %v3927
        %v3929 = vpop.f32.mrb[0].mxu0
        %v3930 = vpop.f32.mrb[0].mxu0
        %v3931 = vadd.f32 0.0, %v3930
        %v3932 = vpop.f32.mrb[0].mxu0
        %3933 = vmatprep.mubr.bf16.mxu0 0
        %3934 = vmatmul.mubr.bf16.gmra.mrb[0].mxu0 %v3779
        %v3935 = vpop.f32.mrb[0].mxu0
        %v3936 = vadd.f32 0.0, %v3935
        %v3937 = vpop.f32.mrb[0].mxu0
        %v3938 = vpop.f32.mrb[0].mxu0
        %v3939 = vadd.f32 0.0, %v3938
        %v3940 = vpop.f32.mrb[0].mxu0
        %3941 = vdwg.mxu0
        %v3942 = vadd.f32 %v3478, %v3816
        %v3943 = vadd.f32 %v3481, %v3819
        %v3944 = vadd.f32 %v3486, %v3824
        %v3945 = vadd.f32 %v3489, %v3827
        %v3946 = vadd.f32 %v3494, %v3832
        %v3947 = vadd.f32 %v3497, %v3835
        %v3948 = vadd.f32 %v3502, %v3840
        %v3949 = vadd.f32 %v3505, %v3843
        %v3950 = vadd.f32 %v3510, %v3848
        %v3951 = vadd.f32 %v3513, %v3851
        %v3952 = vadd.f32 %v3518, %v3856
        %v3953 = vadd.f32 %v3521, %v3859
        %v3954 = vadd.f32 %v3526, %v3864
        %v3955 = vadd.f32 %v3529, %v3867
        %v3956 = vadd.f32 %v3534, %v3872
        %v3957 = vadd.f32 %v3537, %v3875
        %v3958 = vadd.f32 %v3542, %v3880
        %v3959 = vadd.f32 %v3545, %v3883
        %v3960 = vadd.f32 %v3550, %v3888
        %v3961 = vadd.f32 %v3553, %v3891
        %v3962 = vadd.f32 %v3558, %v3896
        %v3963 = vadd.f32 %v3561, %v3899
        %v3964 = vadd.f32 %v3566, %v3904
        %v3965 = vadd.f32 %v3569, %v3907
        %v3966 = vadd.f32 %v3574, %v3912
        %v3967 = vadd.f32 %v3577, %v3915
        %v3968 = vadd.f32 %v3582, %v3920
        %v3969 = vadd.f32 %v3585, %v3923
        %v3970 = vadd.f32 %v3590, %v3928
        %v3971 = vadd.f32 %v3593, %v3931
        %v3972 = vadd.f32 %v3598, %v3936
        %v3973 = vadd.f32 %v3601, %v3939
        %v3974 = vld [vmem:[%s6] sm:$0x1]
        %v3976 = vlaneseq
        %v3977 = vshrl.u32 %v3976, 7
        %v3978 = vsub.s32 0, %v3977
        %v3979 = vrot.slane %v3974, %v3978
        %v3981 = vadd.f32 %v3942, %v3979
        %v3982 = vadd.f32 %v3943, %v3979
        %v3983 = vadd.f32 %v3944, %v3979
        %v3984 = vadd.f32 %v3945, %v3979
        %v3985 = vadd.f32 %v3946, %v3979
        %v3986 = vadd.f32 %v3947, %v3979
        %v3987 = vadd.f32 %v3948, %v3979
        %v3988 = vadd.f32 %v3949, %v3979
        %v3989 = vadd.f32 %v3950, %v3979
        %v3990 = vadd.f32 %v3951, %v3979
        %v3991 = vadd.f32 %v3952, %v3979
        %v3992 = vadd.f32 %v3953, %v3979
        %v3993 = vadd.f32 %v3954, %v3979
        %v3994 = vadd.f32 %v3955, %v3979
        %v3995 = vadd.f32 %v3956, %v3979
        %v3996 = vadd.f32 %v3957, %v3979
        %v3997 = vadd.f32 %v3958, %v3979
        %v3998 = vadd.f32 %v3959, %v3979
        %v3999 = vadd.f32 %v3960, %v3979
        %v4000 = vadd.f32 %v3961, %v3979
        %v4001 = vadd.f32 %v3962, %v3979
        %v4002 = vadd.f32 %v3963, %v3979
        %v4003 = vadd.f32 %v3964, %v3979
        %v4004 = vadd.f32 %v3965, %v3979
        %v4005 = vadd.f32 %v3966, %v3979
        %v4006 = vadd.f32 %v3967, %v3979
        %v4007 = vadd.f32 %v3968, %v3979
        %v4008 = vadd.f32 %v3969, %v3979
        %v4009 = vadd.f32 %v3970, %v3979
        %v4010 = vadd.f32 %v3971, %v3979
        %v4011 = vadd.f32 %v3972, %v3979
        %v4012 = vadd.f32 %v3973, %v3979
        %v4013 = vsel %vm799, %v3981, 0.0
        %v4014 = vsel %vm799, %v3982, 0.0
        %v4015 = vadd.f32 %v4013, %v4014
        %v4016 = vsel %vm799, %v3983, 0.0
        %v4017 = vadd.f32 %v4015, %v4016
        %v4018 = vsel %vm799, %v3984, 0.0
        %v4019 = vadd.f32 %v4017, %v4018
        %v4020 = vsel %vm799, %v3985, 0.0
        %v4021 = vadd.f32 %v4019, %v4020
        %v4022 = vsel %vm799, %v3986, 0.0
        %v4023 = vadd.f32 %v4021, %v4022
        %v4024 = vsel %vm799, %v3987, 0.0
        %v4025 = vadd.f32 %v4023, %v4024
        %v4026 = vsel %vm799, %v3988, 0.0
        %v4027 = vadd.f32 %v4025, %v4026
        %v4028 = vsel %vm799, %v3989, 0.0
        %v4029 = vadd.f32 %v4027, %v4028
        %v4030 = vsel %vm799, %v3990, 0.0
        %v4031 = vadd.f32 %v4029, %v4030
        %v4032 = vsel %vm799, %v3991, 0.0
        %v4033 = vadd.f32 %v4031, %v4032
        %v4034 = vsel %vm799, %v3992, 0.0
        %v4035 = vadd.f32 %v4033, %v4034
        %v4036 = vsel %vm799, %v3993, 0.0
        %v4037 = vadd.f32 %v4035, %v4036
        %v4038 = vsel %vm799, %v3994, 0.0
        %v4039 = vadd.f32 %v4037, %v4038
        %v4040 = vsel %vm799, %v3995, 0.0
        %v4041 = vadd.f32 %v4039, %v4040
        %v4042 = vsel %vm799, %v3996, 0.0
        %v4043 = vadd.f32 %v4041, %v4042
        %v4044 = vsel %vm799, %v3997, 0.0
        %v4045 = vadd.f32 %v4043, %v4044
        %v4046 = vsel %vm799, %v3998, 0.0
        %v4047 = vadd.f32 %v4045, %v4046
        %v4048 = vsel %vm799, %v3999, 0.0
        %v4049 = vadd.f32 %v4047, %v4048
        %v4050 = vsel %vm799, %v4000, 0.0
        %v4051 = vadd.f32 %v4049, %v4050
        %v4052 = vsel %vm799, %v4001, 0.0
        %v4053 = vadd.f32 %v4051, %v4052
        %v4054 = vsel %vm799, %v4002, 0.0
        %v4055 = vadd.f32 %v4053, %v4054
        %v4056 = vsel %vm799, %v4003, 0.0
        %v4057 = vadd.f32 %v4055, %v4056
        %v4058 = vsel %vm799, %v4004, 0.0
        %v4059 = vadd.f32 %v4057, %v4058
        %v4060 = vsel %vm799, %v4005, 0.0
        %v4061 = vadd.f32 %v4059, %v4060
        %v4062 = vsel %vm799, %v4006, 0.0
        %v4063 = vadd.f32 %v4061, %v4062
        %v4064 = vsel %vm799, %v4007, 0.0
        %v4065 = vadd.f32 %v4063, %v4064
        %v4066 = vsel %vm799, %v4008, 0.0
        %v4067 = vadd.f32 %v4065, %v4066
        %v4068 = vsel %vm799, %v4009, 0.0
        %v4069 = vadd.f32 %v4067, %v4068
        %v4070 = vsel %vm799, %v4010, 0.0
        %v4071 = vadd.f32 %v4069, %v4070
        %v4072 = vsel %vm799, %v4011, 0.0
        %v4073 = vadd.f32 %v4071, %v4072
        %v4074 = vsel %vm799, %v4012, 0.0
        %v4075 = vadd.f32 %v4073, %v4074
        %v4076 = vrot.slane %v4075, 4
        %v4077 = vadd.f32 %v4075, %v4076
        %v4078 = vrot.slane %v4077, 2
        %v4079 = vadd.f32 %v4077, %v4078
        %v4080 = vrot.slane %v4079, 1
        %v4081 = vadd.f32 %v4079, %v4080
        %v4082 = vmul.f32 %v4081, %v2097
        %v4083 = vsub.f32 %v3981, %v4082
        %v4084 = vsub.f32 %v3982, %v4082
        %v4085 = vsub.f32 %v3983, %v4082
        %v4086 = vsub.f32 %v3984, %v4082
        %v4087 = vsub.f32 %v3985, %v4082
        %v4088 = vsub.f32 %v3986, %v4082
        %v4089 = vsub.f32 %v3987, %v4082
        %v4090 = vsub.f32 %v3988, %v4082
        %v4091 = vsub.f32 %v3989, %v4082
        %v4092 = vsub.f32 %v3990, %v4082
        %v4093 = vsub.f32 %v3991, %v4082
        %v4094 = vsub.f32 %v3992, %v4082
        %v4095 = vsub.f32 %v3993, %v4082
        %v4096 = vsub.f32 %v3994, %v4082
        %v4097 = vsub.f32 %v3995, %v4082
        %v4098 = vsub.f32 %v3996, %v4082
        %v4099 = vsub.f32 %v3997, %v4082
        %v4100 = vsub.f32 %v3998, %v4082
        %v4101 = vsub.f32 %v3999, %v4082
        %v4102 = vsub.f32 %v4000, %v4082
        %v4103 = vsub.f32 %v4001, %v4082
        %v4104 = vsub.f32 %v4002, %v4082
        %v4105 = vsub.f32 %v4003, %v4082
        %v4106 = vsub.f32 %v4004, %v4082
        %v4107 = vsub.f32 %v4005, %v4082
        %v4108 = vsub.f32 %v4006, %v4082
        %v4109 = vsub.f32 %v4007, %v4082
        %v4110 = vsub.f32 %v4008, %v4082
        %v4111 = vsub.f32 %v4009, %v4082
        %v4112 = vsub.f32 %v4010, %v4082
        %v4113 = vsub.f32 %v4011, %v4082
        %v4114 = vsub.f32 %v4012, %v4082
        %v4115 = vmul.f32 %v4083, %v4083
        %v4116 = vmul.f32 %v4084, %v4084
        %v4117 = vmul.f32 %v4085, %v4085
        %v4118 = vmul.f32 %v4086, %v4086
        %v4119 = vmul.f32 %v4087, %v4087
        %v4120 = vmul.f32 %v4088, %v4088
        %v4121 = vmul.f32 %v4089, %v4089
        %v4122 = vmul.f32 %v4090, %v4090
        %v4123 = vmul.f32 %v4091, %v4091
        %v4124 = vmul.f32 %v4092, %v4092
        %v4125 = vmul.f32 %v4093, %v4093
        %v4126 = vmul.f32 %v4094, %v4094
        %v4127 = vmul.f32 %v4095, %v4095
        %v4128 = vmul.f32 %v4096, %v4096
        %v4129 = vmul.f32 %v4097, %v4097
        %v4130 = vmul.f32 %v4098, %v4098
        %v4131 = vmul.f32 %v4099, %v4099
        %v4132 = vmul.f32 %v4100, %v4100
        %v4133 = vmul.f32 %v4101, %v4101
        %v4134 = vmul.f32 %v4102, %v4102
        %v4135 = vmul.f32 %v4103, %v4103
        %v4136 = vmul.f32 %v4104, %v4104
        %v4137 = vmul.f32 %v4105, %v4105
        %v4138 = vmul.f32 %v4106, %v4106
        %v4139 = vmul.f32 %v4107, %v4107
        %v4140 = vmul.f32 %v4108, %v4108
        %v4141 = vmul.f32 %v4109, %v4109
        %v4142 = vmul.f32 %v4110, %v4110
        %v4143 = vmul.f32 %v4111, %v4111
        %v4144 = vmul.f32 %v4112, %v4112
        %v4145 = vmul.f32 %v4113, %v4113
        %v4146 = vmul.f32 %v4114, %v4114
        %v4147 = vsel %vm799, %v4115, 0.0
        %v4148 = vsel %vm799, %v4116, 0.0
        %v4149 = vadd.f32 %v4147, %v4148
        %v4150 = vsel %vm799, %v4117, 0.0
        %v4151 = vadd.f32 %v4149, %v4150
        %v4152 = vsel %vm799, %v4118, 0.0
        %v4153 = vadd.f32 %v4151, %v4152
        %v4154 = vsel %vm799, %v4119, 0.0
        %v4155 = vadd.f32 %v4153, %v4154
        %v4156 = vsel %vm799, %v4120, 0.0
        %v4157 = vadd.f32 %v4155, %v4156
        %v4158 = vsel %vm799, %v4121, 0.0
        %v4159 = vadd.f32 %v4157, %v4158
        %v4160 = vsel %vm799, %v4122, 0.0
        %v4161 = vadd.f32 %v4159, %v4160
        %v4162 = vsel %vm799, %v4123, 0.0
        %v4163 = vadd.f32 %v4161, %v4162
        %v4164 = vsel %vm799, %v4124, 0.0
        %v4165 = vadd.f32 %v4163, %v4164
        %v4166 = vsel %vm799, %v4125, 0.0
        %v4167 = vadd.f32 %v4165, %v4166
        %v4168 = vsel %vm799, %v4126, 0.0
        %v4169 = vadd.f32 %v4167, %v4168
        %v4170 = vsel %vm799, %v4127, 0.0
        %v4171 = vadd.f32 %v4169, %v4170
        %v4172 = vsel %vm799, %v4128, 0.0
        %v4173 = vadd.f32 %v4171, %v4172
        %v4174 = vsel %vm799, %v4129, 0.0
        %v4175 = vadd.f32 %v4173, %v4174
        %v4176 = vsel %vm799, %v4130, 0.0
        %v4177 = vadd.f32 %v4175, %v4176
        %v4178 = vsel %vm799, %v4131, 0.0
        %v4179 = vadd.f32 %v4177, %v4178
        %v4180 = vsel %vm799, %v4132, 0.0
        %v4181 = vadd.f32 %v4179, %v4180
        %v4182 = vsel %vm799, %v4133, 0.0
        %v4183 = vadd.f32 %v4181, %v4182
        %v4184 = vsel %vm799, %v4134, 0.0
        %v4185 = vadd.f32 %v4183, %v4184
        %v4186 = vsel %vm799, %v4135, 0.0
        %v4187 = vadd.f32 %v4185, %v4186
        %v4188 = vsel %vm799, %v4136, 0.0
        %v4189 = vadd.f32 %v4187, %v4188
        %v4190 = vsel %vm799, %v4137, 0.0
        %v4191 = vadd.f32 %v4189, %v4190
        %v4192 = vsel %vm799, %v4138, 0.0
        %v4193 = vadd.f32 %v4191, %v4192
        %v4194 = vsel %vm799, %v4139, 0.0
        %v4195 = vadd.f32 %v4193, %v4194
        %v4196 = vsel %vm799, %v4140, 0.0
        %v4197 = vadd.f32 %v4195, %v4196
        %v4198 = vsel %vm799, %v4141, 0.0
        %v4199 = vadd.f32 %v4197, %v4198
        %v4200 = vsel %vm799, %v4142, 0.0
        %v4201 = vadd.f32 %v4199, %v4200
        %v4202 = vsel %vm799, %v4143, 0.0
        %v4203 = vadd.f32 %v4201, %v4202
        %v4204 = vsel %vm799, %v4144, 0.0
        %v4205 = vadd.f32 %v4203, %v4204
        %v4206 = vsel %vm799, %v4145, 0.0
        %v4207 = vadd.f32 %v4205, %v4206
        %v4208 = vsel %vm799, %v4146, 0.0
        %v4209 = vadd.f32 %v4207, %v4208
        %v4210 = vrot.slane %v4209, 4
        %v4211 = vadd.f32 %v4209, %v4210
        %v4212 = vrot.slane %v4211, 2
        %v4213 = vadd.f32 %v4211, %v4212
        %v4214 = vrot.slane %v4213, 1
        %v4215 = vadd.f32 %v4213, %v4214
        %v4216 = vmul.f32 %v4215, %v2097
        %v4217 = vadd.f32 %v4216, 1e-05
        %v4218 = vrsqrt.pop %v4217
        %v4219 = vmul.f32 %v4083, %v4218
        %v4220 = vmul.f32 %v4084, %v4218
        %v4221 = vmul.f32 %v4085, %v4218
        %v4222 = vmul.f32 %v4086, %v4218
        %v4223 = vmul.f32 %v4087, %v4218
        %v4224 = vmul.f32 %v4088, %v4218
        %v4225 = vmul.f32 %v4089, %v4218
        %v4226 = vmul.f32 %v4090, %v4218
        %v4227 = vmul.f32 %v4091, %v4218
        %v4228 = vmul.f32 %v4092, %v4218
        %v4229 = vmul.f32 %v4093, %v4218
        %v4230 = vmul.f32 %v4094, %v4218
        %v4231 = vmul.f32 %v4095, %v4218
        %v4232 = vmul.f32 %v4096, %v4218
        %v4233 = vmul.f32 %v4097, %v4218
        %v4234 = vmul.f32 %v4098, %v4218
        %v4235 = vmul.f32 %v4099, %v4218
        %v4236 = vmul.f32 %v4100, %v4218
        %v4237 = vmul.f32 %v4101, %v4218
        %v4238 = vmul.f32 %v4102, %v4218
        %v4239 = vmul.f32 %v4103, %v4218
        %v4240 = vmul.f32 %v4104, %v4218
        %v4241 = vmul.f32 %v4105, %v4218
        %v4242 = vmul.f32 %v4106, %v4218
        %v4243 = vmul.f32 %v4107, %v4218
        %v4244 = vmul.f32 %v4108, %v4218
        %v4245 = vmul.f32 %v4109, %v4218
        %v4246 = vmul.f32 %v4110, %v4218
        %v4247 = vmul.f32 %v4111, %v4218
        %v4248 = vmul.f32 %v4112, %v4218
        %v4249 = vmul.f32 %v4113, %v4218
        %v4250 = vmul.f32 %v4114, %v4218
        %v4251 = vld [vmem:[%s7] sm:$0x1]
        %v4253 = vlaneseq
        %v4254 = vshrl.u32 %v4253, 7
        %v4255 = vsub.s32 0, %v4254
        %v4256 = vrot.slane %v4251, %v4255
        %v4258 = vmul.f32 %v4219, %v4256
        %v4259 = vmul.f32 %v4220, %v4256
        %v4260 = vmul.f32 %v4221, %v4256
        %v4261 = vmul.f32 %v4222, %v4256
        %v4262 = vmul.f32 %v4223, %v4256
        %v4263 = vmul.f32 %v4224, %v4256
        %v4264 = vmul.f32 %v4225, %v4256
        %v4265 = vmul.f32 %v4226, %v4256
        %v4266 = vmul.f32 %v4227, %v4256
        %v4267 = vmul.f32 %v4228, %v4256
        %v4268 = vmul.f32 %v4229, %v4256
        %v4269 = vmul.f32 %v4230, %v4256
        %v4270 = vmul.f32 %v4231, %v4256
        %v4271 = vmul.f32 %v4232, %v4256
        %v4272 = vmul.f32 %v4233, %v4256
        %v4273 = vmul.f32 %v4234, %v4256
        %v4274 = vmul.f32 %v4235, %v4256
        %v4275 = vmul.f32 %v4236, %v4256
        %v4276 = vmul.f32 %v4237, %v4256
        %v4277 = vmul.f32 %v4238, %v4256
        %v4278 = vmul.f32 %v4239, %v4256
        %v4279 = vmul.f32 %v4240, %v4256
        %v4280 = vmul.f32 %v4241, %v4256
        %v4281 = vmul.f32 %v4242, %v4256
        %v4282 = vmul.f32 %v4243, %v4256
        %v4283 = vmul.f32 %v4244, %v4256
        %v4284 = vmul.f32 %v4245, %v4256
        %v4285 = vmul.f32 %v4246, %v4256
        %v4286 = vmul.f32 %v4247, %v4256
        %v4287 = vmul.f32 %v4248, %v4256
        %v4288 = vmul.f32 %v4249, %v4256
        %v4289 = vmul.f32 %v4250, %v4256
        %v4290 = vld [vmem:[%s8] sm:$0x1]
        %v4292 = vlaneseq
        %v4293 = vshrl.u32 %v4292, 7
        %v4294 = vsub.s32 0, %v4293
        %v4295 = vrot.slane %v4290, %v4294
        %v4297 = vadd.f32 %v4258, %v4295
        %v4298 = vadd.f32 %v4259, %v4295
        %v4299 = vadd.f32 %v4260, %v4295
        %v4300 = vadd.f32 %v4261, %v4295
        %v4301 = vadd.f32 %v4262, %v4295
        %v4302 = vadd.f32 %v4263, %v4295
        %v4303 = vadd.f32 %v4264, %v4295
        %v4304 = vadd.f32 %v4265, %v4295
        %v4305 = vadd.f32 %v4266, %v4295
        %v4306 = vadd.f32 %v4267, %v4295
        %v4307 = vadd.f32 %v4268, %v4295
        %v4308 = vadd.f32 %v4269, %v4295
        %v4309 = vadd.f32 %v4270, %v4295
        %v4310 = vadd.f32 %v4271, %v4295
        %v4311 = vadd.f32 %v4272, %v4295
        %v4312 = vadd.f32 %v4273, %v4295
        %v4313 = vadd.f32 %v4274, %v4295
        %v4314 = vadd.f32 %v4275, %v4295
        %v4315 = vadd.f32 %v4276, %v4295
        %v4316 = vadd.f32 %v4277, %v4295
        %v4317 = vadd.f32 %v4278, %v4295
        %v4318 = vadd.f32 %v4279, %v4295
        %v4319 = vadd.f32 %v4280, %v4295
        %v4320 = vadd.f32 %v4281, %v4295
        %v4321 = vadd.f32 %v4282, %v4295
        %v4322 = vadd.f32 %v4283, %v4295
        %v4323 = vadd.f32 %v4284, %v4295
        %v4324 = vadd.f32 %v4285, %v4295
        %v4325 = vadd.f32 %v4286, %v4295
        %v4326 = vadd.f32 %v4287, %v4295
        %v4327 = vadd.f32 %v4288, %v4295
        %v4328 = vadd.f32 %v4289, %v4295
        %v4329 = vadd.f32 %v4297, %v354
        %v4330 = vadd.f32 %v4298, %v355
        %v4331 = vadd.f32 %v4299, %v356
        %v4332 = vadd.f32 %v4300, %v357
        %v4333 = vadd.f32 %v4301, %v358
        %v4334 = vadd.f32 %v4302, %v359
        %v4335 = vadd.f32 %v4303, %v360
        %v4336 = vadd.f32 %v4304, %v361
        %v4337 = vadd.f32 %v4305, %v362
        %v4338 = vadd.f32 %v4306, %v363
        %v4339 = vadd.f32 %v4307, %v364
        %v4340 = vadd.f32 %v4308, %v365
        %v4341 = vadd.f32 %v4309, %v366
        %v4342 = vadd.f32 %v4310, %v367
        %v4343 = vadd.f32 %v4311, %v368
        %v4344 = vadd.f32 %v4312, %v369
        %v4345 = vadd.f32 %v4313, %v370
        %v4346 = vadd.f32 %v4314, %v371
        %v4347 = vadd.f32 %v4315, %v372
        %v4348 = vadd.f32 %v4316, %v373
        %v4349 = vadd.f32 %v4317, %v374
        %v4350 = vadd.f32 %v4318, %v375
        %v4351 = vadd.f32 %v4319, %v376
        %v4352 = vadd.f32 %v4320, %v377
        %v4353 = vadd.f32 %v4321, %v378
        %v4354 = vadd.f32 %v4322, %v379
        %v4355 = vadd.f32 %v4323, %v380
        %v4356 = vadd.f32 %v4324, %v381
        %v4357 = vadd.f32 %v4325, %v382
        %v4358 = vadd.f32 %v4326, %v383
        %v4359 = vadd.f32 %v4327, %v384
        %v4360 = vadd.f32 %v4328, %v385
        %4361 = vst.msk [vmem:[%s352] sm:$0xff] %vm799, %v4329
        %4362 = vst.msk [vmem:[%s352 + $0x8] sm:$0xff] %vm799, %v4330
        %4363 = vst.msk [vmem:[%s352 + $0x10] sm:$0xff] %vm799, %v4331
        %4364 = vst.msk [vmem:[%s352 + $0x18] sm:$0xff] %vm799, %v4332
        %4365 = vst.msk [vmem:[%s352 + $0x20] sm:$0xff] %vm799, %v4333
        %4366 = vst.msk [vmem:[%s352 + $0x28] sm:$0xff] %vm799, %v4334
        %4367 = vst.msk [vmem:[%s352 + $0x30] sm:$0xff] %vm799, %v4335
        %4368 = vst.msk [vmem:[%s352 + $0x38] sm:$0xff] %vm799, %v4336
        %4369 = vst.msk [vmem:[%s352 + $0x40] sm:$0xff] %vm799, %v4337
        %4370 = vst.msk [vmem:[%s352 + $0x48] sm:$0xff] %vm799, %v4338
        %4371 = vst.msk [vmem:[%s352 + $0x50] sm:$0xff] %vm799, %v4339
        %4372 = vst.msk [vmem:[%s352 + $0x58] sm:$0xff] %vm799, %v4340
        %4373 = vst.msk [vmem:[%s352 + $0x60] sm:$0xff] %vm799, %v4341
        %4374 = vst.msk [vmem:[%s352 + $0x68] sm:$0xff] %vm799, %v4342
        %4375 = vst.msk [vmem:[%s352 + $0x70] sm:$0xff] %vm799, %v4343
        %4376 = vst.msk [vmem:[%s352 + $0x78] sm:$0xff] %vm799, %v4344
        %4377 = vst.msk [vmem:[%s352 + $0x80] sm:$0xff] %vm799, %v4345
        %4378 = vst.msk [vmem:[%s352 + $0x88] sm:$0xff] %vm799, %v4346
        %4379 = vst.msk [vmem:[%s352 + $0x90] sm:$0xff] %vm799, %v4347
        %4380 = vst.msk [vmem:[%s352 + $0x98] sm:$0xff] %vm799, %v4348
        %4381 = vst.msk [vmem:[%s352 + $0xa0] sm:$0xff] %vm799, %v4349
        %4382 = vst.msk [vmem:[%s352 + $0xa8] sm:$0xff] %vm799, %v4350
        %4383 = vst.msk [vmem:[%s352 + $0xb0] sm:$0xff] %vm799, %v4351
        %4384 = vst.msk [vmem:[%s352 + $0xb8] sm:$0xff] %vm799, %v4352
        %4385 = vst.msk [vmem:[%s352 + $0xc0] sm:$0xff] %vm799, %v4353
        %4386 = vst.msk [vmem:[%s352 + $0xc8] sm:$0xff] %vm799, %v4354
        %4387 = vst.msk [vmem:[%s352 + $0xd0] sm:$0xff] %vm799, %v4355
        %4388 = vst.msk [vmem:[%s352 + $0xd8] sm:$0xff] %vm799, %v4356
        %4389 = vst.msk [vmem:[%s352 + $0xe0] sm:$0xff] %vm799, %v4357
        %4390 = vst.msk [vmem:[%s352 + $0xe8] sm:$0xff] %vm799, %v4358
        %4391 = vst.msk [vmem:[%s352 + $0xf0] sm:$0xff] %vm799, %v4359
        %4392 = vst.msk [vmem:[%s352 + $0xf8] sm:$0xff] %vm799, %v4360
        %p4393 = scmp.lt.s32.totalorder %s23, 1
        %s4394 = scalar_select %p4393, %s23, 1
        %s4395 = smul.addr %s4394, 32
        %s4396 = smul.addr %s4395, 8
        %s4397 = scalar_lea.vmem %s9, %s4396
        // Predicated region
        $region61: #{tpu_custom_call.1} parent=55 // pred_check
          %p4398 = pneg %p235
        $region62: #{tpu_custom_call.1} parent=55 // pred_check_branch
          %4400 = sbr.rel (%p4398) target = $region64
        $region63: #{tpu_custom_call.1} parent=55 // pred_region
          _
        $region64: #{tpu_custom_call.1} parent=55 // pred_fallthru
          _
      $region56: #{tpu_custom_call.1} parent=5 // pred_fallthru
        _
      %p4401 = scmp.le.s32.totalorder 2, %s18
      // Predicated region
      $region65: #{tpu_custom_call.1} parent=5 // pred_check
        %p4402 = pneg %p4401
      $region66: #{tpu_custom_call.1} parent=5 // pred_check_branch
        %4404 = sbr.rel (%p4402) target = $region68
      $region67: #{tpu_custom_call.1} parent=5 // pred_region
        %s4405 = ssub.s32 %s18, 2
        // Predicated region
        $region69: #{tpu_custom_call.1} parent=67 // pred_check
          %p4406 = pneg %p241
        $region70: #{tpu_custom_call.1} parent=67 // pred_check_branch
          %4408 = sbr.rel (%p4406) target = $region72
        $region71: #{tpu_custom_call.1} parent=67 // pred_region
          %p4409 = scmp.lt.s32.totalorder %s24, 1
          %s4410 = scalar_select %p4409, %s24, 1
          %s4411 = smul.addr %s4410, 32
          %s4412 = smul.addr %s4411, 8
          %s4413 = scalar_lea.vmem %s9, %s4412
        $region72: #{tpu_custom_call.1} parent=67 // pred_fallthru
          _
      $region68: #{tpu_custom_call.1} parent=5 // pred_fallthru
        _
    $region6: #{tpu_custom_call.1} parent=1 // loop_footer
      %s22 = sadd.s32 1, %s18
    $region7: #{tpu_custom_call.1} parent=1 // loop_footer_branch
      %17 = sbr.rel target = $region3
    $region8: #{tpu_custom_call.1} parent=1 // loop_exit
      _
    %4414 = vsyncpa [#allocation3], 1
    %s4415 = scalar_lea.sflag [#allocation3], 1
    %4416 = vsyncpa %s4415, 1

</llo_original>
